<compile_context>
chip_gen: v7x
topology: tpu7x:2x2x1
jax: 0.10.0
libtpu: 0.0.40
codegen_flags: <defaults>
</compile_context>

<pallas_src>
import functools

import jax
import jax.numpy as jnp
from jax import lax
from jax.experimental import pallas as pl
from jax.experimental.pallas import tpu as pltpu


def _round_up(n, m):
    return ((n + m - 1) // m) * m


def _pick_tile(n, preferred):
    for t in preferred:
        if t <= n and n % t == 0:
            return t
    return n


def _vmem_capacity_bytes():
    try:
        info = pltpu.get_tpu_info()
        cap = getattr(info, "vmem_capacity_bytes", None)
        if cap:
            return int(cap)
    except Exception:
        pass
    return 64 << 20   # conservative fallback (v7x per-TC VMEM)


_VMEM_BYTES = _vmem_capacity_bytes()
_BIG_VMEM = _VMEM_BYTES >= (96 << 20)            # v5e / v6e 128 MiB parts
# Leave >=16 MiB headroom for Mosaic internal scratch / semaphores / buffers.
_VMEM_CAP = max(min(_VMEM_BYTES - (16 << 20), 100 << 20), 16 << 20)
_TM_MAX, _TN_MAX = (2048, 1024) if _BIG_VMEM else (512, 512)


def _vmem_limit(resident_bytes):
    # double-buffered pipeline + headroom, capped per chip generation.
    return int(min(max(2 * resident_bytes + (2 << 20), 16 << 20), _VMEM_CAP))


def _sigmoid(x):
    # One EUP tanh push instead of exp + reciprocal.
    return 0.5 * jnp.tanh(0.5 * x) + 0.5


# ---------------------------------------------------------------------------
# Tiled matmul + bias kernel (shared by gates_ih precompute, lm_fc, classify_fc)
# ---------------------------------------------------------------------------

def _matmul_bias_kernel(x_ref, w_ref, b_ref, o_ref):
    acc = jnp.dot(x_ref[...], w_ref[...],
                  preferred_element_type=jnp.float32) + b_ref[...]
    o_ref[...] = acc.astype(o_ref.dtype)


def _choose_tile_m(M, tm_max):
    """Pick the M tile; guarantees tm | M_pad and no silent huge blocks."""
    if M <= tm_max:
        return M, M                      # single full-M stripe, always legal
    for t in range(tm_max, tm_max // 2, -16):
        if M % t == 0:
            return t, M                  # exact divisor, no padding
    return tm_max, _round_up(M, tm_max)  # pad M up, slice result afterwards


def matmul_bias(x, w, b, out_dtype=jnp.float32):
    """(M, K) @ (K, N) + (1, N) -> (M, N) out_dtype, grid-tiled over (M, N)."""
    M, K = x.shape
    K2, N = w.shape
    assert K == K2 and b.shape == (1, N)
    tm, M_pad = _choose_tile_m(M, _TM_MAX)
    if M_pad != M:
        x = jnp.pad(x, ((0, M_pad - M), (0, 0)))
    tn = _pick_tile(N, tuple(t for t in (2048, 1024, 512, 256, 128)
                             if t <= _TN_MAX))
    out_itemsize = jnp.dtype(out_dtype).itemsize
    resident = (tm * K * x.dtype.itemsize + K * tn * w.dtype.itemsize
                + tn * 4 + tm * tn * out_itemsize)
    out = pl.pallas_call(
        _matmul_bias_kernel,
        out_shape=jax.ShapeDtypeStruct((M_pad, N), out_dtype),
        grid=(M_pad // tm, N // tn),
        in_specs=[pl.BlockSpec((tm, K), lambda i, j: (i, 0)),
                  pl.BlockSpec((K, tn), lambda i, j: (0, j)),
                  pl.BlockSpec((1, tn), lambda i, j: (0, j))],
        out_specs=pl.BlockSpec((tm, tn), lambda i, j: (i, j)),
        compiler_params=pltpu.CompilerParams(
            dimension_semantics=("parallel", "parallel"),
            vmem_limit_bytes=_vmem_limit(resident)),
    )(x, w, b)
    return out[:M] if M_pad != M else out


# ---------------------------------------------------------------------------
# Per-layer LSTM recurrence: gates_ih already precomputed (bf16); only the
# recurrent (B,H)x(H,4H) matmul + gate elementwise + masked state update run
# per step.  Time is streamed in chunks; h/c live in the fori_loop carry and
# are written back to the resident output blocks once per chunk.
# Gate layout along 4H: [i, f, o, g] (sigmoid over the first 3H, tanh on last H).
# ---------------------------------------------------------------------------

def _lstm_layer_kernel(gih_ref, len_ref, whh_ref, hseq_ref, h_ref, c_ref,
                       *, unroll):
    TC = gih_ref.shape[0]
    H = whh_ref.shape[0]

    @pl.when(pl.program_id(1) == 0)
    def _():
        h_ref[...] = jnp.zeros_like(h_ref)
        c_ref[...] = jnp.zeros_like(c_ref)

    t0 = pl.program_id(1) * TC
    lens = len_ref[...]                                     # (Bt, 1) int32

    # TODO(synk): chunks entirely past max(lengths) could be skipped via a
    # scalar-prefetched max length + pl.when; currently they run and mask out.
    def step(t, carry):
        h, c = carry
        gates = gih_ref[t].astype(jnp.float32) + jnp.dot(
            h.astype(jnp.bfloat16), whh_ref[...],
            preferred_element_type=jnp.float32)
        ifo = _sigmoid(gates[:, :3 * H])                    # one contiguous EUP slab
        i_g = ifo[:, 0 * H:1 * H]
        f_g = ifo[:, 1 * H:2 * H]
        o_g = ifo[:, 2 * H:3 * H]
        g_g = jnp.tanh(gates[:, 3 * H:4 * H])
        c_new = f_g * c + i_g * g_g
        h_new = o_g * jnp.tanh(c_new)
        # packed-sequence semantics: padded steps do not advance the state.
        m = (t0 + t) < lens                                 # (Bt, 1) bool
        hseq_ref[t] = jnp.where(m, h_new, 0.0).astype(hseq_ref.dtype)
        return jnp.where(m, h_new, h), jnp.where(m, c_new, c)

    h, c = lax.fori_loop(0, TC, step, (h_ref[...], c_ref[...]), unroll=unroll)
    h_ref[...] = h
    c_ref[...] = c


def lstm_layer(gih, lengths, whh_bf16):
    """gih: (T, B, 4H) bf16, lengths: (B, 1) int32, whh: (H, 4H) bf16."""
    T, B, G = gih.shape
    H = whh_bf16.shape[0]
    assert G == 4 * H

    tc_pref = (64, 32, 16, 8, 4, 2, 1) if _BIG_VMEM else (32, 16, 8, 4, 2, 1)
    TC = _pick_tile(T, tc_pref)
    # Split batch across cores only when the split keeps bf16-friendly blocks.
    Bt = B // 2 if (B >= 32 and (B // 2) % 16 == 0) else B
    if H >= 512:
        unroll = 2
    elif TC > 16:
        unroll = 8
    else:
        unroll = True

    resident = (H * G * 2 + TC * Bt * G * gih.dtype.itemsize + Bt * 4
                + TC * Bt * H * 2 + 2 * Bt * H * 4)
    kernel = functools.partial(_lstm_layer_kernel, unroll=unroll)
    return pl.pallas_call(
        kernel,
        out_shape=(jax.ShapeDtypeStruct((T, B, H), jnp.bfloat16),   # hseq
                   jax.ShapeDtypeStruct((B, H), jnp.float32),       # final h
                   jax.ShapeDtypeStruct((B, H), jnp.float32)),      # final c
        grid=(B // Bt, T // TC),
        in_specs=[pl.BlockSpec((TC, Bt, G), lambda b, t: (t, b, 0)),
                  pl.BlockSpec((Bt, 1), lambda b, t: (b, 0)),
                  pl.BlockSpec((H, G), lambda b, t: (0, 0))],
        out_specs=(pl.BlockSpec((TC, Bt, H), lambda b, t: (t, b, 0)),
                   pl.BlockSpec((Bt, H), lambda b, t: (b, 0)),
                   pl.BlockSpec((Bt, H), lambda b, t: (b, 0))),
        compiler_params=pltpu.CompilerParams(
            dimension_semantics=("parallel", "arbitrary"),
            vmem_limit_bytes=_vmem_limit(resident)),
    )(gih, lengths, whh_bf16)


# ---------------------------------------------------------------------------
# Weight packing: per-gate 128-aligned column blocks, zero padding.
# PyTorch gate order along 4H is [i, f, g, o]; packed order here is [i, f, o, g]
# so one sigmoid covers a contiguous 3*H_pad slice.
# ---------------------------------------------------------------------------

_GATE_PERM = (0, 1, 3, 2)   # packed slot k takes torch gate _GATE_PERM[k]


def _pack_gate_cols(w_t, in_dim, in_pad, H, H_pad):
    out = jnp.zeros((in_pad, 4 * H_pad), jnp.float32)
    for k, src in enumerate(_GATE_PERM):
        out = out.at[:in_dim, k * H_pad:k * H_pad + H].set(
            w_t[:, src * H:(src + 1) * H])
    return out


def _pack_gate_bias(b, H, H_pad):
    out = jnp.zeros((1, 4 * H_pad), jnp.float32)
    for k, src in enumerate(_GATE_PERM):
        out = out.at[0, k * H_pad:k * H_pad + H].set(b[src * H:(src + 1) * H])
    return out


# ---------------------------------------------------------------------------
# Params init (matches PyTorch default initializers)
# ---------------------------------------------------------------------------

def init_params(key, vocab_size, embedding_dim, hidden_size, num_layers):
    H = hidden_size
    k_lstm = 1.0 / float(H) ** 0.5
    params = {}
    key, sub = jax.random.split(key)
    params['embedding'] = jax.random.normal(
        sub, (vocab_size, embedding_dim), jnp.float32)          # nn.Embedding: N(0,1)
    lstm = []
    for l in range(num_layers):
        in_dim = embedding_dim if l == 0 else H
        key, k1, k2, k3, k4 = jax.random.split(key, 5)
        w_ih = jax.random.uniform(k1, (4 * H, in_dim), jnp.float32, -k_lstm, k_lstm)
        w_hh = jax.random.uniform(k2, (4 * H, H), jnp.float32, -k_lstm, k_lstm)
        b_ih = jax.random.uniform(k3, (4 * H,), jnp.float32, -k_lstm, k_lstm)
        b_hh = jax.random.uniform(k4, (4 * H,), jnp.float32, -k_lstm, k_lstm)
        lstm.append({'w_ih': w_ih, 'w_hh': w_hh, 'b': b_ih + b_hh})
    params['lstm'] = lstm
    key, k1, k2, k3, k4 = jax.random.split(key, 5)
    k_lm = 1.0 / float(H) ** 0.5
    params['w_lm'] = jax.random.uniform(k1, (vocab_size, H), jnp.float32, -k_lm, k_lm)
    params['b_lm'] = jax.random.uniform(k2, (vocab_size,), jnp.float32, -k_lm, k_lm)
    k_cls = 1.0 / float(2 * H) ** 0.5
    params['w_cls'] = jax.random.uniform(k3, (2, 2 * H), jnp.float32, -k_cls, k_cls)
    params['b_cls'] = jax.random.uniform(k4, (2,), jnp.float32, -k_cls, k_cls)
    return params


# ---------------------------------------------------------------------------
# Forward pass (mirrors RNN.forward(x) with hidden=None, eval mode). Jit-able.
# ---------------------------------------------------------------------------

def rnn_forward(params, x, *, embedding_dim, hidden_size, num_layers, vocab_size):
    T, B = x.shape
    H, E, V, L = hidden_size, embedding_dim, vocab_size, num_layers
    assert L >= 2, "classify head needs hidden[-2] and hidden[-1] (num_layers >= 2)"

    H_pad = _round_up(H, 128)
    E_pad = _round_up(E, 128)
    V_pad = _round_up(V, 128)
    B_pad = _round_up(B, 8)

    # text_lengths = sum(x != 0, dim=0)
    lengths = jnp.sum(x != 0, axis=0).astype(jnp.int32)            # (B,)
    # TODO(synk): pad_packed_sequence truncates time to max(lengths); here the
    # static input T is used (identical when some sequence spans the full T),
    # which keeps the whole forward jax.jit-able.
    lengths_pad = jnp.pad(lengths, (0, B_pad - B))[:, None]        # (B_pad, 1) i32

    # Embedding gather (glue) + padding to lane-dense shapes.
    emb_tbl = jnp.pad(params['embedding'], ((0, 0), (0, E_pad - E)))
    emb = jnp.take(emb_tbl, x, axis=0)                             # (T, B, E_pad)
    emb = jnp.pad(emb, ((0, 0), (0, B_pad - B), (0, 0)))           # (T, B_pad, E_pad)
    # TODO(synk): dropout on embedding / between layers / on hiddens is identity (eval).

    x_l = emb.astype(jnp.bfloat16)
    in_dim, in_pad = E, E_pad
    h_fins, c_fins = [], []
    hseq = None
    for l in range(L):
        lw = params['lstm'][l]
        w_ih_t = _pack_gate_cols(lw['w_ih'].T, in_dim, in_pad, H, H_pad)   # (in_pad, 4H_pad)
        w_hh_t = _pack_gate_cols(lw['w_hh'].T, H, H_pad, H, H_pad)         # (H_pad, 4H_pad)
        b_g = _pack_gate_bias(lw['b'], H, H_pad)                           # (1, 4H_pad)

        # Hoisted input projection: one large MXU GEMM over all (t, b) rows,
        # emitted in bf16 (largest streamed intermediate).
        gih = matmul_bias(x_l.reshape(T * B_pad, in_pad),
                          w_ih_t.astype(jnp.bfloat16), b_g,
                          out_dtype=jnp.bfloat16)
        gih = gih.reshape(T, B_pad, 4 * H_pad)

        hseq, h_fin, c_fin = lstm_layer(gih, lengths_pad,
                                        w_hh_t.astype(jnp.bfloat16))
        h_fins.append(h_fin)
        c_fins.append(c_fin)
        x_l = hseq                     # already bf16, no extra cast pass
        in_dim, in_pad = H, H_pad

    hidden = jnp.stack(h_fins)[:, :B, :H]                          # (L, B, H)
    cell = jnp.stack(c_fins)[:, :B, :H]                            # (L, B, H)

    # classify_fc(cat(hidden[-2], hidden[-1], dim=1))
    hiddens = jnp.concatenate([h_fins[L - 2], h_fins[L - 1]], axis=1)  # (B_pad, 2H_pad)
    w_cls_t = params['w_cls'].T                                        # (2H, 2)
    w_cls_pad = jnp.zeros((2 * H_pad, 128), jnp.float32)
    w_cls_pad = w_cls_pad.at[:H, :2].set(w_cls_t[:H])
    w_cls_pad = w_cls_pad.at[H_pad:H_pad + H, :2].set(w_cls_t[H:])
    b_cls_pad = jnp.zeros((1, 128), jnp.float32).at[0, :2].set(params['b_cls'])
    cls = matmul_bias(hiddens.astype(jnp.bfloat16),
                      w_cls_pad.astype(jnp.bfloat16), b_cls_pad)[:B, :2]

    # lm_fc over every (time, batch) position of the padded top-layer output.
    w_lm_pad = jnp.zeros((H_pad, V_pad), jnp.float32).at[:H, :V].set(params['w_lm'].T)
    b_lm_pad = jnp.zeros((1, V_pad), jnp.float32).at[0, :V].set(params['b_lm'])
    lm = matmul_bias(hseq.reshape(T * B_pad, H_pad),
                     w_lm_pad.astype(jnp.bfloat16), b_lm_pad)      # f32 logits
    lm = lm.reshape(T, B_pad, V_pad)[:, :B, :V].reshape(T * B, V)

    return cls, lm, (hidden, cell)


if __name__ == "__main__":
    vocab_size, embedding_dim, hidden_size, num_layers = 128, 32, 32, 2
    T, B = 8, 4

    key = jax.random.PRNGKey(0)
    pkey, xkey = jax.random.split(key)
    params = init_params(pkey, vocab_size, embedding_dim, hidden_size, num_layers)

    # token ids in [1, vocab), right-padded with 0 to variable lengths
    x = jax.random.randint(xkey, (T, B), 1, vocab_size, dtype=jnp.int32)
    lengths = jnp.array([8, 6, 5, 3], dtype=jnp.int32)
    pad = jnp.arange(T)[:, None] < lengths[None, :]
    x = jnp.where(pad, x, 0)

    fwd = jax.jit(functools.partial(
        rnn_forward,
        embedding_dim=embedding_dim, hidden_size=hidden_size,
        num_layers=num_layers, vocab_size=vocab_size))

    cls_out, lm_out, (hidden, cell) = fwd(params, x)
    jax.block_until_ready((cls_out, lm_out, hidden, cell))

    assert cls_out.shape == (B, 2)
    assert lm_out.shape == (T * B, vocab_size)
    assert hidden.shape == (num_layers, B, hidden_size)
    assert cell.shape == (num_layers, B, hidden_size)
    assert bool(jnp.all(jnp.isfinite(cls_out))) and bool(jnp.all(jnp.isfinite(lm_out)))
    print("KERNEL_OK")
</pallas_src>

<mosaic_0001>
module attributes {stable_mosaic.version = 11 : i64} {
  func.func @_matmul_bias_kernel(%arg0: i32, %arg1: i32, %arg2: memref<64x128xbf16, #tpu.memory_space<vmem>>, %arg3: memref<128x512xbf16, #tpu.memory_space<vmem>>, %arg4: memref<1x512xf32, #tpu.memory_space<vmem>>, %arg5: memref<64x512xbf16, #tpu.memory_space<vmem>>) attributes {dimension_semantics = [#tpu.dimension_semantics<parallel>, #tpu.dimension_semantics<parallel>], iteration_bounds = array<i64: 1, 1>, scalar_prefetch = 0 : i64, scratch_operands = 0 : i64, tpu.core_type = #tpu.core_type<tc>, window_params = [{transform_indices = @transform_0, window_bounds = array<i64: 64, 128>}, {transform_indices = @transform_1, window_bounds = array<i64: 128, 512>}, {transform_indices = @transform_2, window_bounds = array<i64: 1, 512>}, {transform_indices = @transform_3, window_bounds = array<i64: 64, 512>}]} {
    %c0 = arith.constant 0 : index
    %c0_0 = arith.constant 0 : index
    %0 = vector.load %arg2[%c0, %c0_0] : memref<64x128xbf16, #tpu.memory_space<vmem>>, vector<64x128xbf16>
    %c0_1 = arith.constant 0 : index
    %c0_2 = arith.constant 0 : index
    %1 = vector.load %arg3[%c0_1, %c0_2] : memref<128x512xbf16, #tpu.memory_space<vmem>>, vector<128x512xbf16>
    %cst = arith.constant dense<0.000000e+00> : vector<64x512xf32>
    %2 = tpu.matmul %0, %1, %cst {dimension_numbers = #tpu.dot_dimension_numbers<[1], [0], [0], [1], [0, 0, 1, 1], [], []>} : vector<64x128xbf16>, vector<128x512xbf16>, vector<64x512xf32> -> vector<64x512xf32>
    %c0_3 = arith.constant 0 : index
    %c0_4 = arith.constant 0 : index
    %3 = vector.load %arg4[%c0_3, %c0_4] : memref<1x512xf32, #tpu.memory_space<vmem>>, vector<1x512xf32>
    %4 = vector.broadcast %3 : vector<1x512xf32> to vector<64x512xf32>
    %5 = arith.addf %2, %4 : vector<64x512xf32>
    %6 = arith.truncf %5 : vector<64x512xf32> to vector<64x512xbf16>
    %c0_5 = arith.constant 0 : index
    %c0_6 = arith.constant 0 : index
    %7 = vector.load %arg5[%c0_5, %c0_6] : memref<64x512xbf16, #tpu.memory_space<vmem>>, vector<64x512xbf16>
    tpu.vector_store %arg5[%c0_5, %c0_6], %6 {strides = array<i32>} : memref<64x512xbf16, #tpu.memory_space<vmem>>, vector<64x512xbf16>,
    return
  }
  func.func @transform_0(%arg0: i32, %arg1: i32) -> (i32, i32) {
    %c0_i32 = arith.constant 0 : i32
    %c0_i32_0 = arith.constant 0 : i32
    return %arg0, %c0_i32 : i32, i32
  }
  func.func @transform_1(%arg0: i32, %arg1: i32) -> (i32, i32) {
    %c0_i32 = arith.constant 0 : i32
    %c0_i32_0 = arith.constant 0 : i32
    return %c0_i32, %arg1 : i32, i32
  }
  func.func @transform_2(%arg0: i32, %arg1: i32) -> (i32, i32) {
    %c0_i32 = arith.constant 0 : i32
    %c0_i32_0 = arith.constant 0 : i32
    return %c0_i32, %arg1 : i32, i32
  }
  func.func @transform_3(%arg0: i32, %arg1: i32) -> (i32, i32) {
    %c0_i32 = arith.constant 0 : i32
    return %arg0, %arg1 : i32, i32
  }
}

module attributes {stable_mosaic.version = 11 : i64} {
  func.func @_lstm_layer_kernel(%arg0: i32, %arg1: i32, %arg2: memref<8x8x512xbf16, #tpu.memory_space<vmem>>, %arg3: memref<8x1xi32, #tpu.memory_space<vmem>>, %arg4: memref<128x512xbf16, #tpu.memory_space<vmem>>, %arg5: memref<8x8x128xbf16, #tpu.memory_space<vmem>>, %arg6: memref<8x128xf32, #tpu.memory_space<vmem>>, %arg7: memref<8x128xf32, #tpu.memory_space<vmem>>) attributes {dimension_semantics = [#tpu.dimension_semantics<parallel>, #tpu.dimension_semantics<arbitrary>], iteration_bounds = array<i64: 1, 1>, scalar_prefetch = 0 : i64, scratch_operands = 0 : i64, tpu.core_type = #tpu.core_type<tc>, window_params = [{transform_indices = @transform_0, window_bounds = array<i64: 8, 8, 512>}, {transform_indices = @transform_1, window_bounds = array<i64: 8, 1>}, {pipeline_mode = #tpu.pipeline_mode<synchronous>, transform_indices = @transform_2, window_bounds = array<i64: 128, 512>}, {transform_indices = @transform_3, window_bounds = array<i64: 8, 8, 128>}, {transform_indices = @transform_4, window_bounds = array<i64: 8, 128>}, {transform_indices = @transform_5, window_bounds = array<i64: 8, 128>}]} {
    %c0_i32 = arith.constant 0 : i32
    %0 = arith.cmpi eq, %arg1, %c0_i32 : i32
    %1 = arith.extui %0 : i1 to i32
    %c0_i32_0 = arith.constant 0 : i32
    %2 = arith.cmpi ne, %1, %c0_i32_0 : i32
    scf.if %2 {
      %cst_99 = arith.constant 0.000000e+00 : f32
      %361 = vector.broadcast %cst_99 : f32 to vector<8x128xf32>
      %c0_100 = arith.constant 0 : index
      %c0_101 = arith.constant 0 : index
      %362 = vector.load %arg6[%c0_100, %c0_101] : memref<8x128xf32, #tpu.memory_space<vmem>>, vector<8x128xf32>
      tpu.vector_store %arg6[%c0_100, %c0_101], %361 {strides = array<i32>} : memref<8x128xf32, #tpu.memory_space<vmem>>, vector<8x128xf32>,
      %cst_102 = arith.constant 0.000000e+00 : f32
      %363 = vector.broadcast %cst_102 : f32 to vector<8x128xf32>
      %c0_103 = arith.constant 0 : index
      %c0_104 = arith.constant 0 : index
      %364 = vector.load %arg7[%c0_103, %c0_104] : memref<8x128xf32, #tpu.memory_space<vmem>>, vector<8x128xf32>
      tpu.vector_store %arg7[%c0_103, %c0_104], %363 {strides = array<i32>} : memref<8x128xf32, #tpu.memory_space<vmem>>, vector<8x128xf32>,
    } else {
    }
    %c8_i32 = arith.constant 8 : i32
    %3 = arith.muli %arg1, %c8_i32 : i32
    %c0 = arith.constant 0 : index
    %c0_1 = arith.constant 0 : index
    %4 = vector.load %arg3[%c0, %c0_1] : memref<8x1xi32, #tpu.memory_space<vmem>>, vector<8x1xi32>
    %c0_2 = arith.constant 0 : index
    %c0_3 = arith.constant 0 : index
    %5 = vector.load %arg6[%c0_2, %c0_3] : memref<8x128xf32, #tpu.memory_space<vmem>>, vector<8x128xf32>
    %c0_4 = arith.constant 0 : index
    %c0_5 = arith.constant 0 : index
    %6 = vector.load %arg7[%c0_4, %c0_5] : memref<8x128xf32, #tpu.memory_space<vmem>>, vector<8x128xf32>
    %c0_i32_6 = arith.constant 0 : i32
    %7 = arith.index_cast %c0_i32_6 : i32 to index
    %c0_7 = arith.constant 0 : index
    %c0_8 = arith.constant 0 : index
    %8 = vector.load %arg2[%7, %c0_7, %c0_8] : memref<8x8x512xbf16, #tpu.memory_space<vmem>>, vector<1x8x512xbf16>
    %9 = vector.shape_cast %8 : vector<1x8x512xbf16> to vector<8x512xbf16>
    %10 = arith.extf %9 : vector<8x512xbf16> to vector<8x512xf32>
    %11 = arith.truncf %5 : vector<8x128xf32> to vector<8x128xbf16>
    %c0_9 = arith.constant 0 : index
    %c0_10 = arith.constant 0 : index
    %12 = vector.load %arg4[%c0_9, %c0_10] : memref<128x512xbf16, #tpu.memory_space<vmem>>, vector<128x512xbf16>
    %cst = arith.constant dense<0.000000e+00> : vector<8x512xf32>
    %13 = tpu.matmul %11, %12, %cst {dimension_numbers = #tpu.dot_dimension_numbers<[1], [0], [0], [1], [0, 0, 1, 1], [], []>} : vector<8x128xbf16>, vector<128x512xbf16>, vector<8x512xf32> -> vector<8x512xf32>
    %14 = arith.addf %10, %13 : vector<8x512xf32>
    %15 = vector.extract_strided_slice %14 {offsets = [0, 0], sizes = [8, 384], strides = [1, 1]} : vector<8x512xf32> to vector<8x384xf32>
    %cst_11 = arith.constant 5.000000e-01 : f32
    %16 = vector.broadcast %cst_11 : f32 to vector<8x384xf32>
    %17 = arith.mulf %16, %15 : vector<8x384xf32>
    %18 = math.tanh %17 : vector<8x384xf32>
    %cst_12 = arith.constant 5.000000e-01 : f32
    %19 = vector.broadcast %cst_12 : f32 to vector<8x384xf32>
    %20 = arith.mulf %19, %18 : vector<8x384xf32>
    %cst_13 = arith.constant 5.000000e-01 : f32
    %21 = vector.broadcast %cst_13 : f32 to vector<8x384xf32>
    %22 = arith.addf %20, %21 : vector<8x384xf32>
    %23 = vector.extract_strided_slice %22 {offsets = [0, 0], sizes = [8, 128], strides = [1, 1]} : vector<8x384xf32> to vector<8x128xf32>
    %24 = vector.extract_strided_slice %22 {offsets = [0, 128], sizes = [8, 128], strides = [1, 1]} : vector<8x384xf32> to vector<8x128xf32>
    %25 = vector.extract_strided_slice %22 {offsets = [0, 256], sizes = [8, 128], strides = [1, 1]} : vector<8x384xf32> to vector<8x128xf32>
    %26 = vector.extract_strided_slice %14 {offsets = [0, 384], sizes = [8, 128], strides = [1, 1]} : vector<8x512xf32> to vector<8x128xf32>
    %27 = math.tanh %26 : vector<8x128xf32>
    %28 = arith.mulf %24, %6 : vector<8x128xf32>
    %29 = arith.mulf %23, %27 : vector<8x128xf32>
    %30 = arith.addf %28, %29 : vector<8x128xf32>
    %31 = math.tanh %30 : vector<8x128xf32>
    %32 = arith.mulf %25, %31 : vector<8x128xf32>
    %33 = arith.addi %3, %c0_i32_6 : i32
    %34 = vector.broadcast %33 : i32 to vector<8x1xi32>
    %35 = arith.cmpi slt, %34, %4 : vector<8x1xi32>
    %cst_14 = arith.constant 0.000000e+00 : f32
    %36 = vector.shape_cast %35 : vector<8x1xi1> to vector<8x1xi1>
    %37 = vector.broadcast %36 : vector<8x1xi1> to vector<8x128xi1>
    %38 = vector.broadcast %cst_14 : f32 to vector<8x128xf32>
    %39 = arith.select %37, %32, %38 : vector<8x128xi1>, vector<8x128xf32>
    %40 = arith.truncf %39 : vector<8x128xf32> to vector<8x128xbf16>
    %41 = arith.index_cast %c0_i32_6 : i32 to index
    %c0_15 = arith.constant 0 : index
    %c0_16 = arith.constant 0 : index
    %42 = vector.load %arg5[%41, %c0_15, %c0_16] : memref<8x8x128xbf16, #tpu.memory_space<vmem>>, vector<1x8x128xbf16>
    %43 = vector.shape_cast %42 : vector<1x8x128xbf16> to vector<8x128xbf16>
    %44 = vector.shape_cast %40 : vector<8x128xbf16> to vector<1x8x128xbf16>
    tpu.vector_store %arg5[%41, %c0_15, %c0_16], %44 {strides = array<i32>} : memref<8x8x128xbf16, #tpu.memory_space<vmem>>, vector<1x8x128xbf16>,
    %45 = vector.shape_cast %35 : vector<8x1xi1> to vector<8x1xi1>
    %46 = vector.broadcast %45 : vector<8x1xi1> to vector<8x128xi1>
    %47 = arith.select %46, %32, %5 : vector<8x128xi1>, vector<8x128xf32>
    %48 = vector.shape_cast %35 : vector<8x1xi1> to vector<8x1xi1>
    %49 = vector.broadcast %48 : vector<8x1xi1> to vector<8x128xi1>
    %50 = arith.select %49, %30, %6 : vector<8x128xi1>, vector<8x128xf32>
    %c1_i32 = arith.constant 1 : i32
    %51 = arith.index_cast %c1_i32 : i32 to index
    %c0_17 = arith.constant 0 : index
    %c0_18 = arith.constant 0 : index
    %52 = vector.load %arg2[%51, %c0_17, %c0_18] : memref<8x8x512xbf16, #tpu.memory_space<vmem>>, vector<1x8x512xbf16>
    %53 = vector.shape_cast %52 : vector<1x8x512xbf16> to vector<8x512xbf16>
    %54 = arith.extf %53 : vector<8x512xbf16> to vector<8x512xf32>
    %55 = arith.truncf %47 : vector<8x128xf32> to vector<8x128xbf16>
    %c0_19 = arith.constant 0 : index
    %c0_20 = arith.constant 0 : index
    %56 = vector.load %arg4[%c0_19, %c0_20] : memref<128x512xbf16, #tpu.memory_space<vmem>>, vector<128x512xbf16>
    %cst_21 = arith.constant dense<0.000000e+00> : vector<8x512xf32>
    %57 = tpu.matmul %55, %56, %cst_21 {dimension_numbers = #tpu.dot_dimension_numbers<[1], [0], [0], [1], [0, 0, 1, 1], [], []>} : vector<8x128xbf16>, vector<128x512xbf16>, vector<8x512xf32> -> vector<8x512xf32>
    %58 = arith.addf %54, %57 : vector<8x512xf32>
    %59 = vector.extract_strided_slice %58 {offsets = [0, 0], sizes = [8, 384], strides = [1, 1]} : vector<8x512xf32> to vector<8x384xf32>
    %cst_22 = arith.constant 5.000000e-01 : f32
    %60 = vector.broadcast %cst_22 : f32 to vector<8x384xf32>
    %61 = arith.mulf %60, %59 : vector<8x384xf32>
    %62 = math.tanh %61 : vector<8x384xf32>
    %cst_23 = arith.constant 5.000000e-01 : f32
    %63 = vector.broadcast %cst_23 : f32 to vector<8x384xf32>
    %64 = arith.mulf %63, %62 : vector<8x384xf32>
    %cst_24 = arith.constant 5.000000e-01 : f32
    %65 = vector.broadcast %cst_24 : f32 to vector<8x384xf32>
    %66 = arith.addf %64, %65 : vector<8x384xf32>
    %67 = vector.extract_strided_slice %66 {offsets = [0, 0], sizes = [8, 128], strides = [1, 1]} : vector<8x384xf32> to vector<8x128xf32>
    %68 = vector.extract_strided_slice %66 {offsets = [0, 128], sizes = [8, 128], strides = [1, 1]} : vector<8x384xf32> to vector<8x128xf32>
    %69 = vector.extract_strided_slice %66 {offsets = [0, 256], sizes = [8, 128], strides = [1, 1]} : vector<8x384xf32> to vector<8x128xf32>
    %70 = vector.extract_strided_slice %58 {offsets = [0, 384], sizes = [8, 128], strides = [1, 1]} : vector<8x512xf32> to vector<8x128xf32>
    %71 = math.tanh %70 : vector<8x128xf32>
    %72 = arith.mulf %68, %50 : vector<8x128xf32>
    %73 = arith.mulf %67, %71 : vector<8x128xf32>
    %74 = arith.addf %72, %73 : vector<8x128xf32>
    %75 = math.tanh %74 : vector<8x128xf32>
    %76 = arith.mulf %69, %75 : vector<8x128xf32>
    %77 = arith.addi %3, %c1_i32 : i32
    %78 = vector.broadcast %77 : i32 to vector<8x1xi32>
    %79 = arith.cmpi slt, %78, %4 : vector<8x1xi32>
    %cst_25 = arith.constant 0.000000e+00 : f32
    %80 = vector.shape_cast %79 : vector<8x1xi1> to vector<8x1xi1>
    %81 = vector.broadcast %80 : vector<8x1xi1> to vector<8x128xi1>
    %82 = vector.broadcast %cst_25 : f32 to vector<8x128xf32>
    %83 = arith.select %81, %76, %82 : vector<8x128xi1>, vector<8x128xf32>
    %84 = arith.truncf %83 : vector<8x128xf32> to vector<8x128xbf16>
    %85 = arith.index_cast %c1_i32 : i32 to index
    %c0_26 = arith.constant 0 : index
    %c0_27 = arith.constant 0 : index
    %86 = vector.load %arg5[%85, %c0_26, %c0_27] : memref<8x8x128xbf16, #tpu.memory_space<vmem>>, vector<1x8x128xbf16>
    %87 = vector.shape_cast %86 : vector<1x8x128xbf16> to vector<8x128xbf16>
    %88 = vector.shape_cast %84 : vector<8x128xbf16> to vector<1x8x128xbf16>
    tpu.vector_store %arg5[%85, %c0_26, %c0_27], %88 {strides = array<i32>} : memref<8x8x128xbf16, #tpu.memory_space<vmem>>, vector<1x8x128xbf16>,
    %89 = vector.shape_cast %79 : vector<8x1xi1> to vector<8x1xi1>
    %90 = vector.broadcast %89 : vector<8x1xi1> to vector<8x128xi1>
    %91 = arith.select %90, %76, %47 : vector<8x128xi1>, vector<8x128xf32>
    %92 = vector.shape_cast %79 : vector<8x1xi1> to vector<8x1xi1>
    %93 = vector.broadcast %92 : vector<8x1xi1> to vector<8x128xi1>
    %94 = arith.select %93, %74, %50 : vector<8x128xi1>, vector<8x128xf32>
    %c2_i32 = arith.constant 2 : i32
    %95 = arith.index_cast %c2_i32 : i32 to index
    %c0_28 = arith.constant 0 : index
    %c0_29 = arith.constant 0 : index
    %96 = vector.load %arg2[%95, %c0_28, %c0_29] : memref<8x8x512xbf16, #tpu.memory_space<vmem>>, vector<1x8x512xbf16>
    %97 = vector.shape_cast %96 : vector<1x8x512xbf16> to vector<8x512xbf16>
    %98 = arith.extf %97 : vector<8x512xbf16> to vector<8x512xf32>
    %99 = arith.truncf %91 : vector<8x128xf32> to vector<8x128xbf16>
    %c0_30 = arith.constant 0 : index
    %c0_31 = arith.constant 0 : index
    %100 = vector.load %arg4[%c0_30, %c0_31] : memref<128x512xbf16, #tpu.memory_space<vmem>>, vector<128x512xbf16>
    %cst_32 = arith.constant dense<0.000000e+00> : vector<8x512xf32>
    %101 = tpu.matmul %99, %100, %cst_32 {dimension_numbers = #tpu.dot_dimension_numbers<[1], [0], [0], [1], [0, 0, 1, 1], [], []>} : vector<8x128xbf16>, vector<128x512xbf16>, vector<8x512xf32> -> vector<8x512xf32>
    %102 = arith.addf %98, %101 : vector<8x512xf32>
    %103 = vector.extract_strided_slice %102 {offsets = [0, 0], sizes = [8, 384], strides = [1, 1]} : vector<8x512xf32> to vector<8x384xf32>
    %cst_33 = arith.constant 5.000000e-01 : f32
    %104 = vector.broadcast %cst_33 : f32 to vector<8x384xf32>
    %105 = arith.mulf %104, %103 : vector<8x384xf32>
    %106 = math.tanh %105 : vector<8x384xf32>
    %cst_34 = arith.constant 5.000000e-01 : f32
    %107 = vector.broadcast %cst_34 : f32 to vector<8x384xf32>
    %108 = arith.mulf %107, %106 : vector<8x384xf32>
    %cst_35 = arith.constant 5.000000e-01 : f32
    %109 = vector.broadcast %cst_35 : f32 to vector<8x384xf32>
    %110 = arith.addf %108, %109 : vector<8x384xf32>
    %111 = vector.extract_strided_slice %110 {offsets = [0, 0], sizes = [8, 128], strides = [1, 1]} : vector<8x384xf32> to vector<8x128xf32>
    %112 = vector.extract_strided_slice %110 {offsets = [0, 128], sizes = [8, 128], strides = [1, 1]} : vector<8x384xf32> to vector<8x128xf32>
    %113 = vector.extract_strided_slice %110 {offsets = [0, 256], sizes = [8, 128], strides = [1, 1]} : vector<8x384xf32> to vector<8x128xf32>
    %114 = vector.extract_strided_slice %102 {offsets = [0, 384], sizes = [8, 128], strides = [1, 1]} : vector<8x512xf32> to vector<8x128xf32>
    %115 = math.tanh %114 : vector<8x128xf32>
    %116 = arith.mulf %112, %94 : vector<8x128xf32>
    %117 = arith.mulf %111, %115 : vector<8x128xf32>
    %118 = arith.addf %116, %117 : vector<8x128xf32>
    %119 = math.tanh %118 : vector<8x128xf32>
    %120 = arith.mulf %113, %119 : vector<8x128xf32>
    %121 = arith.addi %3, %c2_i32 : i32
    %122 = vector.broadcast %121 : i32 to vector<8x1xi32>
    %123 = arith.cmpi slt, %122, %4 : vector<8x1xi32>
    %cst_36 = arith.constant 0.000000e+00 : f32
    %124 = vector.shape_cast %123 : vector<8x1xi1> to vector<8x1xi1>
    %125 = vector.broadcast %124 : vector<8x1xi1> to vector<8x128xi1>
    %126 = vector.broadcast %cst_36 : f32 to vector<8x128xf32>
    %127 = arith.select %125, %120, %126 : vector<8x128xi1>, vector<8x128xf32>
    %128 = arith.truncf %127 : vector<8x128xf32> to vector<8x128xbf16>
    %129 = arith.index_cast %c2_i32 : i32 to index
    %c0_37 = arith.constant 0 : index
    %c0_38 = arith.constant 0 : index
    %130 = vector.load %arg5[%129, %c0_37, %c0_38] : memref<8x8x128xbf16, #tpu.memory_space<vmem>>, vector<1x8x128xbf16>
    %131 = vector.shape_cast %130 : vector<1x8x128xbf16> to vector<8x128xbf16>
    %132 = vector.shape_cast %128 : vector<8x128xbf16> to vector<1x8x128xbf16>
    tpu.vector_store %arg5[%129, %c0_37, %c0_38], %132 {strides = array<i32>} : memref<8x8x128xbf16, #tpu.memory_space<vmem>>, vector<1x8x128xbf16>,
    %133 = vector.shape_cast %123 : vector<8x1xi1> to vector<8x1xi1>
    %134 = vector.broadcast %133 : vector<8x1xi1> to vector<8x128xi1>
    %135 = arith.select %134, %120, %91 : vector<8x128xi1>, vector<8x128xf32>
    %136 = vector.shape_cast %123 : vector<8x1xi1> to vector<8x1xi1>
    %137 = vector.broadcast %136 : vector<8x1xi1> to vector<8x128xi1>
    %138 = arith.select %137, %118, %94 : vector<8x128xi1>, vector<8x128xf32>
    %c3_i32 = arith.constant 3 : i32
    %139 = arith.index_cast %c3_i32 : i32 to index
    %c0_39 = arith.constant 0 : index
    %c0_40 = arith.constant 0 : index
    %140 = vector.load %arg2[%139, %c0_39, %c0_40] : memref<8x8x512xbf16, #tpu.memory_space<vmem>>, vector<1x8x512xbf16>
    %141 = vector.shape_cast %140 : vector<1x8x512xbf16> to vector<8x512xbf16>
    %142 = arith.extf %141 : vector<8x512xbf16> to vector<8x512xf32>
    %143 = arith.truncf %135 : vector<8x128xf32> to vector<8x128xbf16>
    %c0_41 = arith.constant 0 : index
    %c0_42 = arith.constant 0 : index
    %144 = vector.load %arg4[%c0_41, %c0_42] : memref<128x512xbf16, #tpu.memory_space<vmem>>, vector<128x512xbf16>
    %cst_43 = arith.constant dense<0.000000e+00> : vector<8x512xf32>
    %145 = tpu.matmul %143, %144, %cst_43 {dimension_numbers = #tpu.dot_dimension_numbers<[1], [0], [0], [1], [0, 0, 1, 1], [], []>} : vector<8x128xbf16>, vector<128x512xbf16>, vector<8x512xf32> -> vector<8x512xf32>
    %146 = arith.addf %142, %145 : vector<8x512xf32>
    %147 = vector.extract_strided_slice %146 {offsets = [0, 0], sizes = [8, 384], strides = [1, 1]} : vector<8x512xf32> to vector<8x384xf32>
    %cst_44 = arith.constant 5.000000e-01 : f32
    %148 = vector.broadcast %cst_44 : f32 to vector<8x384xf32>
    %149 = arith.mulf %148, %147 : vector<8x384xf32>
    %150 = math.tanh %149 : vector<8x384xf32>
    %cst_45 = arith.constant 5.000000e-01 : f32
    %151 = vector.broadcast %cst_45 : f32 to vector<8x384xf32>
    %152 = arith.mulf %151, %150 : vector<8x384xf32>
    %cst_46 = arith.constant 5.000000e-01 : f32
    %153 = vector.broadcast %cst_46 : f32 to vector<8x384xf32>
    %154 = arith.addf %152, %153 : vector<8x384xf32>
    %155 = vector.extract_strided_slice %154 {offsets = [0, 0], sizes = [8, 128], strides = [1, 1]} : vector<8x384xf32> to vector<8x128xf32>
    %156 = vector.extract_strided_slice %154 {offsets = [0, 128], sizes = [8, 128], strides = [1, 1]} : vector<8x384xf32> to vector<8x128xf32>
    %157 = vector.extract_strided_slice %154 {offsets = [0, 256], sizes = [8, 128], strides = [1, 1]} : vector<8x384xf32> to vector<8x128xf32>
    %158 = vector.extract_strided_slice %146 {offsets = [0, 384], sizes = [8, 128], strides = [1, 1]} : vector<8x512xf32> to vector<8x128xf32>
    %159 = math.tanh %158 : vector<8x128xf32>
    %160 = arith.mulf %156, %138 : vector<8x128xf32>
    %161 = arith.mulf %155, %159 : vector<8x128xf32>
    %162 = arith.addf %160, %161 : vector<8x128xf32>
    %163 = math.tanh %162 : vector<8x128xf32>
    %164 = arith.mulf %157, %163 : vector<8x128xf32>
    %165 = arith.addi %3, %c3_i32 : i32
    %166 = vector.broadcast %165 : i32 to vector<8x1xi32>
    %167 = arith.cmpi slt, %166, %4 : vector<8x1xi32>
    %cst_47 = arith.constant 0.000000e+00 : f32
    %168 = vector.shape_cast %167 : vector<8x1xi1> to vector<8x1xi1>
    %169 = vector.broadcast %168 : vector<8x1xi1> to vector<8x128xi1>
    %170 = vector.broadcast %cst_47 : f32 to vector<8x128xf32>
    %171 = arith.select %169, %164, %170 : vector<8x128xi1>, vector<8x128xf32>
    %172 = arith.truncf %171 : vector<8x128xf32> to vector<8x128xbf16>
    %173 = arith.index_cast %c3_i32 : i32 to index
    %c0_48 = arith.constant 0 : index
    %c0_49 = arith.constant 0 : index
    %174 = vector.load %arg5[%173, %c0_48, %c0_49] : memref<8x8x128xbf16, #tpu.memory_space<vmem>>, vector<1x8x128xbf16>
    %175 = vector.shape_cast %174 : vector<1x8x128xbf16> to vector<8x128xbf16>
    %176 = vector.shape_cast %172 : vector<8x128xbf16> to vector<1x8x128xbf16>
    tpu.vector_store %arg5[%173, %c0_48, %c0_49], %176 {strides = array<i32>} : memref<8x8x128xbf16, #tpu.memory_space<vmem>>, vector<1x8x128xbf16>,
    %177 = vector.shape_cast %167 : vector<8x1xi1> to vector<8x1xi1>
    %178 = vector.broadcast %177 : vector<8x1xi1> to vector<8x128xi1>
    %179 = arith.select %178, %164, %135 : vector<8x128xi1>, vector<8x128xf32>
    %180 = vector.shape_cast %167 : vector<8x1xi1> to vector<8x1xi1>
    %181 = vector.broadcast %180 : vector<8x1xi1> to vector<8x128xi1>
    %182 = arith.select %181, %162, %138 : vector<8x128xi1>, vector<8x128xf32>
    %c4_i32 = arith.constant 4 : i32
    %183 = arith.index_cast %c4_i32 : i32 to index
    %c0_50 = arith.constant 0 : index
    %c0_51 = arith.constant 0 : index
    %184 = vector.load %arg2[%183, %c0_50, %c0_51] : memref<8x8x512xbf16, #tpu.memory_space<vmem>>, vector<1x8x512xbf16>
    %185 = vector.shape_cast %184 : vector<1x8x512xbf16> to vector<8x512xbf16>
    %186 = arith.extf %185 : vector<8x512xbf16> to vector<8x512xf32>
    %187 = arith.truncf %179 : vector<8x128xf32> to vector<8x128xbf16>
    %c0_52 = arith.constant 0 : index
    %c0_53 = arith.constant 0 : index
    %188 = vector.load %arg4[%c0_52, %c0_53] : memref<128x512xbf16, #tpu.memory_space<vmem>>, vector<128x512xbf16>
    %cst_54 = arith.constant dense<0.000000e+00> : vector<8x512xf32>
    %189 = tpu.matmul %187, %188, %cst_54 {dimension_numbers = #tpu.dot_dimension_numbers<[1], [0], [0], [1], [0, 0, 1, 1], [], []>} : vector<8x128xbf16>, vector<128x512xbf16>, vector<8x512xf32> -> vector<8x512xf32>
    %190 = arith.addf %186, %189 : vector<8x512xf32>
    %191 = vector.extract_strided_slice %190 {offsets = [0, 0], sizes = [8, 384], strides = [1, 1]} : vector<8x512xf32> to vector<8x384xf32>
    %cst_55 = arith.constant 5.000000e-01 : f32
    %192 = vector.broadcast %cst_55 : f32 to vector<8x384xf32>
    %193 = arith.mulf %192, %191 : vector<8x384xf32>
    %194 = math.tanh %193 : vector<8x384xf32>
    %cst_56 = arith.constant 5.000000e-01 : f32
    %195 = vector.broadcast %cst_56 : f32 to vector<8x384xf32>
    %196 = arith.mulf %195, %194 : vector<8x384xf32>
    %cst_57 = arith.constant 5.000000e-01 : f32
    %197 = vector.broadcast %cst_57 : f32 to vector<8x384xf32>
    %198 = arith.addf %196, %197 : vector<8x384xf32>
    %199 = vector.extract_strided_slice %198 {offsets = [0, 0], sizes = [8, 128], strides = [1, 1]} : vector<8x384xf32> to vector<8x128xf32>
    %200 = vector.extract_strided_slice %198 {offsets = [0, 128], sizes = [8, 128], strides = [1, 1]} : vector<8x384xf32> to vector<8x128xf32>
    %201 = vector.extract_strided_slice %198 {offsets = [0, 256], sizes = [8, 128], strides = [1, 1]} : vector<8x384xf32> to vector<8x128xf32>
    %202 = vector.extract_strided_slice %190 {offsets = [0, 384], sizes = [8, 128], strides = [1, 1]} : vector<8x512xf32> to vector<8x128xf32>
    %203 = math.tanh %202 : vector<8x128xf32>
    %204 = arith.mulf %200, %182 : vector<8x128xf32>
    %205 = arith.mulf %199, %203 : vector<8x128xf32>
    %206 = arith.addf %204, %205 : vector<8x128xf32>
    %207 = math.tanh %206 : vector<8x128xf32>
    %208 = arith.mulf %201, %207 : vector<8x128xf32>
    %209 = arith.addi %3, %c4_i32 : i32
    %210 = vector.broadcast %209 : i32 to vector<8x1xi32>
    %211 = arith.cmpi slt, %210, %4 : vector<8x1xi32>
    %cst_58 = arith.constant 0.000000e+00 : f32
    %212 = vector.shape_cast %211 : vector<8x1xi1> to vector<8x1xi1>
    %213 = vector.broadcast %212 : vector<8x1xi1> to vector<8x128xi1>
    %214 = vector.broadcast %cst_58 : f32 to vector<8x128xf32>
    %215 = arith.select %213, %208, %214 : vector<8x128xi1>, vector<8x128xf32>
    %216 = arith.truncf %215 : vector<8x128xf32> to vector<8x128xbf16>
    %217 = arith.index_cast %c4_i32 : i32 to index
    %c0_59 = arith.constant 0 : index
    %c0_60 = arith.constant 0 : index
    %218 = vector.load %arg5[%217, %c0_59, %c0_60] : memref<8x8x128xbf16, #tpu.memory_space<vmem>>, vector<1x8x128xbf16>
    %219 = vector.shape_cast %218 : vector<1x8x128xbf16> to vector<8x128xbf16>
    %220 = vector.shape_cast %216 : vector<8x128xbf16> to vector<1x8x128xbf16>
    tpu.vector_store %arg5[%217, %c0_59, %c0_60], %220 {strides = array<i32>} : memref<8x8x128xbf16, #tpu.memory_space<vmem>>, vector<1x8x128xbf16>,
    %221 = vector.shape_cast %211 : vector<8x1xi1> to vector<8x1xi1>
    %222 = vector.broadcast %221 : vector<8x1xi1> to vector<8x128xi1>
    %223 = arith.select %222, %208, %179 : vector<8x128xi1>, vector<8x128xf32>
    %224 = vector.shape_cast %211 : vector<8x1xi1> to vector<8x1xi1>
    %225 = vector.broadcast %224 : vector<8x1xi1> to vector<8x128xi1>
    %226 = arith.select %225, %206, %182 : vector<8x128xi1>, vector<8x128xf32>
    %c5_i32 = arith.constant 5 : i32
    %227 = arith.index_cast %c5_i32 : i32 to index
    %c0_61 = arith.constant 0 : index
    %c0_62 = arith.constant 0 : index
    %228 = vector.load %arg2[%227, %c0_61, %c0_62] : memref<8x8x512xbf16, #tpu.memory_space<vmem>>, vector<1x8x512xbf16>
    %229 = vector.shape_cast %228 : vector<1x8x512xbf16> to vector<8x512xbf16>
    %230 = arith.extf %229 : vector<8x512xbf16> to vector<8x512xf32>
    %231 = arith.truncf %223 : vector<8x128xf32> to vector<8x128xbf16>
    %c0_63 = arith.constant 0 : index
    %c0_64 = arith.constant 0 : index
    %232 = vector.load %arg4[%c0_63, %c0_64] : memref<128x512xbf16, #tpu.memory_space<vmem>>, vector<128x512xbf16>
    %cst_65 = arith.constant dense<0.000000e+00> : vector<8x512xf32>
    %233 = tpu.matmul %231, %232, %cst_65 {dimension_numbers = #tpu.dot_dimension_numbers<[1], [0], [0], [1], [0, 0, 1, 1], [], []>} : vector<8x128xbf16>, vector<128x512xbf16>, vector<8x512xf32> -> vector<8x512xf32>
    %234 = arith.addf %230, %233 : vector<8x512xf32>
    %235 = vector.extract_strided_slice %234 {offsets = [0, 0], sizes = [8, 384], strides = [1, 1]} : vector<8x512xf32> to vector<8x384xf32>
    %cst_66 = arith.constant 5.000000e-01 : f32
    %236 = vector.broadcast %cst_66 : f32 to vector<8x384xf32>
    %237 = arith.mulf %236, %235 : vector<8x384xf32>
    %238 = math.tanh %237 : vector<8x384xf32>
    %cst_67 = arith.constant 5.000000e-01 : f32
    %239 = vector.broadcast %cst_67 : f32 to vector<8x384xf32>
    %240 = arith.mulf %239, %238 : vector<8x384xf32>
    %cst_68 = arith.constant 5.000000e-01 : f32
    %241 = vector.broadcast %cst_68 : f32 to vector<8x384xf32>
    %242 = arith.addf %240, %241 : vector<8x384xf32>
    %243 = vector.extract_strided_slice %242 {offsets = [0, 0], sizes = [8, 128], strides = [1, 1]} : vector<8x384xf32> to vector<8x128xf32>
    %244 = vector.extract_strided_slice %242 {offsets = [0, 128], sizes = [8, 128], strides = [1, 1]} : vector<8x384xf32> to vector<8x128xf32>
    %245 = vector.extract_strided_slice %242 {offsets = [0, 256], sizes = [8, 128], strides = [1, 1]} : vector<8x384xf32> to vector<8x128xf32>
    %246 = vector.extract_strided_slice %234 {offsets = [0, 384], sizes = [8, 128], strides = [1, 1]} : vector<8x512xf32> to vector<8x128xf32>
    %247 = math.tanh %246 : vector<8x128xf32>
    %248 = arith.mulf %244, %226 : vector<8x128xf32>
    %249 = arith.mulf %243, %247 : vector<8x128xf32>
    %250 = arith.addf %248, %249 : vector<8x128xf32>
    %251 = math.tanh %250 : vector<8x128xf32>
    %252 = arith.mulf %245, %251 : vector<8x128xf32>
    %253 = arith.addi %3, %c5_i32 : i32
    %254 = vector.broadcast %253 : i32 to vector<8x1xi32>
    %255 = arith.cmpi slt, %254, %4 : vector<8x1xi32>
    %cst_69 = arith.constant 0.000000e+00 : f32
    %256 = vector.shape_cast %255 : vector<8x1xi1> to vector<8x1xi1>
    %257 = vector.broadcast %256 : vector<8x1xi1> to vector<8x128xi1>
    %258 = vector.broadcast %cst_69 : f32 to vector<8x128xf32>
    %259 = arith.select %257, %252, %258 : vector<8x128xi1>, vector<8x128xf32>
    %260 = arith.truncf %259 : vector<8x128xf32> to vector<8x128xbf16>
    %261 = arith.index_cast %c5_i32 : i32 to index
    %c0_70 = arith.constant 0 : index
    %c0_71 = arith.constant 0 : index
    %262 = vector.load %arg5[%261, %c0_70, %c0_71] : memref<8x8x128xbf16, #tpu.memory_space<vmem>>, vector<1x8x128xbf16>
    %263 = vector.shape_cast %262 : vector<1x8x128xbf16> to vector<8x128xbf16>
    %264 = vector.shape_cast %260 : vector<8x128xbf16> to vector<1x8x128xbf16>
    tpu.vector_store %arg5[%261, %c0_70, %c0_71], %264 {strides = array<i32>} : memref<8x8x128xbf16, #tpu.memory_space<vmem>>, vector<1x8x128xbf16>,
    %265 = vector.shape_cast %255 : vector<8x1xi1> to vector<8x1xi1>
    %266 = vector.broadcast %265 : vector<8x1xi1> to vector<8x128xi1>
    %267 = arith.select %266, %252, %223 : vector<8x128xi1>, vector<8x128xf32>
    %268 = vector.shape_cast %255 : vector<8x1xi1> to vector<8x1xi1>
    %269 = vector.broadcast %268 : vector<8x1xi1> to vector<8x128xi1>
    %270 = arith.select %269, %250, %226 : vector<8x128xi1>, vector<8x128xf32>
    %c6_i32 = arith.constant 6 : i32
    %271 = arith.index_cast %c6_i32 : i32 to index
    %c0_72 = arith.constant 0 : index
    %c0_73 = arith.constant 0 : index
    %272 = vector.load %arg2[%271, %c0_72, %c0_73] : memref<8x8x512xbf16, #tpu.memory_space<vmem>>, vector<1x8x512xbf16>
    %273 = vector.shape_cast %272 : vector<1x8x512xbf16> to vector<8x512xbf16>
    %274 = arith.extf %273 : vector<8x512xbf16> to vector<8x512xf32>
    %275 = arith.truncf %267 : vector<8x128xf32> to vector<8x128xbf16>
    %c0_74 = arith.constant 0 : index
    %c0_75 = arith.constant 0 : index
    %276 = vector.load %arg4[%c0_74, %c0_75] : memref<128x512xbf16, #tpu.memory_space<vmem>>, vector<128x512xbf16>
    %cst_76 = arith.constant dense<0.000000e+00> : vector<8x512xf32>
    %277 = tpu.matmul %275, %276, %cst_76 {dimension_numbers = #tpu.dot_dimension_numbers<[1], [0], [0], [1], [0, 0, 1, 1], [], []>} : vector<8x128xbf16>, vector<128x512xbf16>, vector<8x512xf32> -> vector<8x512xf32>
    %278 = arith.addf %274, %277 : vector<8x512xf32>
    %279 = vector.extract_strided_slice %278 {offsets = [0, 0], sizes = [8, 384], strides = [1, 1]} : vector<8x512xf32> to vector<8x384xf32>
    %cst_77 = arith.constant 5.000000e-01 : f32
    %280 = vector.broadcast %cst_77 : f32 to vector<8x384xf32>
    %281 = arith.mulf %280, %279 : vector<8x384xf32>
    %282 = math.tanh %281 : vector<8x384xf32>
    %cst_78 = arith.constant 5.000000e-01 : f32
    %283 = vector.broadcast %cst_78 : f32 to vector<8x384xf32>
    %284 = arith.mulf %283, %282 : vector<8x384xf32>
    %cst_79 = arith.constant 5.000000e-01 : f32
    %285 = vector.broadcast %cst_79 : f32 to vector<8x384xf32>
    %286 = arith.addf %284, %285 : vector<8x384xf32>
    %287 = vector.extract_strided_slice %286 {offsets = [0, 0], sizes = [8, 128], strides = [1, 1]} : vector<8x384xf32> to vector<8x128xf32>
    %288 = vector.extract_strided_slice %286 {offsets = [0, 128], sizes = [8, 128], strides = [1, 1]} : vector<8x384xf32> to vector<8x128xf32>
    %289 = vector.extract_strided_slice %286 {offsets = [0, 256], sizes = [8, 128], strides = [1, 1]} : vector<8x384xf32> to vector<8x128xf32>
    %290 = vector.extract_strided_slice %278 {offsets = [0, 384], sizes = [8, 128], strides = [1, 1]} : vector<8x512xf32> to vector<8x128xf32>
    %291 = math.tanh %290 : vector<8x128xf32>
    %292 = arith.mulf %288, %270 : vector<8x128xf32>
    %293 = arith.mulf %287, %291 : vector<8x128xf32>
    %294 = arith.addf %292, %293 : vector<8x128xf32>
    %295 = math.tanh %294 : vector<8x128xf32>
    %296 = arith.mulf %289, %295 : vector<8x128xf32>
    %297 = arith.addi %3, %c6_i32 : i32
    %298 = vector.broadcast %297 : i32 to vector<8x1xi32>
    %299 = arith.cmpi slt, %298, %4 : vector<8x1xi32>
    %cst_80 = arith.constant 0.000000e+00 : f32
    %300 = vector.shape_cast %299 : vector<8x1xi1> to vector<8x1xi1>
    %301 = vector.broadcast %300 : vector<8x1xi1> to vector<8x128xi1>
    %302 = vector.broadcast %cst_80 : f32 to vector<8x128xf32>
    %303 = arith.select %301, %296, %302 : vector<8x128xi1>, vector<8x128xf32>
    %304 = arith.truncf %303 : vector<8x128xf32> to vector<8x128xbf16>
    %305 = arith.index_cast %c6_i32 : i32 to index
    %c0_81 = arith.constant 0 : index
    %c0_82 = arith.constant 0 : index
    %306 = vector.load %arg5[%305, %c0_81, %c0_82] : memref<8x8x128xbf16, #tpu.memory_space<vmem>>, vector<1x8x128xbf16>
    %307 = vector.shape_cast %306 : vector<1x8x128xbf16> to vector<8x128xbf16>
    %308 = vector.shape_cast %304 : vector<8x128xbf16> to vector<1x8x128xbf16>
    tpu.vector_store %arg5[%305, %c0_81, %c0_82], %308 {strides = array<i32>} : memref<8x8x128xbf16, #tpu.memory_space<vmem>>, vector<1x8x128xbf16>,
    %309 = vector.shape_cast %299 : vector<8x1xi1> to vector<8x1xi1>
    %310 = vector.broadcast %309 : vector<8x1xi1> to vector<8x128xi1>
    %311 = arith.select %310, %296, %267 : vector<8x128xi1>, vector<8x128xf32>
    %312 = vector.shape_cast %299 : vector<8x1xi1> to vector<8x1xi1>
    %313 = vector.broadcast %312 : vector<8x1xi1> to vector<8x128xi1>
    %314 = arith.select %313, %294, %270 : vector<8x128xi1>, vector<8x128xf32>
    %c7_i32 = arith.constant 7 : i32
    %315 = arith.index_cast %c7_i32 : i32 to index
    %c0_83 = arith.constant 0 : index
    %c0_84 = arith.constant 0 : index
    %316 = vector.load %arg2[%315, %c0_83, %c0_84] : memref<8x8x512xbf16, #tpu.memory_space<vmem>>, vector<1x8x512xbf16>
    %317 = vector.shape_cast %316 : vector<1x8x512xbf16> to vector<8x512xbf16>
    %318 = arith.extf %317 : vector<8x512xbf16> to vector<8x512xf32>
    %319 = arith.truncf %311 : vector<8x128xf32> to vector<8x128xbf16>
    %c0_85 = arith.constant 0 : index
    %c0_86 = arith.constant 0 : index
    %320 = vector.load %arg4[%c0_85, %c0_86] : memref<128x512xbf16, #tpu.memory_space<vmem>>, vector<128x512xbf16>
    %cst_87 = arith.constant dense<0.000000e+00> : vector<8x512xf32>
    %321 = tpu.matmul %319, %320, %cst_87 {dimension_numbers = #tpu.dot_dimension_numbers<[1], [0], [0], [1], [0, 0, 1, 1], [], []>} : vector<8x128xbf16>, vector<128x512xbf16>, vector<8x512xf32> -> vector<8x512xf32>
    %322 = arith.addf %318, %321 : vector<8x512xf32>
    %323 = vector.extract_strided_slice %322 {offsets = [0, 0], sizes = [8, 384], strides = [1, 1]} : vector<8x512xf32> to vector<8x384xf32>
    %cst_88 = arith.constant 5.000000e-01 : f32
    %324 = vector.broadcast %cst_88 : f32 to vector<8x384xf32>
    %325 = arith.mulf %324, %323 : vector<8x384xf32>
    %326 = math.tanh %325 : vector<8x384xf32>
    %cst_89 = arith.constant 5.000000e-01 : f32
    %327 = vector.broadcast %cst_89 : f32 to vector<8x384xf32>
    %328 = arith.mulf %327, %326 : vector<8x384xf32>
    %cst_90 = arith.constant 5.000000e-01 : f32
    %329 = vector.broadcast %cst_90 : f32 to vector<8x384xf32>
    %330 = arith.addf %328, %329 : vector<8x384xf32>
    %331 = vector.extract_strided_slice %330 {offsets = [0, 0], sizes = [8, 128], strides = [1, 1]} : vector<8x384xf32> to vector<8x128xf32>
    %332 = vector.extract_strided_slice %330 {offsets = [0, 128], sizes = [8, 128], strides = [1, 1]} : vector<8x384xf32> to vector<8x128xf32>
    %333 = vector.extract_strided_slice %330 {offsets = [0, 256], sizes = [8, 128], strides = [1, 1]} : vector<8x384xf32> to vector<8x128xf32>
    %334 = vector.extract_strided_slice %322 {offsets = [0, 384], sizes = [8, 128], strides = [1, 1]} : vector<8x512xf32> to vector<8x128xf32>
    %335 = math.tanh %334 : vector<8x128xf32>
    %336 = arith.mulf %332, %314 : vector<8x128xf32>
    %337 = arith.mulf %331, %335 : vector<8x128xf32>
    %338 = arith.addf %336, %337 : vector<8x128xf32>
    %339 = math.tanh %338 : vector<8x128xf32>
    %340 = arith.mulf %333, %339 : vector<8x128xf32>
    %341 = arith.addi %3, %c7_i32 : i32
    %342 = vector.broadcast %341 : i32 to vector<8x1xi32>
    %343 = arith.cmpi slt, %342, %4 : vector<8x1xi32>
    %cst_91 = arith.constant 0.000000e+00 : f32
    %344 = vector.shape_cast %343 : vector<8x1xi1> to vector<8x1xi1>
    %345 = vector.broadcast %344 : vector<8x1xi1> to vector<8x128xi1>
    %346 = vector.broadcast %cst_91 : f32 to vector<8x128xf32>
    %347 = arith.select %345, %340, %346 : vector<8x128xi1>, vector<8x128xf32>
    %348 = arith.truncf %347 : vector<8x128xf32> to vector<8x128xbf16>
    %349 = arith.index_cast %c7_i32 : i32 to index
    %c0_92 = arith.constant 0 : index
    %c0_93 = arith.constant 0 : index
    %350 = vector.load %arg5[%349, %c0_92, %c0_93] : memref<8x8x128xbf16, #tpu.memory_space<vmem>>, vector<1x8x128xbf16>
    %351 = vector.shape_cast %350 : vector<1x8x128xbf16> to vector<8x128xbf16>
    %352 = vector.shape_cast %348 : vector<8x128xbf16> to vector<1x8x128xbf16>
    tpu.vector_store %arg5[%349, %c0_92, %c0_93], %352 {strides = array<i32>} : memref<8x8x128xbf16, #tpu.memory_space<vmem>>, vector<1x8x128xbf16>,
    %353 = vector.shape_cast %343 : vector<8x1xi1> to vector<8x1xi1>
    %354 = vector.broadcast %353 : vector<8x1xi1> to vector<8x128xi1>
    %355 = arith.select %354, %340, %311 : vector<8x128xi1>, vector<8x128xf32>
    %356 = vector.shape_cast %343 : vector<8x1xi1> to vector<8x1xi1>
    %357 = vector.broadcast %356 : vector<8x1xi1> to vector<8x128xi1>
    %358 = arith.select %357, %338, %314 : vector<8x128xi1>, vector<8x128xf32>
    %c8_i32_94 = arith.constant 8 : i32
    %c0_95 = arith.constant 0 : index
    %c0_96 = arith.constant 0 : index
    %359 = vector.load %arg6[%c0_95, %c0_96] : memref<8x128xf32, #tpu.memory_space<vmem>>, vector<8x128xf32>
    tpu.vector_store %arg6[%c0_95, %c0_96], %355 {strides = array<i32>} : memref<8x128xf32, #tpu.memory_space<vmem>>, vector<8x128xf32>,
    %c0_97 = arith.constant 0 : index
    %c0_98 = arith.constant 0 : index
    %360 = vector.load %arg7[%c0_97, %c0_98] : memref<8x128xf32, #tpu.memory_space<vmem>>, vector<8x128xf32>
    tpu.vector_store %arg7[%c0_97, %c0_98], %358 {strides = array<i32>} : memref<8x128xf32, #tpu.memory_space<vmem>>, vector<8x128xf32>,
    return
  }
  func.func @transform_0(%arg0: i32, %arg1: i32) -> (i32, i32, i32) {
    %c0_i32 = arith.constant 0 : i32
    %c0_i32_0 = arith.constant 0 : i32
    return %arg1, %arg0, %c0_i32 : i32, i32, i32
  }
  func.func @transform_1(%arg0: i32, %arg1: i32) -> (i32, i32) {
    %c0_i32 = arith.constant 0 : i32
    %c0_i32_0 = arith.constant 0 : i32
    return %arg0, %c0_i32 : i32, i32
  }
  func.func @transform_2(%arg0: i32, %arg1: i32) -> (i32, i32) {
    %c0_i32 = arith.constant 0 : i32
    %c0_i32_0 = arith.constant 0 : i32
    %c0_i32_1 = arith.constant 0 : i32
    return %c0_i32, %c0_i32_0 : i32, i32
  }
  func.func @transform_3(%arg0: i32, %arg1: i32) -> (i32, i32, i32) {
    %c0_i32 = arith.constant 0 : i32
    %c0_i32_0 = arith.constant 0 : i32
    return %arg1, %arg0, %c0_i32 : i32, i32, i32
  }
  func.func @transform_4(%arg0: i32, %arg1: i32) -> (i32, i32) {
    %c0_i32 = arith.constant 0 : i32
    %c0_i32_0 = arith.constant 0 : i32
    return %arg0, %c0_i32 : i32, i32
  }
  func.func @transform_5(%arg0: i32, %arg1: i32) -> (i32, i32) {
    %c0_i32 = arith.constant 0 : i32
    %c0_i32_0 = arith.constant 0 : i32
    return %arg0, %c0_i32 : i32, i32
  }
}

module attributes {stable_mosaic.version = 11 : i64} {
  func.func @_matmul_bias_kernel(%arg0: i32, %arg1: i32, %arg2: memref<8x256xbf16, #tpu.memory_space<vmem>>, %arg3: memref<256x128xbf16, #tpu.memory_space<vmem>>, %arg4: memref<1x128xf32, #tpu.memory_space<vmem>>, %arg5: memref<8x128xf32, #tpu.memory_space<vmem>>) attributes {dimension_semantics = [#tpu.dimension_semantics<parallel>, #tpu.dimension_semantics<parallel>], iteration_bounds = array<i64: 1, 1>, scalar_prefetch = 0 : i64, scratch_operands = 0 : i64, tpu.core_type = #tpu.core_type<tc>, window_params = [{transform_indices = @transform_0, window_bounds = array<i64: 8, 256>}, {transform_indices = @transform_1, window_bounds = array<i64: 256, 128>}, {transform_indices = @transform_2, window_bounds = array<i64: 1, 128>}, {transform_indices = @transform_3, window_bounds = array<i64: 8, 128>}]} {
    %c0 = arith.constant 0 : index
    %c0_0 = arith.constant 0 : index
    %0 = vector.load %arg2[%c0, %c0_0] : memref<8x256xbf16, #tpu.memory_space<vmem>>, vector<8x256xbf16>
    %c0_1 = arith.constant 0 : index
    %c0_2 = arith.constant 0 : index
    %1 = vector.load %arg3[%c0_1, %c0_2] : memref<256x128xbf16, #tpu.memory_space<vmem>>, vector<256x128xbf16>
    %cst = arith.constant dense<0.000000e+00> : vector<8x128xf32>
    %2 = tpu.matmul %0, %1, %cst {dimension_numbers = #tpu.dot_dimension_numbers<[1], [0], [0], [1], [0, 0, 1, 1], [], []>} : vector<8x256xbf16>, vector<256x128xbf16>, vector<8x128xf32> -> vector<8x128xf32>
    %c0_3 = arith.constant 0 : index
    %c0_4 = arith.constant 0 : index
    %3 = vector.load %arg4[%c0_3, %c0_4] : memref<1x128xf32, #tpu.memory_space<vmem>>, vector<1x128xf32>
    %4 = vector.broadcast %3 : vector<1x128xf32> to vector<8x128xf32>
    %5 = arith.addf %2, %4 : vector<8x128xf32>
    %c0_5 = arith.constant 0 : index
    %c0_6 = arith.constant 0 : index
    %6 = vector.load %arg5[%c0_5, %c0_6] : memref<8x128xf32, #tpu.memory_space<vmem>>, vector<8x128xf32>
    tpu.vector_store %arg5[%c0_5, %c0_6], %5 {strides = array<i32>} : memref<8x128xf32, #tpu.memory_space<vmem>>, vector<8x128xf32>,
    return
  }
  func.func @transform_0(%arg0: i32, %arg1: i32) -> (i32, i32) {
    %c0_i32 = arith.constant 0 : i32
    %c0_i32_0 = arith.constant 0 : i32
    return %arg0, %c0_i32 : i32, i32
  }
  func.func @transform_1(%arg0: i32, %arg1: i32) -> (i32, i32) {
    %c0_i32 = arith.constant 0 : i32
    %c0_i32_0 = arith.constant 0 : i32
    return %c0_i32, %arg1 : i32, i32
  }
  func.func @transform_2(%arg0: i32, %arg1: i32) -> (i32, i32) {
    %c0_i32 = arith.constant 0 : i32
    %c0_i32_0 = arith.constant 0 : i32
    return %c0_i32, %arg1 : i32, i32
  }
  func.func @transform_3(%arg0: i32, %arg1: i32) -> (i32, i32) {
    %c0_i32 = arith.constant 0 : i32
    return %arg0, %arg1 : i32, i32
  }
}

module attributes {stable_mosaic.version = 11 : i64} {
  func.func @_matmul_bias_kernel(%arg0: i32, %arg1: i32, %arg2: memref<64x128xbf16, #tpu.memory_space<vmem>>, %arg3: memref<128x128xbf16, #tpu.memory_space<vmem>>, %arg4: memref<1x128xf32, #tpu.memory_space<vmem>>, %arg5: memref<64x128xf32, #tpu.memory_space<vmem>>) attributes {dimension_semantics = [#tpu.dimension_semantics<parallel>, #tpu.dimension_semantics<parallel>], iteration_bounds = array<i64: 1, 1>, scalar_prefetch = 0 : i64, scratch_operands = 0 : i64, tpu.core_type = #tpu.core_type<tc>, window_params = [{transform_indices = @transform_0, window_bounds = array<i64: 64, 128>}, {transform_indices = @transform_1, window_bounds = array<i64: 128, 128>}, {transform_indices = @transform_2, window_bounds = array<i64: 1, 128>}, {transform_indices = @transform_3, window_bounds = array<i64: 64, 128>}]} {
    %c0 = arith.constant 0 : index
    %c0_0 = arith.constant 0 : index
    %0 = vector.load %arg2[%c0, %c0_0] : memref<64x128xbf16, #tpu.memory_space<vmem>>, vector<64x128xbf16>
    %c0_1 = arith.constant 0 : index
    %c0_2 = arith.constant 0 : index
    %1 = vector.load %arg3[%c0_1, %c0_2] : memref<128x128xbf16, #tpu.memory_space<vmem>>, vector<128x128xbf16>
    %cst = arith.constant dense<0.000000e+00> : vector<64x128xf32>
    %2 = tpu.matmul %0, %1, %cst {dimension_numbers = #tpu.dot_dimension_numbers<[1], [0], [0], [1], [0, 0, 1, 1], [], []>} : vector<64x128xbf16>, vector<128x128xbf16>, vector<64x128xf32> -> vector<64x128xf32>
    %c0_3 = arith.constant 0 : index
    %c0_4 = arith.constant 0 : index
    %3 = vector.load %arg4[%c0_3, %c0_4] : memref<1x128xf32, #tpu.memory_space<vmem>>, vector<1x128xf32>
    %4 = vector.broadcast %3 : vector<1x128xf32> to vector<64x128xf32>
    %5 = arith.addf %2, %4 : vector<64x128xf32>
    %c0_5 = arith.constant 0 : index
    %c0_6 = arith.constant 0 : index
    %6 = vector.load %arg5[%c0_5, %c0_6] : memref<64x128xf32, #tpu.memory_space<vmem>>, vector<64x128xf32>
    tpu.vector_store %arg5[%c0_5, %c0_6], %5 {strides = array<i32>} : memref<64x128xf32, #tpu.memory_space<vmem>>, vector<64x128xf32>,
    return
  }
  func.func @transform_0(%arg0: i32, %arg1: i32) -> (i32, i32) {
    %c0_i32 = arith.constant 0 : i32
    %c0_i32_0 = arith.constant 0 : i32
    return %arg0, %c0_i32 : i32, i32
  }
  func.func @transform_1(%arg0: i32, %arg1: i32) -> (i32, i32) {
    %c0_i32 = arith.constant 0 : i32
    %c0_i32_0 = arith.constant 0 : i32
    return %c0_i32, %arg1 : i32, i32
  }
  func.func @transform_2(%arg0: i32, %arg1: i32) -> (i32, i32) {
    %c0_i32 = arith.constant 0 : i32
    %c0_i32_0 = arith.constant 0 : i32
    return %c0_i32, %arg1 : i32, i32
  }
  func.func @transform_3(%arg0: i32, %arg1: i32) -> (i32, i32) {
    %c0_i32 = arith.constant 0 : i32
    return %arg0, %arg1 : i32, i32
  }
}

</mosaic_0001>

<llo_original>
// kernel: rnn_forward.6
$region0: #{rnn_forward.6}
  #allocation0 [shape = 'u32[]', space=smem, size = 0x4, offset = 0x4, fixed_abs, tag = 'smem constant byte address 0x4 - core index']
  #allocation1 [shape = 'u32[144,128]{1,0:T(1,128)}', space=vmem, size = 0x12000, scoped, tag = 'internal scratch']
  %s0 = inlined_call_operand.vmem [shape: bf16[64,128], index: 0, kind: input, shape index: {}]
  %s1 = inlined_call_operand.vmem [shape: bf16[128,512], index: 1, kind: input, shape index: {}]
  %s2 = inlined_call_operand.vmem [shape: f32[1,512], index: 2, kind: input, shape index: {}]
  %s3 = inlined_call_operand.vmem [shape: bf16[64,512], index: 3, kind: output, shape index: {}]
  %s4 = sld [smem:[#allocation0]]
  $region22: #{rnn_forward.6} parent=0
    _
  %s6 = ssub.s32 1, %s4
  %s7 = scalar_select 0, %s6, %s4
  // Predicated region
  $region2: #{rnn_forward.6} parent=0 // pred_check
    _
  $region3: #{rnn_forward.6} parent=0 // pred_check_branch
    %9 = sbr.rel (0) target = $region5
  $region4: #{rnn_forward.6} parent=0 // pred_region
    _
  $region5: #{rnn_forward.6} parent=0 // pred_fallthru
    _
  // Predicated region
  $region6: #{rnn_forward.6} parent=0 // pred_check
    _
  $region7: #{rnn_forward.6} parent=0 // pred_check_branch
    %11 = sbr.rel (0) target = $region9
  $region8: #{rnn_forward.6} parent=0 // pred_region
    _
  $region9: #{rnn_forward.6} parent=0 // pred_fallthru
    _
  // Predicated region
  $region10: #{rnn_forward.6} parent=0 // pred_check
    _
  $region11: #{rnn_forward.6} parent=0 // pred_check_branch
    %13 = sbr.rel (0) target = $region13
  $region12: #{rnn_forward.6} parent=0 // pred_region
    _
  $region13: #{rnn_forward.6} parent=0 // pred_fallthru
    _
  %v15 = vld [vmem:[%s0] sm:$0xf]
  %v16 = vld [vmem:[%s0 + $0x4] sm:$0xf]
  %v17 = vld [vmem:[%s0 + $0x8] sm:$0xf]
  %v18 = vld [vmem:[%s0 + $0xc] sm:$0xf]
  %v19 = vld [vmem:[%s0 + $0x10] sm:$0xf]
  %v20 = vld [vmem:[%s0 + $0x14] sm:$0xf]
  %v21 = vld [vmem:[%s0 + $0x18] sm:$0xf]
  %v22 = vld [vmem:[%s0 + $0x1c] sm:$0xf]
  %v23 = vld [vmem:[%s1] sm:$0xff]
  %v24 = vld [vmem:[%s1 + $0x8] sm:$0xff]
  %v25 = vld [vmem:[%s1 + $0x10] sm:$0xff]
  %v26 = vld [vmem:[%s1 + $0x18] sm:$0xff]
  %v27 = vld [vmem:[%s1 + $0x20] sm:$0xff]
  %v28 = vld [vmem:[%s1 + $0x28] sm:$0xff]
  %v29 = vld [vmem:[%s1 + $0x30] sm:$0xff]
  %v30 = vld [vmem:[%s1 + $0x38] sm:$0xff]
  %v31 = vld [vmem:[%s1 + $0x40] sm:$0xff]
  %v32 = vld [vmem:[%s1 + $0x48] sm:$0xff]
  %v33 = vld [vmem:[%s1 + $0x50] sm:$0xff]
  %v34 = vld [vmem:[%s1 + $0x58] sm:$0xff]
  %v35 = vld [vmem:[%s1 + $0x60] sm:$0xff]
  %v36 = vld [vmem:[%s1 + $0x68] sm:$0xff]
  %v37 = vld [vmem:[%s1 + $0x70] sm:$0xff]
  %v38 = vld [vmem:[%s1 + $0x78] sm:$0xff]
  %v39 = vld [vmem:[%s1 + $0x80] sm:$0xff]
  %v40 = vld [vmem:[%s1 + $0x88] sm:$0xff]
  %v41 = vld [vmem:[%s1 + $0x90] sm:$0xff]
  %v42 = vld [vmem:[%s1 + $0x98] sm:$0xff]
  %v43 = vld [vmem:[%s1 + $0xa0] sm:$0xff]
  %v44 = vld [vmem:[%s1 + $0xa8] sm:$0xff]
  %v45 = vld [vmem:[%s1 + $0xb0] sm:$0xff]
  %v46 = vld [vmem:[%s1 + $0xb8] sm:$0xff]
  %v47 = vld [vmem:[%s1 + $0xc0] sm:$0xff]
  %v48 = vld [vmem:[%s1 + $0xc8] sm:$0xff]
  %v49 = vld [vmem:[%s1 + $0xd0] sm:$0xff]
  %v50 = vld [vmem:[%s1 + $0xd8] sm:$0xff]
  %v51 = vld [vmem:[%s1 + $0xe0] sm:$0xff]
  %v52 = vld [vmem:[%s1 + $0xe8] sm:$0xff]
  %v53 = vld [vmem:[%s1 + $0xf0] sm:$0xff]
  %v54 = vld [vmem:[%s1 + $0xf8] sm:$0xff]
  %v55 = vld [vmem:[%s2] sm:$0xf]
  %v57 = vlaneseq
  %v58 = vshrl.u32 %v57, 7
  %v59 = vsub.s32 0, %v58
  %v60 = vrot.slane %v55, %v59
  %v61 = vlaneseq
  %v62 = vshrl.u32 %v61, 7
  %v63 = vsub.s32 1, %v62
  %v64 = vrot.slane %v55, %v63
  %v65 = vlaneseq
  %v66 = vshrl.u32 %v65, 7
  %v67 = vsub.s32 2, %v66
  %v68 = vrot.slane %v55, %v67
  %v69 = vlaneseq
  %v70 = vshrl.u32 %v69, 7
  %v71 = vsub.s32 3, %v70
  %v72 = vrot.slane %v55, %v71
  %v85 = vunpack.c.l.b16 %v15
  %v86 = vunpack.c.l.b16 %v16
  %v87 = vunpack.c.l.b16 %v17
  %v88 = vunpack.c.l.b16 %v18
  %v89 = vunpack.c.l.b16 %v19
  %v90 = vunpack.c.l.b16 %v20
  %v91 = vunpack.c.l.b16 %v21
  %v92 = vunpack.c.l.b16 %v22
  %v93 = vpack.c.b16 %v86, %v85
  %v94 = vpack.c.b16 %v88, %v87
  %v95 = vpack.c.b16 %v90, %v89
  %v96 = vpack.c.b16 %v92, %v91
  %v133 = vunpack.c.l.b16 %v23
  %v134 = vunpack.c.h.b16 %v23
  %v135 = vunpack.c.l.b16 %v24
  %v136 = vunpack.c.h.b16 %v24
  %v137 = vunpack.c.l.b16 %v25
  %v138 = vunpack.c.h.b16 %v25
  %v139 = vunpack.c.l.b16 %v26
  %v140 = vunpack.c.h.b16 %v26
  %v141 = vunpack.c.l.b16 %v27
  %v142 = vunpack.c.h.b16 %v27
  %v143 = vunpack.c.l.b16 %v28
  %v144 = vunpack.c.h.b16 %v28
  %v145 = vunpack.c.l.b16 %v29
  %v146 = vunpack.c.h.b16 %v29
  %v147 = vunpack.c.l.b16 %v30
  %v148 = vunpack.c.h.b16 %v30
  %v149 = vunpack.c.l.b16 %v31
  %v150 = vunpack.c.h.b16 %v31
  %v151 = vunpack.c.l.b16 %v32
  %v152 = vunpack.c.h.b16 %v32
  %v153 = vunpack.c.l.b16 %v33
  %v154 = vunpack.c.h.b16 %v33
  %v155 = vunpack.c.l.b16 %v34
  %v156 = vunpack.c.h.b16 %v34
  %v157 = vunpack.c.l.b16 %v35
  %v158 = vunpack.c.h.b16 %v35
  %v159 = vunpack.c.l.b16 %v36
  %v160 = vunpack.c.h.b16 %v36
  %v161 = vunpack.c.l.b16 %v37
  %v162 = vunpack.c.h.b16 %v37
  %v163 = vunpack.c.l.b16 %v38
  %v164 = vunpack.c.h.b16 %v38
  %v165 = vunpack.c.l.b16 %v39
  %v166 = vunpack.c.h.b16 %v39
  %v167 = vunpack.c.l.b16 %v40
  %v168 = vunpack.c.h.b16 %v40
  %v169 = vunpack.c.l.b16 %v41
  %v170 = vunpack.c.h.b16 %v41
  %v171 = vunpack.c.l.b16 %v42
  %v172 = vunpack.c.h.b16 %v42
  %v173 = vunpack.c.l.b16 %v43
  %v174 = vunpack.c.h.b16 %v43
  %v175 = vunpack.c.l.b16 %v44
  %v176 = vunpack.c.h.b16 %v44
  %v177 = vunpack.c.l.b16 %v45
  %v178 = vunpack.c.h.b16 %v45
  %v179 = vunpack.c.l.b16 %v46
  %v180 = vunpack.c.h.b16 %v46
  %v181 = vunpack.c.l.b16 %v47
  %v182 = vunpack.c.h.b16 %v47
  %v183 = vunpack.c.l.b16 %v48
  %v184 = vunpack.c.h.b16 %v48
  %v185 = vunpack.c.l.b16 %v49
  %v186 = vunpack.c.h.b16 %v49
  %v187 = vunpack.c.l.b16 %v50
  %v188 = vunpack.c.h.b16 %v50
  %v189 = vunpack.c.l.b16 %v51
  %v190 = vunpack.c.h.b16 %v51
  %v191 = vunpack.c.l.b16 %v52
  %v192 = vunpack.c.h.b16 %v52
  %v193 = vunpack.c.l.b16 %v53
  %v194 = vunpack.c.h.b16 %v53
  %v195 = vunpack.c.l.b16 %v54
  %v196 = vunpack.c.h.b16 %v54
  %v197 = vpack.c.b16 %v137, %v133
  %v198 = vpack.c.b16 %v138, %v134
  %v199 = vpack.c.b16 %v139, %v135
  %v200 = vpack.c.b16 %v140, %v136
  %v201 = vpack.c.b16 %v145, %v141
  %v202 = vpack.c.b16 %v146, %v142
  %v203 = vpack.c.b16 %v147, %v143
  %v204 = vpack.c.b16 %v148, %v144
  %v205 = vpack.c.b16 %v153, %v149
  %v206 = vpack.c.b16 %v154, %v150
  %v207 = vpack.c.b16 %v155, %v151
  %v208 = vpack.c.b16 %v156, %v152
  %v209 = vpack.c.b16 %v161, %v157
  %v210 = vpack.c.b16 %v162, %v158
  %v211 = vpack.c.b16 %v163, %v159
  %v212 = vpack.c.b16 %v164, %v160
  %v213 = vpack.c.b16 %v169, %v165
  %v214 = vpack.c.b16 %v170, %v166
  %v215 = vpack.c.b16 %v171, %v167
  %v216 = vpack.c.b16 %v172, %v168
  %v217 = vpack.c.b16 %v177, %v173
  %v218 = vpack.c.b16 %v178, %v174
  %v219 = vpack.c.b16 %v179, %v175
  %v220 = vpack.c.b16 %v180, %v176
  %v221 = vpack.c.b16 %v185, %v181
  %v222 = vpack.c.b16 %v186, %v182
  %v223 = vpack.c.b16 %v187, %v183
  %v224 = vpack.c.b16 %v188, %v184
  %v225 = vpack.c.b16 %v193, %v189
  %v226 = vpack.c.b16 %v194, %v190
  %v227 = vpack.c.b16 %v195, %v191
  %v228 = vpack.c.b16 %v196, %v192
  %261 = vmatprep.subr.bf16.mxu0 %v198
  %262 = vmatpush1.bf16.msra.mxu0 %v197
  %263 = vmatprep.subr.bf16.mxu0 %v202
  %264 = vmatpush1.bf16.msra.mxu0 %v201
  %265 = vmatprep.subr.bf16.mxu0 %v206
  %266 = vmatpush1.bf16.msra.mxu0 %v205
  %267 = vmatprep.subr.bf16.mxu0 %v210
  %268 = vmatpush1.bf16.msra.mxu0 %v209
  %269 = vmatprep.subr.bf16.mxu0 %v214
  %270 = vmatpush1.bf16.msra.mxu0 %v213
  %271 = vmatprep.subr.bf16.mxu0 %v218
  %272 = vmatpush1.bf16.msra.mxu0 %v217
  %273 = vmatprep.subr.bf16.mxu0 %v222
  %274 = vmatpush1.bf16.msra.mxu0 %v221
  %275 = vmatprep.subr.bf16.mxu0 %v226
  %276 = vmatpush1.bf16.msra.mxu0 %v225
  %277 = vmatprep.subr.bf16.mxu0 0
  %278 = vmatpush1.bf16.msra.mxu0 0
  %279 = vmatprep.subr.bf16.mxu0 0
  %280 = vmatpush1.bf16.msra.mxu0 0
  %281 = vmatprep.subr.bf16.mxu0 0
  %282 = vmatpush1.bf16.msra.mxu0 0
  %283 = vmatprep.subr.bf16.mxu0 0
  %284 = vmatpush1.bf16.msra.mxu0 0
  %285 = vmatprep.subr.bf16.mxu0 0
  %286 = vmatpush1.bf16.msra.mxu0 0
  %287 = vmatprep.subr.bf16.mxu0 0
  %288 = vmatpush1.bf16.msra.mxu0 0
  %289 = vmatprep.subr.bf16.mxu0 0
  %290 = vmatpush1.bf16.msra.mxu0 0
  %291 = vmatprep.subr.bf16.mxu0 0
  %292 = vmatpush1.bf16.msra.mxu0 0
  %293 = vmatprep.mubr.bf16.mxu0 0
  %294 = vmatmul.mubr.bf16.gmra.mrb[0].mxu0 %v93
  %v295 = vpop.f32.mrb[0].mxu0
  %v296 = vadd.f32 %v60, %v295
  %v297 = vpop.f32.mrb[0].mxu0
  %v298 = vadd.f32 %v64, %v297
  %v299 = vpop.f32.mrb[0].mxu0
  %v300 = vadd.f32 %v60, %v299
  %v301 = vpop.f32.mrb[0].mxu0
  %v302 = vadd.f32 %v64, %v301
  %303 = vmatprep.mubr.bf16.mxu0 0
  %304 = vmatmul.mubr.bf16.gmra.mrb[0].mxu0 %v94
  %v305 = vpop.f32.mrb[0].mxu0
  %v306 = vadd.f32 %v60, %v305
  %v307 = vpop.f32.mrb[0].mxu0
  %v308 = vadd.f32 %v64, %v307
  %v309 = vpop.f32.mrb[0].mxu0
  %v310 = vadd.f32 %v60, %v309
  %v311 = vpop.f32.mrb[0].mxu0
  %v312 = vadd.f32 %v64, %v311
  %313 = vmatprep.mubr.bf16.mxu0 0
  %314 = vmatmul.mubr.bf16.gmra.mrb[0].mxu0 %v95
  %v315 = vpop.f32.mrb[0].mxu0
  %v316 = vadd.f32 %v60, %v315
  %v317 = vpop.f32.mrb[0].mxu0
  %v318 = vadd.f32 %v64, %v317
  %v319 = vpop.f32.mrb[0].mxu0
  %v320 = vadd.f32 %v60, %v319
  %v321 = vpop.f32.mrb[0].mxu0
  %v322 = vadd.f32 %v64, %v321
  %323 = vmatprep.mubr.bf16.mxu0 0
  %324 = vmatmul.mubr.bf16.gmra.mrb[0].mxu0 %v96
  %v325 = vpop.f32.mrb[0].mxu0
  %v326 = vadd.f32 %v60, %v325
  %v327 = vpop.f32.mrb[0].mxu0
  %v328 = vadd.f32 %v64, %v327
  %v329 = vpop.f32.mrb[0].mxu0
  %v330 = vadd.f32 %v60, %v329
  %v331 = vpop.f32.mrb[0].mxu0
  %v332 = vadd.f32 %v64, %v331
  %333 = vdwg.mxu0
  %334 = vmatprep.subr.bf16.mxu0 %v200
  %335 = vmatpush1.bf16.msra.mxu0 %v199
  %336 = vmatprep.subr.bf16.mxu0 %v204
  %337 = vmatpush1.bf16.msra.mxu0 %v203
  %338 = vmatprep.subr.bf16.mxu0 %v208
  %339 = vmatpush1.bf16.msra.mxu0 %v207
  %340 = vmatprep.subr.bf16.mxu0 %v212
  %341 = vmatpush1.bf16.msra.mxu0 %v211
  %342 = vmatprep.subr.bf16.mxu0 %v216
  %343 = vmatpush1.bf16.msra.mxu0 %v215
  %344 = vmatprep.subr.bf16.mxu0 %v220
  %345 = vmatpush1.bf16.msra.mxu0 %v219
  %346 = vmatprep.subr.bf16.mxu0 %v224
  %347 = vmatpush1.bf16.msra.mxu0 %v223
  %348 = vmatprep.subr.bf16.mxu0 %v228
  %349 = vmatpush1.bf16.msra.mxu0 %v227
  %350 = vmatprep.subr.bf16.mxu0 0
  %351 = vmatpush1.bf16.msra.mxu0 0
  %352 = vmatprep.subr.bf16.mxu0 0
  %353 = vmatpush1.bf16.msra.mxu0 0
  %354 = vmatprep.subr.bf16.mxu0 0
  %355 = vmatpush1.bf16.msra.mxu0 0
  %356 = vmatprep.subr.bf16.mxu0 0
  %357 = vmatpush1.bf16.msra.mxu0 0
  %358 = vmatprep.subr.bf16.mxu0 0
  %359 = vmatpush1.bf16.msra.mxu0 0
  %360 = vmatprep.subr.bf16.mxu0 0
  %361 = vmatpush1.bf16.msra.mxu0 0
  %362 = vmatprep.subr.bf16.mxu0 0
  %363 = vmatpush1.bf16.msra.mxu0 0
  %364 = vmatprep.subr.bf16.mxu0 0
  %365 = vmatpush1.bf16.msra.mxu0 0
  %366 = vmatprep.mubr.bf16.mxu0 0
  %367 = vmatmul.mubr.bf16.gmra.mrb[0].mxu0 %v93
  %v368 = vpop.f32.mrb[0].mxu0
  %v369 = vadd.f32 %v68, %v368
  %v370 = vpop.f32.mrb[0].mxu0
  %v371 = vadd.f32 %v72, %v370
  %v372 = vpop.f32.mrb[0].mxu0
  %v373 = vadd.f32 %v68, %v372
  %v374 = vpop.f32.mrb[0].mxu0
  %v375 = vadd.f32 %v72, %v374
  %376 = vmatprep.mubr.bf16.mxu0 0
  %377 = vmatmul.mubr.bf16.gmra.mrb[0].mxu0 %v94
  %v378 = vpop.f32.mrb[0].mxu0
  %v379 = vadd.f32 %v68, %v378
  %v380 = vpop.f32.mrb[0].mxu0
  %v381 = vadd.f32 %v72, %v380
  %v382 = vpop.f32.mrb[0].mxu0
  %v383 = vadd.f32 %v68, %v382
  %v384 = vpop.f32.mrb[0].mxu0
  %v385 = vadd.f32 %v72, %v384
  %386 = vmatprep.mubr.bf16.mxu0 0
  %387 = vmatmul.mubr.bf16.gmra.mrb[0].mxu0 %v95
  %v388 = vpop.f32.mrb[0].mxu0
  %v389 = vadd.f32 %v68, %v388
  %v390 = vpop.f32.mrb[0].mxu0
  %v391 = vadd.f32 %v72, %v390
  %v392 = vpop.f32.mrb[0].mxu0
  %v393 = vadd.f32 %v68, %v392
  %v394 = vpop.f32.mrb[0].mxu0
  %v395 = vadd.f32 %v72, %v394
  %396 = vmatprep.mubr.bf16.mxu0 0
  %397 = vmatmul.mubr.bf16.gmra.mrb[0].mxu0 %v96
  %v398 = vpop.f32.mrb[0].mxu0
  %v399 = vadd.f32 %v68, %v398
  %v400 = vpop.f32.mrb[0].mxu0
  %v401 = vadd.f32 %v72, %v400
  %v402 = vpop.f32.mrb[0].mxu0
  %v403 = vadd.f32 %v68, %v402
  %v404 = vpop.f32.mrb[0].mxu0
  %v405 = vadd.f32 %v72, %v404
  %406 = vdwg.mxu0
  %v407 = vpack.c.bf16 %v300, %v296
  %v408 = vpack.c.bf16 %v302, %v298
  %v409 = vpack.c.bf16 %v373, %v369
  %v410 = vpack.c.bf16 %v375, %v371
  %v411 = vpack.c.bf16 %v310, %v306
  %v412 = vpack.c.bf16 %v312, %v308
  %v413 = vpack.c.bf16 %v383, %v379
  %v414 = vpack.c.bf16 %v385, %v381
  %v415 = vpack.c.bf16 %v320, %v316
  %v416 = vpack.c.bf16 %v322, %v318
  %v417 = vpack.c.bf16 %v393, %v389
  %v418 = vpack.c.bf16 %v395, %v391
  %v419 = vpack.c.bf16 %v330, %v326
  %v420 = vpack.c.bf16 %v332, %v328
  %v421 = vpack.c.bf16 %v403, %v399
  %v422 = vpack.c.bf16 %v405, %v401
  %v439 = vunpack.c.l.b16 %v407
  %v440 = vunpack.c.l.b16 %v408
  %v441 = vunpack.c.l.b16 %v409
  %v442 = vunpack.c.l.b16 %v410
  %v443 = vunpack.c.h.b16 %v407
  %v444 = vunpack.c.h.b16 %v408
  %v445 = vunpack.c.h.b16 %v409
  %v446 = vunpack.c.h.b16 %v410
  %v447 = vunpack.c.l.b16 %v411
  %v448 = vunpack.c.l.b16 %v412
  %v449 = vunpack.c.l.b16 %v413
  %v450 = vunpack.c.l.b16 %v414
  %v451 = vunpack.c.h.b16 %v411
  %v452 = vunpack.c.h.b16 %v412
  %v453 = vunpack.c.h.b16 %v413
  %v454 = vunpack.c.h.b16 %v414
  %v455 = vunpack.c.l.b16 %v415
  %v456 = vunpack.c.l.b16 %v416
  %v457 = vunpack.c.l.b16 %v417
  %v458 = vunpack.c.l.b16 %v418
  %v459 = vunpack.c.h.b16 %v415
  %v460 = vunpack.c.h.b16 %v416
  %v461 = vunpack.c.h.b16 %v417
  %v462 = vunpack.c.h.b16 %v418
  %v463 = vunpack.c.l.b16 %v419
  %v464 = vunpack.c.l.b16 %v420
  %v465 = vunpack.c.l.b16 %v421
  %v466 = vunpack.c.l.b16 %v422
  %v467 = vunpack.c.h.b16 %v419
  %v468 = vunpack.c.h.b16 %v420
  %v469 = vunpack.c.h.b16 %v421
  %v470 = vunpack.c.h.b16 %v422
  %v471 = vpack.c.b16 %v440, %v439
  %v472 = vpack.c.b16 %v442, %v441
  %v473 = vpack.c.b16 %v444, %v443
  %v474 = vpack.c.b16 %v446, %v445
  %v475 = vpack.c.b16 %v448, %v447
  %v476 = vpack.c.b16 %v450, %v449
  %v477 = vpack.c.b16 %v452, %v451
  %v478 = vpack.c.b16 %v454, %v453
  %v479 = vpack.c.b16 %v456, %v455
  %v480 = vpack.c.b16 %v458, %v457
  %v481 = vpack.c.b16 %v460, %v459
  %v482 = vpack.c.b16 %v462, %v461
  %v483 = vpack.c.b16 %v464, %v463
  %v484 = vpack.c.b16 %v466, %v465
  %v485 = vpack.c.b16 %v468, %v467
  %v486 = vpack.c.b16 %v470, %v469
  %503 = vst [vmem:[%s3] sm:$0xff] %v471
  %504 = vst [vmem:[%s3 + $0x8] sm:$0xff] %v472
  %505 = vst [vmem:[%s3 + $0x10] sm:$0xff] %v473
  %506 = vst [vmem:[%s3 + $0x18] sm:$0xff] %v474
  %507 = vst [vmem:[%s3 + $0x20] sm:$0xff] %v475
  %508 = vst [vmem:[%s3 + $0x28] sm:$0xff] %v476
  %509 = vst [vmem:[%s3 + $0x30] sm:$0xff] %v477
  %510 = vst [vmem:[%s3 + $0x38] sm:$0xff] %v478
  %511 = vst [vmem:[%s3 + $0x40] sm:$0xff] %v479
  %512 = vst [vmem:[%s3 + $0x48] sm:$0xff] %v480
  %513 = vst [vmem:[%s3 + $0x50] sm:$0xff] %v481
  %514 = vst [vmem:[%s3 + $0x58] sm:$0xff] %v482
  %515 = vst [vmem:[%s3 + $0x60] sm:$0xff] %v483
  %516 = vst [vmem:[%s3 + $0x68] sm:$0xff] %v484
  %517 = vst [vmem:[%s3 + $0x70] sm:$0xff] %v485
  %518 = vst [vmem:[%s3 + $0x78] sm:$0xff] %v486
  // Predicated region
  $region14: #{rnn_forward.6} parent=0 // pred_check
    _
  $region15: #{rnn_forward.6} parent=0 // pred_check_branch
    %520 = sbr.rel (0) target = $region17
  $region16: #{rnn_forward.6} parent=0 // pred_region
    _
  $region17: #{rnn_forward.6} parent=0 // pred_fallthru
    _
  // Predicated region
  $region18: #{rnn_forward.6} parent=0 // pred_check
    _
  $region19: #{rnn_forward.6} parent=0 // pred_check_branch
    %522 = sbr.rel (0) target = $region21
  $region20: #{rnn_forward.6} parent=0 // pred_region
    _
  $region21: #{rnn_forward.6} parent=0 // pred_fallthru
    _

// kernel: rnn_forward.10
$region0: #{rnn_forward.10}
  #allocation0 [shape = 'u32[]', space=smem, size = 0x4, offset = 0x4, fixed_abs, tag = 'smem constant byte address 0x4 - core index']
  #allocation1 [shape = 'u32[144,128]{1,0:T(1,128)}', space=vmem, size = 0x12000, scoped, tag = 'internal scratch']
  %s0 = inlined_call_operand.vmem [shape: bf16[8,256], index: 0, kind: input, shape index: {}]
  %s1 = inlined_call_operand.vmem [shape: bf16[256,128], index: 1, kind: input, shape index: {}]
  %s2 = inlined_call_operand.vmem [shape: f32[1,128], index: 2, kind: input, shape index: {}]
  %s3 = inlined_call_operand.vmem [shape: f32[8,128], index: 3, kind: output, shape index: {}]
  %s4 = sld [smem:[#allocation0]]
  $region22: #{rnn_forward.10} parent=0
    _
  %s6 = ssub.s32 1, %s4
  %s7 = scalar_select 0, %s6, %s4
  // Predicated region
  $region2: #{rnn_forward.10} parent=0 // pred_check
    _
  $region3: #{rnn_forward.10} parent=0 // pred_check_branch
    %9 = sbr.rel (0) target = $region5
  $region4: #{rnn_forward.10} parent=0 // pred_region
    _
  $region5: #{rnn_forward.10} parent=0 // pred_fallthru
    _
  // Predicated region
  $region6: #{rnn_forward.10} parent=0 // pred_check
    _
  $region7: #{rnn_forward.10} parent=0 // pred_check_branch
    %11 = sbr.rel (0) target = $region9
  $region8: #{rnn_forward.10} parent=0 // pred_region
    _
  $region9: #{rnn_forward.10} parent=0 // pred_fallthru
    _
  // Predicated region
  $region10: #{rnn_forward.10} parent=0 // pred_check
    _
  $region11: #{rnn_forward.10} parent=0 // pred_check_branch
    %13 = sbr.rel (0) target = $region13
  $region12: #{rnn_forward.10} parent=0 // pred_region
    _
  $region13: #{rnn_forward.10} parent=0 // pred_fallthru
    _
  %v15 = vld [vmem:[%s0] sm:$0xff]
  %v16 = vld [vmem:[%s1] sm:$0xf]
  %v17 = vld [vmem:[%s1 + $0x4] sm:$0xf]
  %v18 = vld [vmem:[%s1 + $0x8] sm:$0xf]
  %v19 = vld [vmem:[%s1 + $0xc] sm:$0xf]
  %v20 = vld [vmem:[%s1 + $0x10] sm:$0xf]
  %v21 = vld [vmem:[%s1 + $0x14] sm:$0xf]
  %v22 = vld [vmem:[%s1 + $0x18] sm:$0xf]
  %v23 = vld [vmem:[%s1 + $0x1c] sm:$0xf]
  %v24 = vld [vmem:[%s1 + $0x20] sm:$0xf]
  %v25 = vld [vmem:[%s1 + $0x24] sm:$0xf]
  %v26 = vld [vmem:[%s1 + $0x28] sm:$0xf]
  %v27 = vld [vmem:[%s1 + $0x2c] sm:$0xf]
  %v28 = vld [vmem:[%s1 + $0x30] sm:$0xf]
  %v29 = vld [vmem:[%s1 + $0x34] sm:$0xf]
  %v30 = vld [vmem:[%s1 + $0x38] sm:$0xf]
  %v31 = vld [vmem:[%s1 + $0x3c] sm:$0xf]
  %v32 = vld [vmem:[%s1 + $0x40] sm:$0xf]
  %v33 = vld [vmem:[%s1 + $0x44] sm:$0xf]
  %v34 = vld [vmem:[%s1 + $0x48] sm:$0xf]
  %v35 = vld [vmem:[%s1 + $0x4c] sm:$0xf]
  %v36 = vld [vmem:[%s1 + $0x50] sm:$0xf]
  %v37 = vld [vmem:[%s1 + $0x54] sm:$0xf]
  %v38 = vld [vmem:[%s1 + $0x58] sm:$0xf]
  %v39 = vld [vmem:[%s1 + $0x5c] sm:$0xf]
  %v40 = vld [vmem:[%s1 + $0x60] sm:$0xf]
  %v41 = vld [vmem:[%s1 + $0x64] sm:$0xf]
  %v42 = vld [vmem:[%s1 + $0x68] sm:$0xf]
  %v43 = vld [vmem:[%s1 + $0x6c] sm:$0xf]
  %v44 = vld [vmem:[%s1 + $0x70] sm:$0xf]
  %v45 = vld [vmem:[%s1 + $0x74] sm:$0xf]
  %v46 = vld [vmem:[%s1 + $0x78] sm:$0xf]
  %v47 = vld [vmem:[%s1 + $0x7c] sm:$0xf]
  %v48 = vld [vmem:[%s2] sm:$0x1]
  %v50 = vlaneseq
  %v51 = vshrl.u32 %v50, 7
  %v52 = vsub.s32 0, %v51
  %v53 = vrot.slane %v48, %v52
  %v56 = vunpack.c.l.b16 %v15
  %v57 = vunpack.c.h.b16 %v15
  %v58 = vpack.c.b16 %v56, %v56
  %v59 = vpack.c.b16 %v57, %v57
  %v94 = vunpack.c.l.b16 %v16
  %v95 = vunpack.c.l.b16 %v17
  %v96 = vunpack.c.l.b16 %v18
  %v97 = vunpack.c.l.b16 %v19
  %v98 = vunpack.c.l.b16 %v20
  %v99 = vunpack.c.l.b16 %v21
  %v100 = vunpack.c.l.b16 %v22
  %v101 = vunpack.c.l.b16 %v23
  %v102 = vunpack.c.l.b16 %v24
  %v103 = vunpack.c.l.b16 %v25
  %v104 = vunpack.c.l.b16 %v26
  %v105 = vunpack.c.l.b16 %v27
  %v106 = vunpack.c.l.b16 %v28
  %v107 = vunpack.c.l.b16 %v29
  %v108 = vunpack.c.l.b16 %v30
  %v109 = vunpack.c.l.b16 %v31
  %v110 = vunpack.c.l.b16 %v32
  %v111 = vunpack.c.l.b16 %v33
  %v112 = vunpack.c.l.b16 %v34
  %v113 = vunpack.c.l.b16 %v35
  %v114 = vunpack.c.l.b16 %v36
  %v115 = vunpack.c.l.b16 %v37
  %v116 = vunpack.c.l.b16 %v38
  %v117 = vunpack.c.l.b16 %v39
  %v118 = vunpack.c.l.b16 %v40
  %v119 = vunpack.c.l.b16 %v41
  %v120 = vunpack.c.l.b16 %v42
  %v121 = vunpack.c.l.b16 %v43
  %v122 = vunpack.c.l.b16 %v44
  %v123 = vunpack.c.l.b16 %v45
  %v124 = vunpack.c.l.b16 %v46
  %v125 = vunpack.c.l.b16 %v47
  %v126 = vpack.c.b16 %v95, %v94
  %v127 = vpack.c.b16 %v97, %v96
  %v128 = vpack.c.b16 %v99, %v98
  %v129 = vpack.c.b16 %v101, %v100
  %v130 = vpack.c.b16 %v103, %v102
  %v131 = vpack.c.b16 %v105, %v104
  %v132 = vpack.c.b16 %v107, %v106
  %v133 = vpack.c.b16 %v109, %v108
  %v134 = vpack.c.b16 %v111, %v110
  %v135 = vpack.c.b16 %v113, %v112
  %v136 = vpack.c.b16 %v115, %v114
  %v137 = vpack.c.b16 %v117, %v116
  %v138 = vpack.c.b16 %v119, %v118
  %v139 = vpack.c.b16 %v121, %v120
  %v140 = vpack.c.b16 %v123, %v122
  %v141 = vpack.c.b16 %v125, %v124
  %158 = vmatprep.subr.bf16.mxu0 0
  %159 = vmatpush1.bf16.msra.mxu0 %v126
  %160 = vmatprep.subr.bf16.mxu0 0
  %161 = vmatpush1.bf16.msra.mxu0 %v127
  %162 = vmatprep.subr.bf16.mxu0 0
  %163 = vmatpush1.bf16.msra.mxu0 %v128
  %164 = vmatprep.subr.bf16.mxu0 0
  %165 = vmatpush1.bf16.msra.mxu0 %v129
  %166 = vmatprep.subr.bf16.mxu0 0
  %167 = vmatpush1.bf16.msra.mxu0 %v130
  %168 = vmatprep.subr.bf16.mxu0 0
  %169 = vmatpush1.bf16.msra.mxu0 %v131
  %170 = vmatprep.subr.bf16.mxu0 0
  %171 = vmatpush1.bf16.msra.mxu0 %v132
  %172 = vmatprep.subr.bf16.mxu0 0
  %173 = vmatpush1.bf16.msra.mxu0 %v133
  %174 = vmatprep.subr.bf16.mxu0 0
  %175 = vmatpush1.bf16.msra.mxu0 %v134
  %176 = vmatprep.subr.bf16.mxu0 0
  %177 = vmatpush1.bf16.msra.mxu0 %v135
  %178 = vmatprep.subr.bf16.mxu0 0
  %179 = vmatpush1.bf16.msra.mxu0 %v136
  %180 = vmatprep.subr.bf16.mxu0 0
  %181 = vmatpush1.bf16.msra.mxu0 %v137
  %182 = vmatprep.subr.bf16.mxu0 0
  %183 = vmatpush1.bf16.msra.mxu0 %v138
  %184 = vmatprep.subr.bf16.mxu0 0
  %185 = vmatpush1.bf16.msra.mxu0 %v139
  %186 = vmatprep.subr.bf16.mxu0 0
  %187 = vmatpush1.bf16.msra.mxu0 %v140
  %188 = vmatprep.subr.bf16.mxu0 0
  %189 = vmatpush1.bf16.msra.mxu0 %v141
  %190 = vmatprep.mubr.bf16.mxu0 %v59
  %191 = vmatmul.mubr.bf16.gmra.mrb[0].mxu0 %v58
  %v192 = vpop.f32.mrb[0].mxu0
  %v193 = vadd.f32 %v53, %v192
  %v194 = vpop.f32.mrb[0].mxu0
  %v195 = vpop.f32.mrb[0].mxu0
  %v196 = vpop.f32.mrb[0].mxu0
  %197 = vdwg.mxu0
  %198 = vst [vmem:[%s3] sm:$0xff] %v193
  // Predicated region
  $region14: #{rnn_forward.10} parent=0 // pred_check
    _
  $region15: #{rnn_forward.10} parent=0 // pred_check_branch
    %200 = sbr.rel (0) target = $region17
  $region16: #{rnn_forward.10} parent=0 // pred_region
    _
  $region17: #{rnn_forward.10} parent=0 // pred_fallthru
    _
  // Predicated region
  $region18: #{rnn_forward.10} parent=0 // pred_check
    _
  $region19: #{rnn_forward.10} parent=0 // pred_check_branch
    %202 = sbr.rel (0) target = $region21
  $region20: #{rnn_forward.10} parent=0 // pred_region
    _
  $region21: #{rnn_forward.10} parent=0 // pred_fallthru
    _

// kernel: rnn_forward.11
$region0: #{rnn_forward.11}
  #allocation0 [shape = 'u32[]', space=smem, size = 0x4, offset = 0x4, fixed_abs, tag = 'smem constant byte address 0x4 - core index']
  #allocation1 [shape = 'u32[144,128]{1,0:T(1,128)}', space=vmem, size = 0x12000, scoped, tag = 'internal scratch']
  %s0 = inlined_call_operand.vmem [shape: bf16[64,128], index: 0, kind: input, shape index: {}]
  %s1 = inlined_call_operand.vmem [shape: bf16[128,128], index: 1, kind: input, shape index: {}]
  %s2 = inlined_call_operand.vmem [shape: f32[1,128], index: 2, kind: input, shape index: {}]
  %s3 = inlined_call_operand.vmem [shape: f32[64,128], index: 3, kind: output, shape index: {}]
  %s4 = sld [smem:[#allocation0]]
  $region22: #{rnn_forward.11} parent=0
    _
  %s6 = ssub.s32 1, %s4
  %s7 = scalar_select 0, %s6, %s4
  // Predicated region
  $region2: #{rnn_forward.11} parent=0 // pred_check
    _
  $region3: #{rnn_forward.11} parent=0 // pred_check_branch
    %9 = sbr.rel (0) target = $region5
  $region4: #{rnn_forward.11} parent=0 // pred_region
    _
  $region5: #{rnn_forward.11} parent=0 // pred_fallthru
    _
  // Predicated region
  $region6: #{rnn_forward.11} parent=0 // pred_check
    _
  $region7: #{rnn_forward.11} parent=0 // pred_check_branch
    %11 = sbr.rel (0) target = $region9
  $region8: #{rnn_forward.11} parent=0 // pred_region
    _
  $region9: #{rnn_forward.11} parent=0 // pred_fallthru
    _
  // Predicated region
  $region10: #{rnn_forward.11} parent=0 // pred_check
    _
  $region11: #{rnn_forward.11} parent=0 // pred_check_branch
    %13 = sbr.rel (0) target = $region13
  $region12: #{rnn_forward.11} parent=0 // pred_region
    _
  $region13: #{rnn_forward.11} parent=0 // pred_fallthru
    _
  %v15 = vld [vmem:[%s0] sm:$0xf]
  %v16 = vld [vmem:[%s0 + $0x4] sm:$0xf]
  %v17 = vld [vmem:[%s0 + $0x8] sm:$0xf]
  %v18 = vld [vmem:[%s0 + $0xc] sm:$0xf]
  %v19 = vld [vmem:[%s0 + $0x10] sm:$0xf]
  %v20 = vld [vmem:[%s0 + $0x14] sm:$0xf]
  %v21 = vld [vmem:[%s0 + $0x18] sm:$0xf]
  %v22 = vld [vmem:[%s0 + $0x1c] sm:$0xf]
  %v23 = vld [vmem:[%s1] sm:$0xf]
  %v24 = vld [vmem:[%s1 + $0x4] sm:$0xf]
  %v25 = vld [vmem:[%s1 + $0x8] sm:$0xf]
  %v26 = vld [vmem:[%s1 + $0xc] sm:$0xf]
  %v27 = vld [vmem:[%s1 + $0x10] sm:$0xf]
  %v28 = vld [vmem:[%s1 + $0x14] sm:$0xf]
  %v29 = vld [vmem:[%s1 + $0x18] sm:$0xf]
  %v30 = vld [vmem:[%s1 + $0x1c] sm:$0xf]
  %v31 = vld [vmem:[%s1 + $0x20] sm:$0xf]
  %v32 = vld [vmem:[%s1 + $0x24] sm:$0xf]
  %v33 = vld [vmem:[%s1 + $0x28] sm:$0xf]
  %v34 = vld [vmem:[%s1 + $0x2c] sm:$0xf]
  %v35 = vld [vmem:[%s1 + $0x30] sm:$0xf]
  %v36 = vld [vmem:[%s1 + $0x34] sm:$0xf]
  %v37 = vld [vmem:[%s1 + $0x38] sm:$0xf]
  %v38 = vld [vmem:[%s1 + $0x3c] sm:$0xf]
  %v39 = vld [vmem:[%s2] sm:$0x1]
  %v41 = vlaneseq
  %v42 = vshrl.u32 %v41, 7
  %v43 = vsub.s32 0, %v42
  %v44 = vrot.slane %v39, %v43
  %v54 = vunpack.c.l.b16 %v15
  %v55 = vunpack.c.l.b16 %v16
  %v56 = vunpack.c.l.b16 %v17
  %v57 = vunpack.c.l.b16 %v18
  %v58 = vunpack.c.l.b16 %v19
  %v59 = vunpack.c.l.b16 %v20
  %v60 = vunpack.c.l.b16 %v21
  %v61 = vunpack.c.l.b16 %v22
  %v62 = vpack.c.b16 %v55, %v54
  %v63 = vpack.c.b16 %v57, %v56
  %v64 = vpack.c.b16 %v59, %v58
  %v65 = vpack.c.b16 %v61, %v60
  %v86 = vunpack.c.l.b16 %v23
  %v87 = vunpack.c.l.b16 %v24
  %v88 = vunpack.c.l.b16 %v25
  %v89 = vunpack.c.l.b16 %v26
  %v90 = vunpack.c.l.b16 %v27
  %v91 = vunpack.c.l.b16 %v28
  %v92 = vunpack.c.l.b16 %v29
  %v93 = vunpack.c.l.b16 %v30
  %v94 = vunpack.c.l.b16 %v31
  %v95 = vunpack.c.l.b16 %v32
  %v96 = vunpack.c.l.b16 %v33
  %v97 = vunpack.c.l.b16 %v34
  %v98 = vunpack.c.l.b16 %v35
  %v99 = vunpack.c.l.b16 %v36
  %v100 = vunpack.c.l.b16 %v37
  %v101 = vunpack.c.l.b16 %v38
  %v102 = vpack.c.b16 %v87, %v86
  %v103 = vpack.c.b16 %v89, %v88
  %v104 = vpack.c.b16 %v91, %v90
  %v105 = vpack.c.b16 %v93, %v92
  %v106 = vpack.c.b16 %v95, %v94
  %v107 = vpack.c.b16 %v97, %v96
  %v108 = vpack.c.b16 %v99, %v98
  %v109 = vpack.c.b16 %v101, %v100
  %118 = vmatprep.subr.bf16.mxu0 0
  %119 = vmatpush1.bf16.msra.mxu0 %v102
  %120 = vmatprep.subr.bf16.mxu0 0
  %121 = vmatpush1.bf16.msra.mxu0 %v103
  %122 = vmatprep.subr.bf16.mxu0 0
  %123 = vmatpush1.bf16.msra.mxu0 %v104
  %124 = vmatprep.subr.bf16.mxu0 0
  %125 = vmatpush1.bf16.msra.mxu0 %v105
  %126 = vmatprep.subr.bf16.mxu0 0
  %127 = vmatpush1.bf16.msra.mxu0 %v106
  %128 = vmatprep.subr.bf16.mxu0 0
  %129 = vmatpush1.bf16.msra.mxu0 %v107
  %130 = vmatprep.subr.bf16.mxu0 0
  %131 = vmatpush1.bf16.msra.mxu0 %v108
  %132 = vmatprep.subr.bf16.mxu0 0
  %133 = vmatpush1.bf16.msra.mxu0 %v109
  %134 = vmatprep.subr.bf16.mxu0 0
  %135 = vmatpush1.bf16.msra.mxu0 0
  %136 = vmatprep.subr.bf16.mxu0 0
  %137 = vmatpush1.bf16.msra.mxu0 0
  %138 = vmatprep.subr.bf16.mxu0 0
  %139 = vmatpush1.bf16.msra.mxu0 0
  %140 = vmatprep.subr.bf16.mxu0 0
  %141 = vmatpush1.bf16.msra.mxu0 0
  %142 = vmatprep.subr.bf16.mxu0 0
  %143 = vmatpush1.bf16.msra.mxu0 0
  %144 = vmatprep.subr.bf16.mxu0 0
  %145 = vmatpush1.bf16.msra.mxu0 0
  %146 = vmatprep.subr.bf16.mxu0 0
  %147 = vmatpush1.bf16.msra.mxu0 0
  %148 = vmatprep.subr.bf16.mxu0 0
  %149 = vmatpush1.bf16.msra.mxu0 0
  %150 = vmatprep.mubr.bf16.mxu0 0
  %151 = vmatmul.mubr.bf16.gmra.mrb[0].mxu0 %v62
  %v152 = vpop.f32.mrb[0].mxu0
  %v153 = vadd.f32 %v44, %v152
  %v154 = vpop.f32.mrb[0].mxu0
  %v155 = vpop.f32.mrb[0].mxu0
  %v156 = vadd.f32 %v44, %v155
  %v157 = vpop.f32.mrb[0].mxu0
  %158 = vmatprep.mubr.bf16.mxu0 0
  %159 = vmatmul.mubr.bf16.gmra.mrb[0].mxu0 %v63
  %v160 = vpop.f32.mrb[0].mxu0
  %v161 = vadd.f32 %v44, %v160
  %v162 = vpop.f32.mrb[0].mxu0
  %v163 = vpop.f32.mrb[0].mxu0
  %v164 = vadd.f32 %v44, %v163
  %v165 = vpop.f32.mrb[0].mxu0
  %166 = vmatprep.mubr.bf16.mxu0 0
  %167 = vmatmul.mubr.bf16.gmra.mrb[0].mxu0 %v64
  %v168 = vpop.f32.mrb[0].mxu0
  %v169 = vadd.f32 %v44, %v168
  %v170 = vpop.f32.mrb[0].mxu0
  %v171 = vpop.f32.mrb[0].mxu0
  %v172 = vadd.f32 %v44, %v171
  %v173 = vpop.f32.mrb[0].mxu0
  %174 = vmatprep.mubr.bf16.mxu0 0
  %175 = vmatmul.mubr.bf16.gmra.mrb[0].mxu0 %v65
  %v176 = vpop.f32.mrb[0].mxu0
  %v177 = vadd.f32 %v44, %v176
  %v178 = vpop.f32.mrb[0].mxu0
  %v179 = vpop.f32.mrb[0].mxu0
  %v180 = vadd.f32 %v44, %v179
  %v181 = vpop.f32.mrb[0].mxu0
  %182 = vdwg.mxu0
  %183 = vst [vmem:[%s3] sm:$0xff] %v153
  %184 = vst [vmem:[%s3 + $0x8] sm:$0xff] %v156
  %185 = vst [vmem:[%s3 + $0x10] sm:$0xff] %v161
  %186 = vst [vmem:[%s3 + $0x18] sm:$0xff] %v164
  %187 = vst [vmem:[%s3 + $0x20] sm:$0xff] %v169
  %188 = vst [vmem:[%s3 + $0x28] sm:$0xff] %v172
  %189 = vst [vmem:[%s3 + $0x30] sm:$0xff] %v177
  %190 = vst [vmem:[%s3 + $0x38] sm:$0xff] %v180
  // Predicated region
  $region14: #{rnn_forward.11} parent=0 // pred_check
    _
  $region15: #{rnn_forward.11} parent=0 // pred_check_branch
    %192 = sbr.rel (0) target = $region17
  $region16: #{rnn_forward.11} parent=0 // pred_region
    _
  $region17: #{rnn_forward.11} parent=0 // pred_fallthru
    _
  // Predicated region
  $region18: #{rnn_forward.11} parent=0 // pred_check
    _
  $region19: #{rnn_forward.11} parent=0 // pred_check_branch
    %194 = sbr.rel (0) target = $region21
  $region20: #{rnn_forward.11} parent=0 // pred_region
    _
  $region21: #{rnn_forward.11} parent=0 // pred_fallthru
    _

// kernel: rnn_forward.7
$region0: #{rnn_forward.7}
  #allocation0 [shape = 'u32[]', space=smem, size = 0x4, offset = 0x4, fixed_abs, tag = 'smem constant byte address 0x4 - core index']
  #allocation1 [shape = 'u32[144,128]{1,0:T(1,128)}', space=vmem, size = 0x12000, scoped, tag = 'internal scratch']
  %s0 = inlined_call_operand.vmem [shape: bf16[8,8,512], index: 0, kind: input, shape index: {}]
  %s1 = inlined_call_operand.vmem [shape: s32[8,1], index: 1, kind: input, shape index: {}]
  %s2 = inlined_call_operand.vmem [shape: bf16[128,512], index: 2, kind: input, shape index: {}]
  %s3 = inlined_call_operand.vmem [shape: bf16[8,8,128], index: 3, kind: output, shape index: {0}]
  %s4 = inlined_call_operand.vmem [shape: f32[8,128], index: 4, kind: output, shape index: {1}]
  %s5 = inlined_call_operand.vmem [shape: f32[8,128], index: 5, kind: output, shape index: {2}]
  %6 = xla_tuple %s3, %s4, %s5
  %s7 = sld [smem:[#allocation0]]
  $region42: #{rnn_forward.7} parent=0
    _
  %s9 = ssub.s32 1, %s7
  %s10 = scalar_select 0, %s9, %s7
  // Predicated region
  $region2: #{rnn_forward.7} parent=0 // pred_check
    _
  $region3: #{rnn_forward.7} parent=0 // pred_check_branch
    %12 = sbr.rel (0) target = $region5
  $region4: #{rnn_forward.7} parent=0 // pred_region
    _
  $region5: #{rnn_forward.7} parent=0 // pred_fallthru
    _
  // Predicated region
  $region6: #{rnn_forward.7} parent=0 // pred_check
    _
  $region7: #{rnn_forward.7} parent=0 // pred_check_branch
    %14 = sbr.rel (0) target = $region9
  $region8: #{rnn_forward.7} parent=0 // pred_region
    _
  $region9: #{rnn_forward.7} parent=0 // pred_fallthru
    _
  // Predicated region
  $region10: #{rnn_forward.7} parent=0 // pred_check
    _
  $region11: #{rnn_forward.7} parent=0 // pred_check_branch
    %16 = sbr.rel (0) target = $region13
  $region12: #{rnn_forward.7} parent=0 // pred_region
    _
  $region13: #{rnn_forward.7} parent=0 // pred_fallthru
    _
  %p18 = scmp.eq.s32.totalorder 0, 0
  // Predicated region
  $region14: #{rnn_forward.7} parent=0 // pred_check
    %p19 = pneg %p18
  $region15: #{rnn_forward.7} parent=0 // pred_check_branch
    %21 = sbr.rel (%p19) target = $region17
  $region16: #{rnn_forward.7} parent=0 // pred_region
    %22 = vst [vmem:[%s4] sm:$0xff] 0.0
    %23 = vst [vmem:[%s5] sm:$0xff] 0.0
  $region17: #{rnn_forward.7} parent=0 // pred_fallthru
    _
  %s24 = smul.u32 0, 8
  %v25 = vld [vmem:[%s1] sm:$0xff]
  %v26 = vld [vmem:[%s4] sm:$0xff]
  %v27 = vld [vmem:[%s5] sm:$0xff]
  %v28 = vld [vmem:[%s0] sm:$0xff]
  %v29 = vld [vmem:[%s0 + $0x8] sm:$0xff]
  %v30 = vunpack.c.l.bf16 %v28
  %v31 = vunpack.c.h.bf16 %v28
  %v32 = vunpack.c.l.bf16 %v29
  %v33 = vunpack.c.h.bf16 %v29
  %v34 = vpack.c.bf16 %v26, %v26
  %v35 = vld [vmem:[%s2] sm:$0xff]
  %v36 = vld [vmem:[%s2 + $0x8] sm:$0xff]
  %v37 = vld [vmem:[%s2 + $0x10] sm:$0xff]
  %v38 = vld [vmem:[%s2 + $0x18] sm:$0xff]
  %v39 = vld [vmem:[%s2 + $0x20] sm:$0xff]
  %v40 = vld [vmem:[%s2 + $0x28] sm:$0xff]
  %v41 = vld [vmem:[%s2 + $0x30] sm:$0xff]
  %v42 = vld [vmem:[%s2 + $0x38] sm:$0xff]
  %v43 = vld [vmem:[%s2 + $0x40] sm:$0xff]
  %v44 = vld [vmem:[%s2 + $0x48] sm:$0xff]
  %v45 = vld [vmem:[%s2 + $0x50] sm:$0xff]
  %v46 = vld [vmem:[%s2 + $0x58] sm:$0xff]
  %v47 = vld [vmem:[%s2 + $0x60] sm:$0xff]
  %v48 = vld [vmem:[%s2 + $0x68] sm:$0xff]
  %v49 = vld [vmem:[%s2 + $0x70] sm:$0xff]
  %v50 = vld [vmem:[%s2 + $0x78] sm:$0xff]
  %v51 = vld [vmem:[%s2 + $0x80] sm:$0xff]
  %v52 = vld [vmem:[%s2 + $0x88] sm:$0xff]
  %v53 = vld [vmem:[%s2 + $0x90] sm:$0xff]
  %v54 = vld [vmem:[%s2 + $0x98] sm:$0xff]
  %v55 = vld [vmem:[%s2 + $0xa0] sm:$0xff]
  %v56 = vld [vmem:[%s2 + $0xa8] sm:$0xff]
  %v57 = vld [vmem:[%s2 + $0xb0] sm:$0xff]
  %v58 = vld [vmem:[%s2 + $0xb8] sm:$0xff]
  %v59 = vld [vmem:[%s2 + $0xc0] sm:$0xff]
  %v60 = vld [vmem:[%s2 + $0xc8] sm:$0xff]
  %v61 = vld [vmem:[%s2 + $0xd0] sm:$0xff]
  %v62 = vld [vmem:[%s2 + $0xd8] sm:$0xff]
  %v63 = vld [vmem:[%s2 + $0xe0] sm:$0xff]
  %v64 = vld [vmem:[%s2 + $0xe8] sm:$0xff]
  %v65 = vld [vmem:[%s2 + $0xf0] sm:$0xff]
  %v66 = vld [vmem:[%s2 + $0xf8] sm:$0xff]
  %v99 = vunpack.c.l.b16 %v35
  %v100 = vunpack.c.h.b16 %v35
  %v101 = vunpack.c.l.b16 %v36
  %v102 = vunpack.c.h.b16 %v36
  %v103 = vunpack.c.l.b16 %v37
  %v104 = vunpack.c.h.b16 %v37
  %v105 = vunpack.c.l.b16 %v38
  %v106 = vunpack.c.h.b16 %v38
  %v107 = vunpack.c.l.b16 %v39
  %v108 = vunpack.c.h.b16 %v39
  %v109 = vunpack.c.l.b16 %v40
  %v110 = vunpack.c.h.b16 %v40
  %v111 = vunpack.c.l.b16 %v41
  %v112 = vunpack.c.h.b16 %v41
  %v113 = vunpack.c.l.b16 %v42
  %v114 = vunpack.c.h.b16 %v42
  %v115 = vunpack.c.l.b16 %v43
  %v116 = vunpack.c.h.b16 %v43
  %v117 = vunpack.c.l.b16 %v44
  %v118 = vunpack.c.h.b16 %v44
  %v119 = vunpack.c.l.b16 %v45
  %v120 = vunpack.c.h.b16 %v45
  %v121 = vunpack.c.l.b16 %v46
  %v122 = vunpack.c.h.b16 %v46
  %v123 = vunpack.c.l.b16 %v47
  %v124 = vunpack.c.h.b16 %v47
  %v125 = vunpack.c.l.b16 %v48
  %v126 = vunpack.c.h.b16 %v48
  %v127 = vunpack.c.l.b16 %v49
  %v128 = vunpack.c.h.b16 %v49
  %v129 = vunpack.c.l.b16 %v50
  %v130 = vunpack.c.h.b16 %v50
  %v131 = vunpack.c.l.b16 %v51
  %v132 = vunpack.c.h.b16 %v51
  %v133 = vunpack.c.l.b16 %v52
  %v134 = vunpack.c.h.b16 %v52
  %v135 = vunpack.c.l.b16 %v53
  %v136 = vunpack.c.h.b16 %v53
  %v137 = vunpack.c.l.b16 %v54
  %v138 = vunpack.c.h.b16 %v54
  %v139 = vunpack.c.l.b16 %v55
  %v140 = vunpack.c.h.b16 %v55
  %v141 = vunpack.c.l.b16 %v56
  %v142 = vunpack.c.h.b16 %v56
  %v143 = vunpack.c.l.b16 %v57
  %v144 = vunpack.c.h.b16 %v57
  %v145 = vunpack.c.l.b16 %v58
  %v146 = vunpack.c.h.b16 %v58
  %v147 = vunpack.c.l.b16 %v59
  %v148 = vunpack.c.h.b16 %v59
  %v149 = vunpack.c.l.b16 %v60
  %v150 = vunpack.c.h.b16 %v60
  %v151 = vunpack.c.l.b16 %v61
  %v152 = vunpack.c.h.b16 %v61
  %v153 = vunpack.c.l.b16 %v62
  %v154 = vunpack.c.h.b16 %v62
  %v155 = vunpack.c.l.b16 %v63
  %v156 = vunpack.c.h.b16 %v63
  %v157 = vunpack.c.l.b16 %v64
  %v158 = vunpack.c.h.b16 %v64
  %v159 = vunpack.c.l.b16 %v65
  %v160 = vunpack.c.h.b16 %v65
  %v161 = vunpack.c.l.b16 %v66
  %v162 = vunpack.c.h.b16 %v66
  %v163 = vpack.c.b16 %v103, %v99
  %v164 = vpack.c.b16 %v104, %v100
  %v165 = vpack.c.b16 %v105, %v101
  %v166 = vpack.c.b16 %v106, %v102
  %v167 = vpack.c.b16 %v111, %v107
  %v168 = vpack.c.b16 %v112, %v108
  %v169 = vpack.c.b16 %v113, %v109
  %v170 = vpack.c.b16 %v114, %v110
  %v171 = vpack.c.b16 %v119, %v115
  %v172 = vpack.c.b16 %v120, %v116
  %v173 = vpack.c.b16 %v121, %v117
  %v174 = vpack.c.b16 %v122, %v118
  %v175 = vpack.c.b16 %v127, %v123
  %v176 = vpack.c.b16 %v128, %v124
  %v177 = vpack.c.b16 %v129, %v125
  %v178 = vpack.c.b16 %v130, %v126
  %v179 = vpack.c.b16 %v135, %v131
  %v180 = vpack.c.b16 %v136, %v132
  %v181 = vpack.c.b16 %v137, %v133
  %v182 = vpack.c.b16 %v138, %v134
  %v183 = vpack.c.b16 %v143, %v139
  %v184 = vpack.c.b16 %v144, %v140
  %v185 = vpack.c.b16 %v145, %v141
  %v186 = vpack.c.b16 %v146, %v142
  %v187 = vpack.c.b16 %v151, %v147
  %v188 = vpack.c.b16 %v152, %v148
  %v189 = vpack.c.b16 %v153, %v149
  %v190 = vpack.c.b16 %v154, %v150
  %v191 = vpack.c.b16 %v159, %v155
  %v192 = vpack.c.b16 %v160, %v156
  %v193 = vpack.c.b16 %v161, %v157
  %v194 = vpack.c.b16 %v162, %v158
  %227 = vmatprep.subr.bf16.mxu0 %v164
  %228 = vmatpush1.bf16.msra.mxu0 %v163
  %229 = vmatprep.subr.bf16.mxu0 %v168
  %230 = vmatpush1.bf16.msra.mxu0 %v167
  %231 = vmatprep.subr.bf16.mxu0 %v172
  %232 = vmatpush1.bf16.msra.mxu0 %v171
  %233 = vmatprep.subr.bf16.mxu0 %v176
  %234 = vmatpush1.bf16.msra.mxu0 %v175
  %235 = vmatprep.subr.bf16.mxu0 %v180
  %236 = vmatpush1.bf16.msra.mxu0 %v179
  %237 = vmatprep.subr.bf16.mxu0 %v184
  %238 = vmatpush1.bf16.msra.mxu0 %v183
  %239 = vmatprep.subr.bf16.mxu0 %v188
  %240 = vmatpush1.bf16.msra.mxu0 %v187
  %241 = vmatprep.subr.bf16.mxu0 %v192
  %242 = vmatpush1.bf16.msra.mxu0 %v191
  %243 = vmatprep.subr.bf16.mxu0 0
  %244 = vmatpush1.bf16.msra.mxu0 0
  %245 = vmatprep.subr.bf16.mxu0 0
  %246 = vmatpush1.bf16.msra.mxu0 0
  %247 = vmatprep.subr.bf16.mxu0 0
  %248 = vmatpush1.bf16.msra.mxu0 0
  %249 = vmatprep.subr.bf16.mxu0 0
  %250 = vmatpush1.bf16.msra.mxu0 0
  %251 = vmatprep.subr.bf16.mxu0 0
  %252 = vmatpush1.bf16.msra.mxu0 0
  %253 = vmatprep.subr.bf16.mxu0 0
  %254 = vmatpush1.bf16.msra.mxu0 0
  %255 = vmatprep.subr.bf16.mxu0 0
  %256 = vmatpush1.bf16.msra.mxu0 0
  %257 = vmatprep.subr.bf16.mxu0 0
  %258 = vmatpush1.bf16.msra.mxu0 0
  %259 = vmatprep.mubr.bf16.mxu0 0
  %260 = vmatmul.mubr.bf16.gmra.mrb[0].mxu0 %v34
  %v261 = vpop.f32.mrb[0].mxu0
  %v262 = vadd.f32 0.0, %v261
  %v263 = vpop.f32.mrb[0].mxu0
  %v264 = vadd.f32 0.0, %v263
  %v265 = vpop.f32.mrb[0].mxu0
  %v266 = vpop.f32.mrb[0].mxu0
  %267 = vdwg.mxu0
  %268 = vmatprep.subr.bf16.mxu0 %v166
  %269 = vmatpush1.bf16.msra.mxu0 %v165
  %270 = vmatprep.subr.bf16.mxu0 %v170
  %271 = vmatpush1.bf16.msra.mxu0 %v169
  %272 = vmatprep.subr.bf16.mxu0 %v174
  %273 = vmatpush1.bf16.msra.mxu0 %v173
  %274 = vmatprep.subr.bf16.mxu0 %v178
  %275 = vmatpush1.bf16.msra.mxu0 %v177
  %276 = vmatprep.subr.bf16.mxu0 %v182
  %277 = vmatpush1.bf16.msra.mxu0 %v181
  %278 = vmatprep.subr.bf16.mxu0 %v186
  %279 = vmatpush1.bf16.msra.mxu0 %v185
  %280 = vmatprep.subr.bf16.mxu0 %v190
  %281 = vmatpush1.bf16.msra.mxu0 %v189
  %282 = vmatprep.subr.bf16.mxu0 %v194
  %283 = vmatpush1.bf16.msra.mxu0 %v193
  %284 = vmatprep.subr.bf16.mxu0 0
  %285 = vmatpush1.bf16.msra.mxu0 0
  %286 = vmatprep.subr.bf16.mxu0 0
  %287 = vmatpush1.bf16.msra.mxu0 0
  %288 = vmatprep.subr.bf16.mxu0 0
  %289 = vmatpush1.bf16.msra.mxu0 0
  %290 = vmatprep.subr.bf16.mxu0 0
  %291 = vmatpush1.bf16.msra.mxu0 0
  %292 = vmatprep.subr.bf16.mxu0 0
  %293 = vmatpush1.bf16.msra.mxu0 0
  %294 = vmatprep.subr.bf16.mxu0 0
  %295 = vmatpush1.bf16.msra.mxu0 0
  %296 = vmatprep.subr.bf16.mxu0 0
  %297 = vmatpush1.bf16.msra.mxu0 0
  %298 = vmatprep.subr.bf16.mxu0 0
  %299 = vmatpush1.bf16.msra.mxu0 0
  %300 = vmatprep.mubr.bf16.mxu0 0
  %301 = vmatmul.mubr.bf16.gmra.mrb[0].mxu0 %v34
  %v302 = vpop.f32.mrb[0].mxu0
  %v303 = vadd.f32 0.0, %v302
  %v304 = vpop.f32.mrb[0].mxu0
  %v305 = vadd.f32 0.0, %v304
  %v306 = vpop.f32.mrb[0].mxu0
  %v307 = vpop.f32.mrb[0].mxu0
  %308 = vdwg.mxu0
  %v309 = vadd.f32 %v30, %v262
  %v310 = vadd.f32 %v31, %v264
  %v311 = vadd.f32 %v32, %v303
  %v312 = vadd.f32 %v33, %v305
  %v313 = vmul.f32 %v309, 0.5
  %v314 = vmul.f32 %v310, 0.5
  %v315 = vmul.f32 %v311, 0.5
  %v316 = vtanh.pop %v313
  %v317 = vtanh.pop %v314
  %v318 = vtanh.pop %v315
  %v319 = vmul.f32 %v316, 0.5
  %v320 = vmul.f32 %v317, 0.5
  %v321 = vmul.f32 %v318, 0.5
  %v322 = vadd.f32 %v319, 0.5
  %v323 = vadd.f32 %v320, 0.5
  %v324 = vadd.f32 %v321, 0.5
  %v325 = vtanh.pop %v312
  %v326 = vmul.f32 %v323, %v27
  %v327 = vmul.f32 %v322, %v325
  %v328 = vadd.f32 %v326, %v327
  %v329 = vtanh.pop %v328
  %v330 = vmul.f32 %v324, %v329
  %v331 = vstv %s24
  %vm332 = vcmp.lt.s32.totalorder %v331, %v25
  %v333 = vsel %vm332, 1, 0
  %334 = vset.pattern.permute.xlu0 0
  %335 = vperm.xlu0 %334, %v333
  %v336 = vpop.permute.xlu0 %335
  %vm337 = vcmp.eq.s32.totalorder %v336, 1
  %v338 = vsel %vm337, %v330, 0.0
  %v339 = vpack.c.bf16 %v338, %v338
  %340 = vst [vmem:[%s3] sm:$0xf] %v339
  %v341 = vsel %vm337, %v330, %v26
  %v342 = vsel %vm337, %v328, %v27
  %s343 = scalar_lea.vmem %s0, 16
  %v344 = vld [vmem:[%s343] sm:$0xff]
  %v345 = vld [vmem:[%s343 + $0x8] sm:$0xff]
  %v346 = vunpack.c.l.bf16 %v344
  %v347 = vunpack.c.h.bf16 %v344
  %v348 = vunpack.c.l.bf16 %v345
  %v349 = vunpack.c.h.bf16 %v345
  %v350 = vpack.c.bf16 %v341, %v341
  %v351 = vld [vmem:[%s2] sm:$0xff]
  %v352 = vld [vmem:[%s2 + $0x8] sm:$0xff]
  %v353 = vld [vmem:[%s2 + $0x10] sm:$0xff]
  %v354 = vld [vmem:[%s2 + $0x18] sm:$0xff]
  %v355 = vld [vmem:[%s2 + $0x20] sm:$0xff]
  %v356 = vld [vmem:[%s2 + $0x28] sm:$0xff]
  %v357 = vld [vmem:[%s2 + $0x30] sm:$0xff]
  %v358 = vld [vmem:[%s2 + $0x38] sm:$0xff]
  %v359 = vld [vmem:[%s2 + $0x40] sm:$0xff]
  %v360 = vld [vmem:[%s2 + $0x48] sm:$0xff]
  %v361 = vld [vmem:[%s2 + $0x50] sm:$0xff]
  %v362 = vld [vmem:[%s2 + $0x58] sm:$0xff]
  %v363 = vld [vmem:[%s2 + $0x60] sm:$0xff]
  %v364 = vld [vmem:[%s2 + $0x68] sm:$0xff]
  %v365 = vld [vmem:[%s2 + $0x70] sm:$0xff]
  %v366 = vld [vmem:[%s2 + $0x78] sm:$0xff]
  %v367 = vld [vmem:[%s2 + $0x80] sm:$0xff]
  %v368 = vld [vmem:[%s2 + $0x88] sm:$0xff]
  %v369 = vld [vmem:[%s2 + $0x90] sm:$0xff]
  %v370 = vld [vmem:[%s2 + $0x98] sm:$0xff]
  %v371 = vld [vmem:[%s2 + $0xa0] sm:$0xff]
  %v372 = vld [vmem:[%s2 + $0xa8] sm:$0xff]
  %v373 = vld [vmem:[%s2 + $0xb0] sm:$0xff]
  %v374 = vld [vmem:[%s2 + $0xb8] sm:$0xff]
  %v375 = vld [vmem:[%s2 + $0xc0] sm:$0xff]
  %v376 = vld [vmem:[%s2 + $0xc8] sm:$0xff]
  %v377 = vld [vmem:[%s2 + $0xd0] sm:$0xff]
  %v378 = vld [vmem:[%s2 + $0xd8] sm:$0xff]
  %v379 = vld [vmem:[%s2 + $0xe0] sm:$0xff]
  %v380 = vld [vmem:[%s2 + $0xe8] sm:$0xff]
  %v381 = vld [vmem:[%s2 + $0xf0] sm:$0xff]
  %v382 = vld [vmem:[%s2 + $0xf8] sm:$0xff]
  %v415 = vunpack.c.l.b16 %v351
  %v416 = vunpack.c.h.b16 %v351
  %v417 = vunpack.c.l.b16 %v352
  %v418 = vunpack.c.h.b16 %v352
  %v419 = vunpack.c.l.b16 %v353
  %v420 = vunpack.c.h.b16 %v353
  %v421 = vunpack.c.l.b16 %v354
  %v422 = vunpack.c.h.b16 %v354
  %v423 = vunpack.c.l.b16 %v355
  %v424 = vunpack.c.h.b16 %v355
  %v425 = vunpack.c.l.b16 %v356
  %v426 = vunpack.c.h.b16 %v356
  %v427 = vunpack.c.l.b16 %v357
  %v428 = vunpack.c.h.b16 %v357
  %v429 = vunpack.c.l.b16 %v358
  %v430 = vunpack.c.h.b16 %v358
  %v431 = vunpack.c.l.b16 %v359
  %v432 = vunpack.c.h.b16 %v359
  %v433 = vunpack.c.l.b16 %v360
  %v434 = vunpack.c.h.b16 %v360
  %v435 = vunpack.c.l.b16 %v361
  %v436 = vunpack.c.h.b16 %v361
  %v437 = vunpack.c.l.b16 %v362
  %v438 = vunpack.c.h.b16 %v362
  %v439 = vunpack.c.l.b16 %v363
  %v440 = vunpack.c.h.b16 %v363
  %v441 = vunpack.c.l.b16 %v364
  %v442 = vunpack.c.h.b16 %v364
  %v443 = vunpack.c.l.b16 %v365
  %v444 = vunpack.c.h.b16 %v365
  %v445 = vunpack.c.l.b16 %v366
  %v446 = vunpack.c.h.b16 %v366
  %v447 = vunpack.c.l.b16 %v367
  %v448 = vunpack.c.h.b16 %v367
  %v449 = vunpack.c.l.b16 %v368
  %v450 = vunpack.c.h.b16 %v368
  %v451 = vunpack.c.l.b16 %v369
  %v452 = vunpack.c.h.b16 %v369
  %v453 = vunpack.c.l.b16 %v370
  %v454 = vunpack.c.h.b16 %v370
  %v455 = vunpack.c.l.b16 %v371
  %v456 = vunpack.c.h.b16 %v371
  %v457 = vunpack.c.l.b16 %v372
  %v458 = vunpack.c.h.b16 %v372
  %v459 = vunpack.c.l.b16 %v373
  %v460 = vunpack.c.h.b16 %v373
  %v461 = vunpack.c.l.b16 %v374
  %v462 = vunpack.c.h.b16 %v374
  %v463 = vunpack.c.l.b16 %v375
  %v464 = vunpack.c.h.b16 %v375
  %v465 = vunpack.c.l.b16 %v376
  %v466 = vunpack.c.h.b16 %v376
  %v467 = vunpack.c.l.b16 %v377
  %v468 = vunpack.c.h.b16 %v377
  %v469 = vunpack.c.l.b16 %v378
  %v470 = vunpack.c.h.b16 %v378
  %v471 = vunpack.c.l.b16 %v379
  %v472 = vunpack.c.h.b16 %v379
  %v473 = vunpack.c.l.b16 %v380
  %v474 = vunpack.c.h.b16 %v380
  %v475 = vunpack.c.l.b16 %v381
  %v476 = vunpack.c.h.b16 %v381
  %v477 = vunpack.c.l.b16 %v382
  %v478 = vunpack.c.h.b16 %v382
  %v479 = vpack.c.b16 %v419, %v415
  %v480 = vpack.c.b16 %v420, %v416
  %v481 = vpack.c.b16 %v421, %v417
  %v482 = vpack.c.b16 %v422, %v418
  %v483 = vpack.c.b16 %v427, %v423
  %v484 = vpack.c.b16 %v428, %v424
  %v485 = vpack.c.b16 %v429, %v425
  %v486 = vpack.c.b16 %v430, %v426
  %v487 = vpack.c.b16 %v435, %v431
  %v488 = vpack.c.b16 %v436, %v432
  %v489 = vpack.c.b16 %v437, %v433
  %v490 = vpack.c.b16 %v438, %v434
  %v491 = vpack.c.b16 %v443, %v439
  %v492 = vpack.c.b16 %v444, %v440
  %v493 = vpack.c.b16 %v445, %v441
  %v494 = vpack.c.b16 %v446, %v442
  %v495 = vpack.c.b16 %v451, %v447
  %v496 = vpack.c.b16 %v452, %v448
  %v497 = vpack.c.b16 %v453, %v449
  %v498 = vpack.c.b16 %v454, %v450
  %v499 = vpack.c.b16 %v459, %v455
  %v500 = vpack.c.b16 %v460, %v456
  %v501 = vpack.c.b16 %v461, %v457
  %v502 = vpack.c.b16 %v462, %v458
  %v503 = vpack.c.b16 %v467, %v463
  %v504 = vpack.c.b16 %v468, %v464
  %v505 = vpack.c.b16 %v469, %v465
  %v506 = vpack.c.b16 %v470, %v466
  %v507 = vpack.c.b16 %v475, %v471
  %v508 = vpack.c.b16 %v476, %v472
  %v509 = vpack.c.b16 %v477, %v473
  %v510 = vpack.c.b16 %v478, %v474
  %543 = vmatprep.subr.bf16.mxu0 %v480
  %544 = vmatpush1.bf16.msra.mxu0 %v479
  %545 = vmatprep.subr.bf16.mxu0 %v484
  %546 = vmatpush1.bf16.msra.mxu0 %v483
  %547 = vmatprep.subr.bf16.mxu0 %v488
  %548 = vmatpush1.bf16.msra.mxu0 %v487
  %549 = vmatprep.subr.bf16.mxu0 %v492
  %550 = vmatpush1.bf16.msra.mxu0 %v491
  %551 = vmatprep.subr.bf16.mxu0 %v496
  %552 = vmatpush1.bf16.msra.mxu0 %v495
  %553 = vmatprep.subr.bf16.mxu0 %v500
  %554 = vmatpush1.bf16.msra.mxu0 %v499
  %555 = vmatprep.subr.bf16.mxu0 %v504
  %556 = vmatpush1.bf16.msra.mxu0 %v503
  %557 = vmatprep.subr.bf16.mxu0 %v508
  %558 = vmatpush1.bf16.msra.mxu0 %v507
  %559 = vmatprep.subr.bf16.mxu0 0
  %560 = vmatpush1.bf16.msra.mxu0 0
  %561 = vmatprep.subr.bf16.mxu0 0
  %562 = vmatpush1.bf16.msra.mxu0 0
  %563 = vmatprep.subr.bf16.mxu0 0
  %564 = vmatpush1.bf16.msra.mxu0 0
  %565 = vmatprep.subr.bf16.mxu0 0
  %566 = vmatpush1.bf16.msra.mxu0 0
  %567 = vmatprep.subr.bf16.mxu0 0
  %568 = vmatpush1.bf16.msra.mxu0 0
  %569 = vmatprep.subr.bf16.mxu0 0
  %570 = vmatpush1.bf16.msra.mxu0 0
  %571 = vmatprep.subr.bf16.mxu0 0
  %572 = vmatpush1.bf16.msra.mxu0 0
  %573 = vmatprep.subr.bf16.mxu0 0
  %574 = vmatpush1.bf16.msra.mxu0 0
  %575 = vmatprep.mubr.bf16.mxu0 0
  %576 = vmatmul.mubr.bf16.gmra.mrb[0].mxu0 %v350
  %v577 = vpop.f32.mrb[0].mxu0
  %v578 = vadd.f32 0.0, %v577
  %v579 = vpop.f32.mrb[0].mxu0
  %v580 = vadd.f32 0.0, %v579
  %v581 = vpop.f32.mrb[0].mxu0
  %v582 = vpop.f32.mrb[0].mxu0
  %583 = vdwg.mxu0
  %584 = vmatprep.subr.bf16.mxu0 %v482
  %585 = vmatpush1.bf16.msra.mxu0 %v481
  %586 = vmatprep.subr.bf16.mxu0 %v486
  %587 = vmatpush1.bf16.msra.mxu0 %v485
  %588 = vmatprep.subr.bf16.mxu0 %v490
  %589 = vmatpush1.bf16.msra.mxu0 %v489
  %590 = vmatprep.subr.bf16.mxu0 %v494
  %591 = vmatpush1.bf16.msra.mxu0 %v493
  %592 = vmatprep.subr.bf16.mxu0 %v498
  %593 = vmatpush1.bf16.msra.mxu0 %v497
  %594 = vmatprep.subr.bf16.mxu0 %v502
  %595 = vmatpush1.bf16.msra.mxu0 %v501
  %596 = vmatprep.subr.bf16.mxu0 %v506
  %597 = vmatpush1.bf16.msra.mxu0 %v505
  %598 = vmatprep.subr.bf16.mxu0 %v510
  %599 = vmatpush1.bf16.msra.mxu0 %v509
  %600 = vmatprep.subr.bf16.mxu0 0
  %601 = vmatpush1.bf16.msra.mxu0 0
  %602 = vmatprep.subr.bf16.mxu0 0
  %603 = vmatpush1.bf16.msra.mxu0 0
  %604 = vmatprep.subr.bf16.mxu0 0
  %605 = vmatpush1.bf16.msra.mxu0 0
  %606 = vmatprep.subr.bf16.mxu0 0
  %607 = vmatpush1.bf16.msra.mxu0 0
  %608 = vmatprep.subr.bf16.mxu0 0
  %609 = vmatpush1.bf16.msra.mxu0 0
  %610 = vmatprep.subr.bf16.mxu0 0
  %611 = vmatpush1.bf16.msra.mxu0 0
  %612 = vmatprep.subr.bf16.mxu0 0
  %613 = vmatpush1.bf16.msra.mxu0 0
  %614 = vmatprep.subr.bf16.mxu0 0
  %615 = vmatpush1.bf16.msra.mxu0 0
  %616 = vmatprep.mubr.bf16.mxu0 0
  %617 = vmatmul.mubr.bf16.gmra.mrb[0].mxu0 %v350
  %v618 = vpop.f32.mrb[0].mxu0
  %v619 = vadd.f32 0.0, %v618
  %v620 = vpop.f32.mrb[0].mxu0
  %v621 = vadd.f32 0.0, %v620
  %v622 = vpop.f32.mrb[0].mxu0
  %v623 = vpop.f32.mrb[0].mxu0
  %624 = vdwg.mxu0
  %v625 = vadd.f32 %v346, %v578
  %v626 = vadd.f32 %v347, %v580
  %v627 = vadd.f32 %v348, %v619
  %v628 = vadd.f32 %v349, %v621
  %v629 = vmul.f32 %v625, 0.5
  %v630 = vmul.f32 %v626, 0.5
  %v631 = vmul.f32 %v627, 0.5
  %v632 = vtanh.pop %v629
  %v633 = vtanh.pop %v630
  %v634 = vtanh.pop %v631
  %v635 = vmul.f32 %v632, 0.5
  %v636 = vmul.f32 %v633, 0.5
  %v637 = vmul.f32 %v634, 0.5
  %v638 = vadd.f32 %v635, 0.5
  %v639 = vadd.f32 %v636, 0.5
  %v640 = vadd.f32 %v637, 0.5
  %v641 = vtanh.pop %v628
  %v642 = vmul.f32 %v639, %v342
  %v643 = vmul.f32 %v638, %v641
  %v644 = vadd.f32 %v642, %v643
  %v645 = vtanh.pop %v644
  %v646 = vmul.f32 %v640, %v645
  %s647 = sadd.s32 %s24, 1
  %v648 = vstv %s647
  %vm649 = vcmp.lt.s32.totalorder %v648, %v25
  %v650 = vsel %vm649, 1, 0
  %651 = vset.pattern.permute.xlu0 0
  %652 = vperm.xlu0 %651, %v650
  %v653 = vpop.permute.xlu0 %652
  %vm654 = vcmp.eq.s32.totalorder %v653, 1
  %v655 = vsel %vm654, %v646, 0.0
  %v656 = vpack.c.bf16 %v655, %v655
  %s657 = scalar_lea.vmem %s3, 4
  %658 = vst [vmem:[%s657] sm:$0xf] %v656
  %v659 = vsel %vm654, %v646, %v341
  %v660 = vsel %vm654, %v644, %v342
  %s661 = scalar_lea.vmem %s0, 32
  %v662 = vld [vmem:[%s661] sm:$0xff]
  %v663 = vld [vmem:[%s661 + $0x8] sm:$0xff]
  %v664 = vunpack.c.l.bf16 %v662
  %v665 = vunpack.c.h.bf16 %v662
  %v666 = vunpack.c.l.bf16 %v663
  %v667 = vunpack.c.h.bf16 %v663
  %v668 = vpack.c.bf16 %v659, %v659
  %v669 = vld [vmem:[%s2] sm:$0xff]
  %v670 = vld [vmem:[%s2 + $0x8] sm:$0xff]
  %v671 = vld [vmem:[%s2 + $0x10] sm:$0xff]
  %v672 = vld [vmem:[%s2 + $0x18] sm:$0xff]
  %v673 = vld [vmem:[%s2 + $0x20] sm:$0xff]
  %v674 = vld [vmem:[%s2 + $0x28] sm:$0xff]
  %v675 = vld [vmem:[%s2 + $0x30] sm:$0xff]
  %v676 = vld [vmem:[%s2 + $0x38] sm:$0xff]
  %v677 = vld [vmem:[%s2 + $0x40] sm:$0xff]
  %v678 = vld [vmem:[%s2 + $0x48] sm:$0xff]
  %v679 = vld [vmem:[%s2 + $0x50] sm:$0xff]
  %v680 = vld [vmem:[%s2 + $0x58] sm:$0xff]
  %v681 = vld [vmem:[%s2 + $0x60] sm:$0xff]
  %v682 = vld [vmem:[%s2 + $0x68] sm:$0xff]
  %v683 = vld [vmem:[%s2 + $0x70] sm:$0xff]
  %v684 = vld [vmem:[%s2 + $0x78] sm:$0xff]
  %v685 = vld [vmem:[%s2 + $0x80] sm:$0xff]
  %v686 = vld [vmem:[%s2 + $0x88] sm:$0xff]
  %v687 = vld [vmem:[%s2 + $0x90] sm:$0xff]
  %v688 = vld [vmem:[%s2 + $0x98] sm:$0xff]
  %v689 = vld [vmem:[%s2 + $0xa0] sm:$0xff]
  %v690 = vld [vmem:[%s2 + $0xa8] sm:$0xff]
  %v691 = vld [vmem:[%s2 + $0xb0] sm:$0xff]
  %v692 = vld [vmem:[%s2 + $0xb8] sm:$0xff]
  %v693 = vld [vmem:[%s2 + $0xc0] sm:$0xff]
  %v694 = vld [vmem:[%s2 + $0xc8] sm:$0xff]
  %v695 = vld [vmem:[%s2 + $0xd0] sm:$0xff]
  %v696 = vld [vmem:[%s2 + $0xd8] sm:$0xff]
  %v697 = vld [vmem:[%s2 + $0xe0] sm:$0xff]
  %v698 = vld [vmem:[%s2 + $0xe8] sm:$0xff]
  %v699 = vld [vmem:[%s2 + $0xf0] sm:$0xff]
  %v700 = vld [vmem:[%s2 + $0xf8] sm:$0xff]
  %v733 = vunpack.c.l.b16 %v669
  %v734 = vunpack.c.h.b16 %v669
  %v735 = vunpack.c.l.b16 %v670
  %v736 = vunpack.c.h.b16 %v670
  %v737 = vunpack.c.l.b16 %v671
  %v738 = vunpack.c.h.b16 %v671
  %v739 = vunpack.c.l.b16 %v672
  %v740 = vunpack.c.h.b16 %v672
  %v741 = vunpack.c.l.b16 %v673
  %v742 = vunpack.c.h.b16 %v673
  %v743 = vunpack.c.l.b16 %v674
  %v744 = vunpack.c.h.b16 %v674
  %v745 = vunpack.c.l.b16 %v675
  %v746 = vunpack.c.h.b16 %v675
  %v747 = vunpack.c.l.b16 %v676
  %v748 = vunpack.c.h.b16 %v676
  %v749 = vunpack.c.l.b16 %v677
  %v750 = vunpack.c.h.b16 %v677
  %v751 = vunpack.c.l.b16 %v678
  %v752 = vunpack.c.h.b16 %v678
  %v753 = vunpack.c.l.b16 %v679
  %v754 = vunpack.c.h.b16 %v679
  %v755 = vunpack.c.l.b16 %v680
  %v756 = vunpack.c.h.b16 %v680
  %v757 = vunpack.c.l.b16 %v681
  %v758 = vunpack.c.h.b16 %v681
  %v759 = vunpack.c.l.b16 %v682
  %v760 = vunpack.c.h.b16 %v682
  %v761 = vunpack.c.l.b16 %v683
  %v762 = vunpack.c.h.b16 %v683
  %v763 = vunpack.c.l.b16 %v684
  %v764 = vunpack.c.h.b16 %v684
  %v765 = vunpack.c.l.b16 %v685
  %v766 = vunpack.c.h.b16 %v685
  %v767 = vunpack.c.l.b16 %v686
  %v768 = vunpack.c.h.b16 %v686
  %v769 = vunpack.c.l.b16 %v687
  %v770 = vunpack.c.h.b16 %v687
  %v771 = vunpack.c.l.b16 %v688
  %v772 = vunpack.c.h.b16 %v688
  %v773 = vunpack.c.l.b16 %v689
  %v774 = vunpack.c.h.b16 %v689
  %v775 = vunpack.c.l.b16 %v690
  %v776 = vunpack.c.h.b16 %v690
  %v777 = vunpack.c.l.b16 %v691
  %v778 = vunpack.c.h.b16 %v691
  %v779 = vunpack.c.l.b16 %v692
  %v780 = vunpack.c.h.b16 %v692
  %v781 = vunpack.c.l.b16 %v693
  %v782 = vunpack.c.h.b16 %v693
  %v783 = vunpack.c.l.b16 %v694
  %v784 = vunpack.c.h.b16 %v694
  %v785 = vunpack.c.l.b16 %v695
  %v786 = vunpack.c.h.b16 %v695
  %v787 = vunpack.c.l.b16 %v696
  %v788 = vunpack.c.h.b16 %v696
  %v789 = vunpack.c.l.b16 %v697
  %v790 = vunpack.c.h.b16 %v697
  %v791 = vunpack.c.l.b16 %v698
  %v792 = vunpack.c.h.b16 %v698
  %v793 = vunpack.c.l.b16 %v699
  %v794 = vunpack.c.h.b16 %v699
  %v795 = vunpack.c.l.b16 %v700
  %v796 = vunpack.c.h.b16 %v700
  %v797 = vpack.c.b16 %v737, %v733
  %v798 = vpack.c.b16 %v738, %v734
  %v799 = vpack.c.b16 %v739, %v735
  %v800 = vpack.c.b16 %v740, %v736
  %v801 = vpack.c.b16 %v745, %v741
  %v802 = vpack.c.b16 %v746, %v742
  %v803 = vpack.c.b16 %v747, %v743
  %v804 = vpack.c.b16 %v748, %v744
  %v805 = vpack.c.b16 %v753, %v749
  %v806 = vpack.c.b16 %v754, %v750
  %v807 = vpack.c.b16 %v755, %v751
  %v808 = vpack.c.b16 %v756, %v752
  %v809 = vpack.c.b16 %v761, %v757
  %v810 = vpack.c.b16 %v762, %v758
  %v811 = vpack.c.b16 %v763, %v759
  %v812 = vpack.c.b16 %v764, %v760
  %v813 = vpack.c.b16 %v769, %v765
  %v814 = vpack.c.b16 %v770, %v766
  %v815 = vpack.c.b16 %v771, %v767
  %v816 = vpack.c.b16 %v772, %v768
  %v817 = vpack.c.b16 %v777, %v773
  %v818 = vpack.c.b16 %v778, %v774
  %v819 = vpack.c.b16 %v779, %v775
  %v820 = vpack.c.b16 %v780, %v776
  %v821 = vpack.c.b16 %v785, %v781
  %v822 = vpack.c.b16 %v786, %v782
  %v823 = vpack.c.b16 %v787, %v783
  %v824 = vpack.c.b16 %v788, %v784
  %v825 = vpack.c.b16 %v793, %v789
  %v826 = vpack.c.b16 %v794, %v790
  %v827 = vpack.c.b16 %v795, %v791
  %v828 = vpack.c.b16 %v796, %v792
  %861 = vmatprep.subr.bf16.mxu0 %v798
  %862 = vmatpush1.bf16.msra.mxu0 %v797
  %863 = vmatprep.subr.bf16.mxu0 %v802
  %864 = vmatpush1.bf16.msra.mxu0 %v801
  %865 = vmatprep.subr.bf16.mxu0 %v806
  %866 = vmatpush1.bf16.msra.mxu0 %v805
  %867 = vmatprep.subr.bf16.mxu0 %v810
  %868 = vmatpush1.bf16.msra.mxu0 %v809
  %869 = vmatprep.subr.bf16.mxu0 %v814
  %870 = vmatpush1.bf16.msra.mxu0 %v813
  %871 = vmatprep.subr.bf16.mxu0 %v818
  %872 = vmatpush1.bf16.msra.mxu0 %v817
  %873 = vmatprep.subr.bf16.mxu0 %v822
  %874 = vmatpush1.bf16.msra.mxu0 %v821
  %875 = vmatprep.subr.bf16.mxu0 %v826
  %876 = vmatpush1.bf16.msra.mxu0 %v825
  %877 = vmatprep.subr.bf16.mxu0 0
  %878 = vmatpush1.bf16.msra.mxu0 0
  %879 = vmatprep.subr.bf16.mxu0 0
  %880 = vmatpush1.bf16.msra.mxu0 0
  %881 = vmatprep.subr.bf16.mxu0 0
  %882 = vmatpush1.bf16.msra.mxu0 0
  %883 = vmatprep.subr.bf16.mxu0 0
  %884 = vmatpush1.bf16.msra.mxu0 0
  %885 = vmatprep.subr.bf16.mxu0 0
  %886 = vmatpush1.bf16.msra.mxu0 0
  %887 = vmatprep.subr.bf16.mxu0 0
  %888 = vmatpush1.bf16.msra.mxu0 0
  %889 = vmatprep.subr.bf16.mxu0 0
  %890 = vmatpush1.bf16.msra.mxu0 0
  %891 = vmatprep.subr.bf16.mxu0 0
  %892 = vmatpush1.bf16.msra.mxu0 0
  %893 = vmatprep.mubr.bf16.mxu0 0
  %894 = vmatmul.mubr.bf16.gmra.mrb[0].mxu0 %v668
  %v895 = vpop.f32.mrb[0].mxu0
  %v896 = vadd.f32 0.0, %v895
  %v897 = vpop.f32.mrb[0].mxu0
  %v898 = vadd.f32 0.0, %v897
  %v899 = vpop.f32.mrb[0].mxu0
  %v900 = vpop.f32.mrb[0].mxu0
  %901 = vdwg.mxu0
  %902 = vmatprep.subr.bf16.mxu0 %v800
  %903 = vmatpush1.bf16.msra.mxu0 %v799
  %904 = vmatprep.subr.bf16.mxu0 %v804
  %905 = vmatpush1.bf16.msra.mxu0 %v803
  %906 = vmatprep.subr.bf16.mxu0 %v808
  %907 = vmatpush1.bf16.msra.mxu0 %v807
  %908 = vmatprep.subr.bf16.mxu0 %v812
  %909 = vmatpush1.bf16.msra.mxu0 %v811
  %910 = vmatprep.subr.bf16.mxu0 %v816
  %911 = vmatpush1.bf16.msra.mxu0 %v815
  %912 = vmatprep.subr.bf16.mxu0 %v820
  %913 = vmatpush1.bf16.msra.mxu0 %v819
  %914 = vmatprep.subr.bf16.mxu0 %v824
  %915 = vmatpush1.bf16.msra.mxu0 %v823
  %916 = vmatprep.subr.bf16.mxu0 %v828
  %917 = vmatpush1.bf16.msra.mxu0 %v827
  %918 = vmatprep.subr.bf16.mxu0 0
  %919 = vmatpush1.bf16.msra.mxu0 0
  %920 = vmatprep.subr.bf16.mxu0 0
  %921 = vmatpush1.bf16.msra.mxu0 0
  %922 = vmatprep.subr.bf16.mxu0 0
  %923 = vmatpush1.bf16.msra.mxu0 0
  %924 = vmatprep.subr.bf16.mxu0 0
  %925 = vmatpush1.bf16.msra.mxu0 0
  %926 = vmatprep.subr.bf16.mxu0 0
  %927 = vmatpush1.bf16.msra.mxu0 0
  %928 = vmatprep.subr.bf16.mxu0 0
  %929 = vmatpush1.bf16.msra.mxu0 0
  %930 = vmatprep.subr.bf16.mxu0 0
  %931 = vmatpush1.bf16.msra.mxu0 0
  %932 = vmatprep.subr.bf16.mxu0 0
  %933 = vmatpush1.bf16.msra.mxu0 0
  %934 = vmatprep.mubr.bf16.mxu0 0
  %935 = vmatmul.mubr.bf16.gmra.mrb[0].mxu0 %v668
  %v936 = vpop.f32.mrb[0].mxu0
  %v937 = vadd.f32 0.0, %v936
  %v938 = vpop.f32.mrb[0].mxu0
  %v939 = vadd.f32 0.0, %v938
  %v940 = vpop.f32.mrb[0].mxu0
  %v941 = vpop.f32.mrb[0].mxu0
  %942 = vdwg.mxu0
  %v943 = vadd.f32 %v664, %v896
  %v944 = vadd.f32 %v665, %v898
  %v945 = vadd.f32 %v666, %v937
  %v946 = vadd.f32 %v667, %v939
  %v947 = vmul.f32 %v943, 0.5
  %v948 = vmul.f32 %v944, 0.5
  %v949 = vmul.f32 %v945, 0.5
  %v950 = vtanh.pop %v947
  %v951 = vtanh.pop %v948
  %v952 = vtanh.pop %v949
  %v953 = vmul.f32 %v950, 0.5
  %v954 = vmul.f32 %v951, 0.5
  %v955 = vmul.f32 %v952, 0.5
  %v956 = vadd.f32 %v953, 0.5
  %v957 = vadd.f32 %v954, 0.5
  %v958 = vadd.f32 %v955, 0.5
  %v959 = vtanh.pop %v946
  %v960 = vmul.f32 %v957, %v660
  %v961 = vmul.f32 %v956, %v959
  %v962 = vadd.f32 %v960, %v961
  %v963 = vtanh.pop %v962
  %v964 = vmul.f32 %v958, %v963
  %s965 = sadd.s32 %s24, 2
  %v966 = vstv %s965
  %vm967 = vcmp.lt.s32.totalorder %v966, %v25
  %v968 = vsel %vm967, 1, 0
  %969 = vset.pattern.permute.xlu0 0
  %970 = vperm.xlu0 %969, %v968
  %v971 = vpop.permute.xlu0 %970
  %vm972 = vcmp.eq.s32.totalorder %v971, 1
  %v973 = vsel %vm972, %v964, 0.0
  %v974 = vpack.c.bf16 %v973, %v973
  %s975 = scalar_lea.vmem %s3, 8
  %976 = vst [vmem:[%s975] sm:$0xf] %v974
  %v977 = vsel %vm972, %v964, %v659
  %v978 = vsel %vm972, %v962, %v660
  %s979 = scalar_lea.vmem %s0, 48
  %v980 = vld [vmem:[%s979] sm:$0xff]
  %v981 = vld [vmem:[%s979 + $0x8] sm:$0xff]
  %v982 = vunpack.c.l.bf16 %v980
  %v983 = vunpack.c.h.bf16 %v980
  %v984 = vunpack.c.l.bf16 %v981
  %v985 = vunpack.c.h.bf16 %v981
  %v986 = vpack.c.bf16 %v977, %v977
  %v987 = vld [vmem:[%s2] sm:$0xff]
  %v988 = vld [vmem:[%s2 + $0x8] sm:$0xff]
  %v989 = vld [vmem:[%s2 + $0x10] sm:$0xff]
  %v990 = vld [vmem:[%s2 + $0x18] sm:$0xff]
  %v991 = vld [vmem:[%s2 + $0x20] sm:$0xff]
  %v992 = vld [vmem:[%s2 + $0x28] sm:$0xff]
  %v993 = vld [vmem:[%s2 + $0x30] sm:$0xff]
  %v994 = vld [vmem:[%s2 + $0x38] sm:$0xff]
  %v995 = vld [vmem:[%s2 + $0x40] sm:$0xff]
  %v996 = vld [vmem:[%s2 + $0x48] sm:$0xff]
  %v997 = vld [vmem:[%s2 + $0x50] sm:$0xff]
  %v998 = vld [vmem:[%s2 + $0x58] sm:$0xff]
  %v999 = vld [vmem:[%s2 + $0x60] sm:$0xff]
  %v1000 = vld [vmem:[%s2 + $0x68] sm:$0xff]
  %v1001 = vld [vmem:[%s2 + $0x70] sm:$0xff]
  %v1002 = vld [vmem:[%s2 + $0x78] sm:$0xff]
  %v1003 = vld [vmem:[%s2 + $0x80] sm:$0xff]
  %v1004 = vld [vmem:[%s2 + $0x88] sm:$0xff]
  %v1005 = vld [vmem:[%s2 + $0x90] sm:$0xff]
  %v1006 = vld [vmem:[%s2 + $0x98] sm:$0xff]
  %v1007 = vld [vmem:[%s2 + $0xa0] sm:$0xff]
  %v1008 = vld [vmem:[%s2 + $0xa8] sm:$0xff]
  %v1009 = vld [vmem:[%s2 + $0xb0] sm:$0xff]
  %v1010 = vld [vmem:[%s2 + $0xb8] sm:$0xff]
  %v1011 = vld [vmem:[%s2 + $0xc0] sm:$0xff]
  %v1012 = vld [vmem:[%s2 + $0xc8] sm:$0xff]
  %v1013 = vld [vmem:[%s2 + $0xd0] sm:$0xff]
  %v1014 = vld [vmem:[%s2 + $0xd8] sm:$0xff]
  %v1015 = vld [vmem:[%s2 + $0xe0] sm:$0xff]
  %v1016 = vld [vmem:[%s2 + $0xe8] sm:$0xff]
  %v1017 = vld [vmem:[%s2 + $0xf0] sm:$0xff]
  %v1018 = vld [vmem:[%s2 + $0xf8] sm:$0xff]
  %v1051 = vunpack.c.l.b16 %v987
  %v1052 = vunpack.c.h.b16 %v987
  %v1053 = vunpack.c.l.b16 %v988
  %v1054 = vunpack.c.h.b16 %v988
  %v1055 = vunpack.c.l.b16 %v989
  %v1056 = vunpack.c.h.b16 %v989
  %v1057 = vunpack.c.l.b16 %v990
  %v1058 = vunpack.c.h.b16 %v990
  %v1059 = vunpack.c.l.b16 %v991
  %v1060 = vunpack.c.h.b16 %v991
  %v1061 = vunpack.c.l.b16 %v992
  %v1062 = vunpack.c.h.b16 %v992
  %v1063 = vunpack.c.l.b16 %v993
  %v1064 = vunpack.c.h.b16 %v993
  %v1065 = vunpack.c.l.b16 %v994
  %v1066 = vunpack.c.h.b16 %v994
  %v1067 = vunpack.c.l.b16 %v995
  %v1068 = vunpack.c.h.b16 %v995
  %v1069 = vunpack.c.l.b16 %v996
  %v1070 = vunpack.c.h.b16 %v996
  %v1071 = vunpack.c.l.b16 %v997
  %v1072 = vunpack.c.h.b16 %v997
  %v1073 = vunpack.c.l.b16 %v998
  %v1074 = vunpack.c.h.b16 %v998
  %v1075 = vunpack.c.l.b16 %v999
  %v1076 = vunpack.c.h.b16 %v999
  %v1077 = vunpack.c.l.b16 %v1000
  %v1078 = vunpack.c.h.b16 %v1000
  %v1079 = vunpack.c.l.b16 %v1001
  %v1080 = vunpack.c.h.b16 %v1001
  %v1081 = vunpack.c.l.b16 %v1002
  %v1082 = vunpack.c.h.b16 %v1002
  %v1083 = vunpack.c.l.b16 %v1003
  %v1084 = vunpack.c.h.b16 %v1003
  %v1085 = vunpack.c.l.b16 %v1004
  %v1086 = vunpack.c.h.b16 %v1004
  %v1087 = vunpack.c.l.b16 %v1005
  %v1088 = vunpack.c.h.b16 %v1005
  %v1089 = vunpack.c.l.b16 %v1006
  %v1090 = vunpack.c.h.b16 %v1006
  %v1091 = vunpack.c.l.b16 %v1007
  %v1092 = vunpack.c.h.b16 %v1007
  %v1093 = vunpack.c.l.b16 %v1008
  %v1094 = vunpack.c.h.b16 %v1008
  %v1095 = vunpack.c.l.b16 %v1009
  %v1096 = vunpack.c.h.b16 %v1009
  %v1097 = vunpack.c.l.b16 %v1010
  %v1098 = vunpack.c.h.b16 %v1010
  %v1099 = vunpack.c.l.b16 %v1011
  %v1100 = vunpack.c.h.b16 %v1011
  %v1101 = vunpack.c.l.b16 %v1012
  %v1102 = vunpack.c.h.b16 %v1012
  %v1103 = vunpack.c.l.b16 %v1013
  %v1104 = vunpack.c.h.b16 %v1013
  %v1105 = vunpack.c.l.b16 %v1014
  %v1106 = vunpack.c.h.b16 %v1014
  %v1107 = vunpack.c.l.b16 %v1015
  %v1108 = vunpack.c.h.b16 %v1015
  %v1109 = vunpack.c.l.b16 %v1016
  %v1110 = vunpack.c.h.b16 %v1016
  %v1111 = vunpack.c.l.b16 %v1017
  %v1112 = vunpack.c.h.b16 %v1017
  %v1113 = vunpack.c.l.b16 %v1018
  %v1114 = vunpack.c.h.b16 %v1018
  %v1115 = vpack.c.b16 %v1055, %v1051
  %v1116 = vpack.c.b16 %v1056, %v1052
  %v1117 = vpack.c.b16 %v1057, %v1053
  %v1118 = vpack.c.b16 %v1058, %v1054
  %v1119 = vpack.c.b16 %v1063, %v1059
  %v1120 = vpack.c.b16 %v1064, %v1060
  %v1121 = vpack.c.b16 %v1065, %v1061
  %v1122 = vpack.c.b16 %v1066, %v1062
  %v1123 = vpack.c.b16 %v1071, %v1067
  %v1124 = vpack.c.b16 %v1072, %v1068
  %v1125 = vpack.c.b16 %v1073, %v1069
  %v1126 = vpack.c.b16 %v1074, %v1070
  %v1127 = vpack.c.b16 %v1079, %v1075
  %v1128 = vpack.c.b16 %v1080, %v1076
  %v1129 = vpack.c.b16 %v1081, %v1077
  %v1130 = vpack.c.b16 %v1082, %v1078
  %v1131 = vpack.c.b16 %v1087, %v1083
  %v1132 = vpack.c.b16 %v1088, %v1084
  %v1133 = vpack.c.b16 %v1089, %v1085
  %v1134 = vpack.c.b16 %v1090, %v1086
  %v1135 = vpack.c.b16 %v1095, %v1091
  %v1136 = vpack.c.b16 %v1096, %v1092
  %v1137 = vpack.c.b16 %v1097, %v1093
  %v1138 = vpack.c.b16 %v1098, %v1094
  %v1139 = vpack.c.b16 %v1103, %v1099
  %v1140 = vpack.c.b16 %v1104, %v1100
  %v1141 = vpack.c.b16 %v1105, %v1101
  %v1142 = vpack.c.b16 %v1106, %v1102
  %v1143 = vpack.c.b16 %v1111, %v1107
  %v1144 = vpack.c.b16 %v1112, %v1108
  %v1145 = vpack.c.b16 %v1113, %v1109
  %v1146 = vpack.c.b16 %v1114, %v1110
  %1179 = vmatprep.subr.bf16.mxu0 %v1116
  %1180 = vmatpush1.bf16.msra.mxu0 %v1115
  %1181 = vmatprep.subr.bf16.mxu0 %v1120
  %1182 = vmatpush1.bf16.msra.mxu0 %v1119
  %1183 = vmatprep.subr.bf16.mxu0 %v1124
  %1184 = vmatpush1.bf16.msra.mxu0 %v1123
  %1185 = vmatprep.subr.bf16.mxu0 %v1128
  %1186 = vmatpush1.bf16.msra.mxu0 %v1127
  %1187 = vmatprep.subr.bf16.mxu0 %v1132
  %1188 = vmatpush1.bf16.msra.mxu0 %v1131
  %1189 = vmatprep.subr.bf16.mxu0 %v1136
  %1190 = vmatpush1.bf16.msra.mxu0 %v1135
  %1191 = vmatprep.subr.bf16.mxu0 %v1140
  %1192 = vmatpush1.bf16.msra.mxu0 %v1139
  %1193 = vmatprep.subr.bf16.mxu0 %v1144
  %1194 = vmatpush1.bf16.msra.mxu0 %v1143
  %1195 = vmatprep.subr.bf16.mxu0 0
  %1196 = vmatpush1.bf16.msra.mxu0 0
  %1197 = vmatprep.subr.bf16.mxu0 0
  %1198 = vmatpush1.bf16.msra.mxu0 0
  %1199 = vmatprep.subr.bf16.mxu0 0
  %1200 = vmatpush1.bf16.msra.mxu0 0
  %1201 = vmatprep.subr.bf16.mxu0 0
  %1202 = vmatpush1.bf16.msra.mxu0 0
  %1203 = vmatprep.subr.bf16.mxu0 0
  %1204 = vmatpush1.bf16.msra.mxu0 0
  %1205 = vmatprep.subr.bf16.mxu0 0
  %1206 = vmatpush1.bf16.msra.mxu0 0
  %1207 = vmatprep.subr.bf16.mxu0 0
  %1208 = vmatpush1.bf16.msra.mxu0 0
  %1209 = vmatprep.subr.bf16.mxu0 0
  %1210 = vmatpush1.bf16.msra.mxu0 0
  %1211 = vmatprep.mubr.bf16.mxu0 0
  %1212 = vmatmul.mubr.bf16.gmra.mrb[0].mxu0 %v986
  %v1213 = vpop.f32.mrb[0].mxu0
  %v1214 = vadd.f32 0.0, %v1213
  %v1215 = vpop.f32.mrb[0].mxu0
  %v1216 = vadd.f32 0.0, %v1215
  %v1217 = vpop.f32.mrb[0].mxu0
  %v1218 = vpop.f32.mrb[0].mxu0
  %1219 = vdwg.mxu0
  %1220 = vmatprep.subr.bf16.mxu0 %v1118
  %1221 = vmatpush1.bf16.msra.mxu0 %v1117
  %1222 = vmatprep.subr.bf16.mxu0 %v1122
  %1223 = vmatpush1.bf16.msra.mxu0 %v1121
  %1224 = vmatprep.subr.bf16.mxu0 %v1126
  %1225 = vmatpush1.bf16.msra.mxu0 %v1125
  %1226 = vmatprep.subr.bf16.mxu0 %v1130
  %1227 = vmatpush1.bf16.msra.mxu0 %v1129
  %1228 = vmatprep.subr.bf16.mxu0 %v1134
  %1229 = vmatpush1.bf16.msra.mxu0 %v1133
  %1230 = vmatprep.subr.bf16.mxu0 %v1138
  %1231 = vmatpush1.bf16.msra.mxu0 %v1137
  %1232 = vmatprep.subr.bf16.mxu0 %v1142
  %1233 = vmatpush1.bf16.msra.mxu0 %v1141
  %1234 = vmatprep.subr.bf16.mxu0 %v1146
  %1235 = vmatpush1.bf16.msra.mxu0 %v1145
  %1236 = vmatprep.subr.bf16.mxu0 0
  %1237 = vmatpush1.bf16.msra.mxu0 0
  %1238 = vmatprep.subr.bf16.mxu0 0
  %1239 = vmatpush1.bf16.msra.mxu0 0
  %1240 = vmatprep.subr.bf16.mxu0 0
  %1241 = vmatpush1.bf16.msra.mxu0 0
  %1242 = vmatprep.subr.bf16.mxu0 0
  %1243 = vmatpush1.bf16.msra.mxu0 0
  %1244 = vmatprep.subr.bf16.mxu0 0
  %1245 = vmatpush1.bf16.msra.mxu0 0
  %1246 = vmatprep.subr.bf16.mxu0 0
  %1247 = vmatpush1.bf16.msra.mxu0 0
  %1248 = vmatprep.subr.bf16.mxu0 0
  %1249 = vmatpush1.bf16.msra.mxu0 0
  %1250 = vmatprep.subr.bf16.mxu0 0
  %1251 = vmatpush1.bf16.msra.mxu0 0
  %1252 = vmatprep.mubr.bf16.mxu0 0
  %1253 = vmatmul.mubr.bf16.gmra.mrb[0].mxu0 %v986
  %v1254 = vpop.f32.mrb[0].mxu0
  %v1255 = vadd.f32 0.0, %v1254
  %v1256 = vpop.f32.mrb[0].mxu0
  %v1257 = vadd.f32 0.0, %v1256
  %v1258 = vpop.f32.mrb[0].mxu0
  %v1259 = vpop.f32.mrb[0].mxu0
  %1260 = vdwg.mxu0
  %v1261 = vadd.f32 %v982, %v1214
  %v1262 = vadd.f32 %v983, %v1216
  %v1263 = vadd.f32 %v984, %v1255
  %v1264 = vadd.f32 %v985, %v1257
  %v1265 = vmul.f32 %v1261, 0.5
  %v1266 = vmul.f32 %v1262, 0.5
  %v1267 = vmul.f32 %v1263, 0.5
  %v1268 = vtanh.pop %v1265
  %v1269 = vtanh.pop %v1266
  %v1270 = vtanh.pop %v1267
  %v1271 = vmul.f32 %v1268, 0.5
  %v1272 = vmul.f32 %v1269, 0.5
  %v1273 = vmul.f32 %v1270, 0.5
  %v1274 = vadd.f32 %v1271, 0.5
  %v1275 = vadd.f32 %v1272, 0.5
  %v1276 = vadd.f32 %v1273, 0.5
  %v1277 = vtanh.pop %v1264
  %v1278 = vmul.f32 %v1275, %v978
  %v1279 = vmul.f32 %v1274, %v1277
  %v1280 = vadd.f32 %v1278, %v1279
  %v1281 = vtanh.pop %v1280
  %v1282 = vmul.f32 %v1276, %v1281
  %s1283 = sadd.s32 %s24, 3
  %v1284 = vstv %s1283
  %vm1285 = vcmp.lt.s32.totalorder %v1284, %v25
  %v1286 = vsel %vm1285, 1, 0
  %1287 = vset.pattern.permute.xlu0 0
  %1288 = vperm.xlu0 %1287, %v1286
  %v1289 = vpop.permute.xlu0 %1288
  %vm1290 = vcmp.eq.s32.totalorder %v1289, 1
  %v1291 = vsel %vm1290, %v1282, 0.0
  %v1292 = vpack.c.bf16 %v1291, %v1291
  %s1293 = scalar_lea.vmem %s3, 12
  %1294 = vst [vmem:[%s1293] sm:$0xf] %v1292
  %v1295 = vsel %vm1290, %v1282, %v977
  %v1296 = vsel %vm1290, %v1280, %v978
  %s1297 = scalar_lea.vmem %s0, 64
  %v1298 = vld [vmem:[%s1297] sm:$0xff]
  %v1299 = vld [vmem:[%s1297 + $0x8] sm:$0xff]
  %v1300 = vunpack.c.l.bf16 %v1298
  %v1301 = vunpack.c.h.bf16 %v1298
  %v1302 = vunpack.c.l.bf16 %v1299
  %v1303 = vunpack.c.h.bf16 %v1299
  %v1304 = vpack.c.bf16 %v1295, %v1295
  %v1305 = vld [vmem:[%s2] sm:$0xff]
  %v1306 = vld [vmem:[%s2 + $0x8] sm:$0xff]
  %v1307 = vld [vmem:[%s2 + $0x10] sm:$0xff]
  %v1308 = vld [vmem:[%s2 + $0x18] sm:$0xff]
  %v1309 = vld [vmem:[%s2 + $0x20] sm:$0xff]
  %v1310 = vld [vmem:[%s2 + $0x28] sm:$0xff]
  %v1311 = vld [vmem:[%s2 + $0x30] sm:$0xff]
  %v1312 = vld [vmem:[%s2 + $0x38] sm:$0xff]
  %v1313 = vld [vmem:[%s2 + $0x40] sm:$0xff]
  %v1314 = vld [vmem:[%s2 + $0x48] sm:$0xff]
  %v1315 = vld [vmem:[%s2 + $0x50] sm:$0xff]
  %v1316 = vld [vmem:[%s2 + $0x58] sm:$0xff]
  %v1317 = vld [vmem:[%s2 + $0x60] sm:$0xff]
  %v1318 = vld [vmem:[%s2 + $0x68] sm:$0xff]
  %v1319 = vld [vmem:[%s2 + $0x70] sm:$0xff]
  %v1320 = vld [vmem:[%s2 + $0x78] sm:$0xff]
  %v1321 = vld [vmem:[%s2 + $0x80] sm:$0xff]
  %v1322 = vld [vmem:[%s2 + $0x88] sm:$0xff]
  %v1323 = vld [vmem:[%s2 + $0x90] sm:$0xff]
  %v1324 = vld [vmem:[%s2 + $0x98] sm:$0xff]
  %v1325 = vld [vmem:[%s2 + $0xa0] sm:$0xff]
  %v1326 = vld [vmem:[%s2 + $0xa8] sm:$0xff]
  %v1327 = vld [vmem:[%s2 + $0xb0] sm:$0xff]
  %v1328 = vld [vmem:[%s2 + $0xb8] sm:$0xff]
  %v1329 = vld [vmem:[%s2 + $0xc0] sm:$0xff]
  %v1330 = vld [vmem:[%s2 + $0xc8] sm:$0xff]
  %v1331 = vld [vmem:[%s2 + $0xd0] sm:$0xff]
  %v1332 = vld [vmem:[%s2 + $0xd8] sm:$0xff]
  %v1333 = vld [vmem:[%s2 + $0xe0] sm:$0xff]
  %v1334 = vld [vmem:[%s2 + $0xe8] sm:$0xff]
  %v1335 = vld [vmem:[%s2 + $0xf0] sm:$0xff]
  %v1336 = vld [vmem:[%s2 + $0xf8] sm:$0xff]
  %v1369 = vunpack.c.l.b16 %v1305
  %v1370 = vunpack.c.h.b16 %v1305
  %v1371 = vunpack.c.l.b16 %v1306
  %v1372 = vunpack.c.h.b16 %v1306
  %v1373 = vunpack.c.l.b16 %v1307
  %v1374 = vunpack.c.h.b16 %v1307
  %v1375 = vunpack.c.l.b16 %v1308
  %v1376 = vunpack.c.h.b16 %v1308
  %v1377 = vunpack.c.l.b16 %v1309
  %v1378 = vunpack.c.h.b16 %v1309
  %v1379 = vunpack.c.l.b16 %v1310
  %v1380 = vunpack.c.h.b16 %v1310
  %v1381 = vunpack.c.l.b16 %v1311
  %v1382 = vunpack.c.h.b16 %v1311
  %v1383 = vunpack.c.l.b16 %v1312
  %v1384 = vunpack.c.h.b16 %v1312
  %v1385 = vunpack.c.l.b16 %v1313
  %v1386 = vunpack.c.h.b16 %v1313
  %v1387 = vunpack.c.l.b16 %v1314
  %v1388 = vunpack.c.h.b16 %v1314
  %v1389 = vunpack.c.l.b16 %v1315
  %v1390 = vunpack.c.h.b16 %v1315
  %v1391 = vunpack.c.l.b16 %v1316
  %v1392 = vunpack.c.h.b16 %v1316
  %v1393 = vunpack.c.l.b16 %v1317
  %v1394 = vunpack.c.h.b16 %v1317
  %v1395 = vunpack.c.l.b16 %v1318
  %v1396 = vunpack.c.h.b16 %v1318
  %v1397 = vunpack.c.l.b16 %v1319
  %v1398 = vunpack.c.h.b16 %v1319
  %v1399 = vunpack.c.l.b16 %v1320
  %v1400 = vunpack.c.h.b16 %v1320
  %v1401 = vunpack.c.l.b16 %v1321
  %v1402 = vunpack.c.h.b16 %v1321
  %v1403 = vunpack.c.l.b16 %v1322
  %v1404 = vunpack.c.h.b16 %v1322
  %v1405 = vunpack.c.l.b16 %v1323
  %v1406 = vunpack.c.h.b16 %v1323
  %v1407 = vunpack.c.l.b16 %v1324
  %v1408 = vunpack.c.h.b16 %v1324
  %v1409 = vunpack.c.l.b16 %v1325
  %v1410 = vunpack.c.h.b16 %v1325
  %v1411 = vunpack.c.l.b16 %v1326
  %v1412 = vunpack.c.h.b16 %v1326
  %v1413 = vunpack.c.l.b16 %v1327
  %v1414 = vunpack.c.h.b16 %v1327
  %v1415 = vunpack.c.l.b16 %v1328
  %v1416 = vunpack.c.h.b16 %v1328
  %v1417 = vunpack.c.l.b16 %v1329
  %v1418 = vunpack.c.h.b16 %v1329
  %v1419 = vunpack.c.l.b16 %v1330
  %v1420 = vunpack.c.h.b16 %v1330
  %v1421 = vunpack.c.l.b16 %v1331
  %v1422 = vunpack.c.h.b16 %v1331
  %v1423 = vunpack.c.l.b16 %v1332
  %v1424 = vunpack.c.h.b16 %v1332
  %v1425 = vunpack.c.l.b16 %v1333
  %v1426 = vunpack.c.h.b16 %v1333
  %v1427 = vunpack.c.l.b16 %v1334
  %v1428 = vunpack.c.h.b16 %v1334
  %v1429 = vunpack.c.l.b16 %v1335
  %v1430 = vunpack.c.h.b16 %v1335
  %v1431 = vunpack.c.l.b16 %v1336
  %v1432 = vunpack.c.h.b16 %v1336
  %v1433 = vpack.c.b16 %v1373, %v1369
  %v1434 = vpack.c.b16 %v1374, %v1370
  %v1435 = vpack.c.b16 %v1375, %v1371
  %v1436 = vpack.c.b16 %v1376, %v1372
  %v1437 = vpack.c.b16 %v1381, %v1377
  %v1438 = vpack.c.b16 %v1382, %v1378
  %v1439 = vpack.c.b16 %v1383, %v1379
  %v1440 = vpack.c.b16 %v1384, %v1380
  %v1441 = vpack.c.b16 %v1389, %v1385
  %v1442 = vpack.c.b16 %v1390, %v1386
  %v1443 = vpack.c.b16 %v1391, %v1387
  %v1444 = vpack.c.b16 %v1392, %v1388
  %v1445 = vpack.c.b16 %v1397, %v1393
  %v1446 = vpack.c.b16 %v1398, %v1394
  %v1447 = vpack.c.b16 %v1399, %v1395
  %v1448 = vpack.c.b16 %v1400, %v1396
  %v1449 = vpack.c.b16 %v1405, %v1401
  %v1450 = vpack.c.b16 %v1406, %v1402
  %v1451 = vpack.c.b16 %v1407, %v1403
  %v1452 = vpack.c.b16 %v1408, %v1404
  %v1453 = vpack.c.b16 %v1413, %v1409
  %v1454 = vpack.c.b16 %v1414, %v1410
  %v1455 = vpack.c.b16 %v1415, %v1411
  %v1456 = vpack.c.b16 %v1416, %v1412
  %v1457 = vpack.c.b16 %v1421, %v1417
  %v1458 = vpack.c.b16 %v1422, %v1418
  %v1459 = vpack.c.b16 %v1423, %v1419
  %v1460 = vpack.c.b16 %v1424, %v1420
  %v1461 = vpack.c.b16 %v1429, %v1425
  %v1462 = vpack.c.b16 %v1430, %v1426
  %v1463 = vpack.c.b16 %v1431, %v1427
  %v1464 = vpack.c.b16 %v1432, %v1428
  %1497 = vmatprep.subr.bf16.mxu0 %v1434
  %1498 = vmatpush1.bf16.msra.mxu0 %v1433
  %1499 = vmatprep.subr.bf16.mxu0 %v1438
  %1500 = vmatpush1.bf16.msra.mxu0 %v1437
  %1501 = vmatprep.subr.bf16.mxu0 %v1442
  %1502 = vmatpush1.bf16.msra.mxu0 %v1441
  %1503 = vmatprep.subr.bf16.mxu0 %v1446
  %1504 = vmatpush1.bf16.msra.mxu0 %v1445
  %1505 = vmatprep.subr.bf16.mxu0 %v1450
  %1506 = vmatpush1.bf16.msra.mxu0 %v1449
  %1507 = vmatprep.subr.bf16.mxu0 %v1454
  %1508 = vmatpush1.bf16.msra.mxu0 %v1453
  %1509 = vmatprep.subr.bf16.mxu0 %v1458
  %1510 = vmatpush1.bf16.msra.mxu0 %v1457
  %1511 = vmatprep.subr.bf16.mxu0 %v1462
  %1512 = vmatpush1.bf16.msra.mxu0 %v1461
  %1513 = vmatprep.subr.bf16.mxu0 0
  %1514 = vmatpush1.bf16.msra.mxu0 0
  %1515 = vmatprep.subr.bf16.mxu0 0
  %1516 = vmatpush1.bf16.msra.mxu0 0
  %1517 = vmatprep.subr.bf16.mxu0 0
  %1518 = vmatpush1.bf16.msra.mxu0 0
  %1519 = vmatprep.subr.bf16.mxu0 0
  %1520 = vmatpush1.bf16.msra.mxu0 0
  %1521 = vmatprep.subr.bf16.mxu0 0
  %1522 = vmatpush1.bf16.msra.mxu0 0
  %1523 = vmatprep.subr.bf16.mxu0 0
  %1524 = vmatpush1.bf16.msra.mxu0 0
  %1525 = vmatprep.subr.bf16.mxu0 0
  %1526 = vmatpush1.bf16.msra.mxu0 0
  %1527 = vmatprep.subr.bf16.mxu0 0
  %1528 = vmatpush1.bf16.msra.mxu0 0
  %1529 = vmatprep.mubr.bf16.mxu0 0
  %1530 = vmatmul.mubr.bf16.gmra.mrb[0].mxu0 %v1304
  %v1531 = vpop.f32.mrb[0].mxu0
  %v1532 = vadd.f32 0.0, %v1531
  %v1533 = vpop.f32.mrb[0].mxu0
  %v1534 = vadd.f32 0.0, %v1533
  %v1535 = vpop.f32.mrb[0].mxu0
  %v1536 = vpop.f32.mrb[0].mxu0
  %1537 = vdwg.mxu0
  %1538 = vmatprep.subr.bf16.mxu0 %v1436
  %1539 = vmatpush1.bf16.msra.mxu0 %v1435
  %1540 = vmatprep.subr.bf16.mxu0 %v1440
  %1541 = vmatpush1.bf16.msra.mxu0 %v1439
  %1542 = vmatprep.subr.bf16.mxu0 %v1444
  %1543 = vmatpush1.bf16.msra.mxu0 %v1443
  %1544 = vmatprep.subr.bf16.mxu0 %v1448
  %1545 = vmatpush1.bf16.msra.mxu0 %v1447
  %1546 = vmatprep.subr.bf16.mxu0 %v1452
  %1547 = vmatpush1.bf16.msra.mxu0 %v1451
  %1548 = vmatprep.subr.bf16.mxu0 %v1456
  %1549 = vmatpush1.bf16.msra.mxu0 %v1455
  %1550 = vmatprep.subr.bf16.mxu0 %v1460
  %1551 = vmatpush1.bf16.msra.mxu0 %v1459
  %1552 = vmatprep.subr.bf16.mxu0 %v1464
  %1553 = vmatpush1.bf16.msra.mxu0 %v1463
  %1554 = vmatprep.subr.bf16.mxu0 0
  %1555 = vmatpush1.bf16.msra.mxu0 0
  %1556 = vmatprep.subr.bf16.mxu0 0
  %1557 = vmatpush1.bf16.msra.mxu0 0
  %1558 = vmatprep.subr.bf16.mxu0 0
  %1559 = vmatpush1.bf16.msra.mxu0 0
  %1560 = vmatprep.subr.bf16.mxu0 0
  %1561 = vmatpush1.bf16.msra.mxu0 0
  %1562 = vmatprep.subr.bf16.mxu0 0
  %1563 = vmatpush1.bf16.msra.mxu0 0
  %1564 = vmatprep.subr.bf16.mxu0 0
  %1565 = vmatpush1.bf16.msra.mxu0 0
  %1566 = vmatprep.subr.bf16.mxu0 0
  %1567 = vmatpush1.bf16.msra.mxu0 0
  %1568 = vmatprep.subr.bf16.mxu0 0
  %1569 = vmatpush1.bf16.msra.mxu0 0
  %1570 = vmatprep.mubr.bf16.mxu0 0
  %1571 = vmatmul.mubr.bf16.gmra.mrb[0].mxu0 %v1304
  %v1572 = vpop.f32.mrb[0].mxu0
  %v1573 = vadd.f32 0.0, %v1572
  %v1574 = vpop.f32.mrb[0].mxu0
  %v1575 = vadd.f32 0.0, %v1574
  %v1576 = vpop.f32.mrb[0].mxu0
  %v1577 = vpop.f32.mrb[0].mxu0
  %1578 = vdwg.mxu0
  %v1579 = vadd.f32 %v1300, %v1532
  %v1580 = vadd.f32 %v1301, %v1534
  %v1581 = vadd.f32 %v1302, %v1573
  %v1582 = vadd.f32 %v1303, %v1575
  %v1583 = vmul.f32 %v1579, 0.5
  %v1584 = vmul.f32 %v1580, 0.5
  %v1585 = vmul.f32 %v1581, 0.5
  %v1586 = vtanh.pop %v1583
  %v1587 = vtanh.pop %v1584
  %v1588 = vtanh.pop %v1585
  %v1589 = vmul.f32 %v1586, 0.5
  %v1590 = vmul.f32 %v1587, 0.5
  %v1591 = vmul.f32 %v1588, 0.5
  %v1592 = vadd.f32 %v1589, 0.5
  %v1593 = vadd.f32 %v1590, 0.5
  %v1594 = vadd.f32 %v1591, 0.5
  %v1595 = vtanh.pop %v1582
  %v1596 = vmul.f32 %v1593, %v1296
  %v1597 = vmul.f32 %v1592, %v1595
  %v1598 = vadd.f32 %v1596, %v1597
  %v1599 = vtanh.pop %v1598
  %v1600 = vmul.f32 %v1594, %v1599
  %s1601 = sadd.s32 %s24, 4
  %v1602 = vstv %s1601
  %vm1603 = vcmp.lt.s32.totalorder %v1602, %v25
  %v1604 = vsel %vm1603, 1, 0
  %1605 = vset.pattern.permute.xlu0 0
  %1606 = vperm.xlu0 %1605, %v1604
  %v1607 = vpop.permute.xlu0 %1606
  %vm1608 = vcmp.eq.s32.totalorder %v1607, 1
  %v1609 = vsel %vm1608, %v1600, 0.0
  %v1610 = vpack.c.bf16 %v1609, %v1609
  %s1611 = scalar_lea.vmem %s3, 16
  %1612 = vst [vmem:[%s1611] sm:$0xf] %v1610
  %v1613 = vsel %vm1608, %v1600, %v1295
  %v1614 = vsel %vm1608, %v1598, %v1296
  %s1615 = scalar_lea.vmem %s0, 80
  %v1616 = vld [vmem:[%s1615] sm:$0xff]
  %v1617 = vld [vmem:[%s1615 + $0x8] sm:$0xff]
  %v1618 = vunpack.c.l.bf16 %v1616
  %v1619 = vunpack.c.h.bf16 %v1616
  %v1620 = vunpack.c.l.bf16 %v1617
  %v1621 = vunpack.c.h.bf16 %v1617
  %v1622 = vpack.c.bf16 %v1613, %v1613
  %v1623 = vld [vmem:[%s2] sm:$0xff]
  %v1624 = vld [vmem:[%s2 + $0x8] sm:$0xff]
  %v1625 = vld [vmem:[%s2 + $0x10] sm:$0xff]
  %v1626 = vld [vmem:[%s2 + $0x18] sm:$0xff]
  %v1627 = vld [vmem:[%s2 + $0x20] sm:$0xff]
  %v1628 = vld [vmem:[%s2 + $0x28] sm:$0xff]
  %v1629 = vld [vmem:[%s2 + $0x30] sm:$0xff]
  %v1630 = vld [vmem:[%s2 + $0x38] sm:$0xff]
  %v1631 = vld [vmem:[%s2 + $0x40] sm:$0xff]
  %v1632 = vld [vmem:[%s2 + $0x48] sm:$0xff]
  %v1633 = vld [vmem:[%s2 + $0x50] sm:$0xff]
  %v1634 = vld [vmem:[%s2 + $0x58] sm:$0xff]
  %v1635 = vld [vmem:[%s2 + $0x60] sm:$0xff]
  %v1636 = vld [vmem:[%s2 + $0x68] sm:$0xff]
  %v1637 = vld [vmem:[%s2 + $0x70] sm:$0xff]
  %v1638 = vld [vmem:[%s2 + $0x78] sm:$0xff]
  %v1639 = vld [vmem:[%s2 + $0x80] sm:$0xff]
  %v1640 = vld [vmem:[%s2 + $0x88] sm:$0xff]
  %v1641 = vld [vmem:[%s2 + $0x90] sm:$0xff]
  %v1642 = vld [vmem:[%s2 + $0x98] sm:$0xff]
  %v1643 = vld [vmem:[%s2 + $0xa0] sm:$0xff]
  %v1644 = vld [vmem:[%s2 + $0xa8] sm:$0xff]
  %v1645 = vld [vmem:[%s2 + $0xb0] sm:$0xff]
  %v1646 = vld [vmem:[%s2 + $0xb8] sm:$0xff]
  %v1647 = vld [vmem:[%s2 + $0xc0] sm:$0xff]
  %v1648 = vld [vmem:[%s2 + $0xc8] sm:$0xff]
  %v1649 = vld [vmem:[%s2 + $0xd0] sm:$0xff]
  %v1650 = vld [vmem:[%s2 + $0xd8] sm:$0xff]
  %v1651 = vld [vmem:[%s2 + $0xe0] sm:$0xff]
  %v1652 = vld [vmem:[%s2 + $0xe8] sm:$0xff]
  %v1653 = vld [vmem:[%s2 + $0xf0] sm:$0xff]
  %v1654 = vld [vmem:[%s2 + $0xf8] sm:$0xff]
  %v1687 = vunpack.c.l.b16 %v1623
  %v1688 = vunpack.c.h.b16 %v1623
  %v1689 = vunpack.c.l.b16 %v1624
  %v1690 = vunpack.c.h.b16 %v1624
  %v1691 = vunpack.c.l.b16 %v1625
  %v1692 = vunpack.c.h.b16 %v1625
  %v1693 = vunpack.c.l.b16 %v1626
  %v1694 = vunpack.c.h.b16 %v1626
  %v1695 = vunpack.c.l.b16 %v1627
  %v1696 = vunpack.c.h.b16 %v1627
  %v1697 = vunpack.c.l.b16 %v1628
  %v1698 = vunpack.c.h.b16 %v1628
  %v1699 = vunpack.c.l.b16 %v1629
  %v1700 = vunpack.c.h.b16 %v1629
  %v1701 = vunpack.c.l.b16 %v1630
  %v1702 = vunpack.c.h.b16 %v1630
  %v1703 = vunpack.c.l.b16 %v1631
  %v1704 = vunpack.c.h.b16 %v1631
  %v1705 = vunpack.c.l.b16 %v1632
  %v1706 = vunpack.c.h.b16 %v1632
  %v1707 = vunpack.c.l.b16 %v1633
  %v1708 = vunpack.c.h.b16 %v1633
  %v1709 = vunpack.c.l.b16 %v1634
  %v1710 = vunpack.c.h.b16 %v1634
  %v1711 = vunpack.c.l.b16 %v1635
  %v1712 = vunpack.c.h.b16 %v1635
  %v1713 = vunpack.c.l.b16 %v1636
  %v1714 = vunpack.c.h.b16 %v1636
  %v1715 = vunpack.c.l.b16 %v1637
  %v1716 = vunpack.c.h.b16 %v1637
  %v1717 = vunpack.c.l.b16 %v1638
  %v1718 = vunpack.c.h.b16 %v1638
  %v1719 = vunpack.c.l.b16 %v1639
  %v1720 = vunpack.c.h.b16 %v1639
  %v1721 = vunpack.c.l.b16 %v1640
  %v1722 = vunpack.c.h.b16 %v1640
  %v1723 = vunpack.c.l.b16 %v1641
  %v1724 = vunpack.c.h.b16 %v1641
  %v1725 = vunpack.c.l.b16 %v1642
  %v1726 = vunpack.c.h.b16 %v1642
  %v1727 = vunpack.c.l.b16 %v1643
  %v1728 = vunpack.c.h.b16 %v1643
  %v1729 = vunpack.c.l.b16 %v1644
  %v1730 = vunpack.c.h.b16 %v1644
  %v1731 = vunpack.c.l.b16 %v1645
  %v1732 = vunpack.c.h.b16 %v1645
  %v1733 = vunpack.c.l.b16 %v1646
  %v1734 = vunpack.c.h.b16 %v1646
  %v1735 = vunpack.c.l.b16 %v1647
  %v1736 = vunpack.c.h.b16 %v1647
  %v1737 = vunpack.c.l.b16 %v1648
  %v1738 = vunpack.c.h.b16 %v1648
  %v1739 = vunpack.c.l.b16 %v1649
  %v1740 = vunpack.c.h.b16 %v1649
  %v1741 = vunpack.c.l.b16 %v1650
  %v1742 = vunpack.c.h.b16 %v1650
  %v1743 = vunpack.c.l.b16 %v1651
  %v1744 = vunpack.c.h.b16 %v1651
  %v1745 = vunpack.c.l.b16 %v1652
  %v1746 = vunpack.c.h.b16 %v1652
  %v1747 = vunpack.c.l.b16 %v1653
  %v1748 = vunpack.c.h.b16 %v1653
  %v1749 = vunpack.c.l.b16 %v1654
  %v1750 = vunpack.c.h.b16 %v1654
  %v1751 = vpack.c.b16 %v1691, %v1687
  %v1752 = vpack.c.b16 %v1692, %v1688
  %v1753 = vpack.c.b16 %v1693, %v1689
  %v1754 = vpack.c.b16 %v1694, %v1690
  %v1755 = vpack.c.b16 %v1699, %v1695
  %v1756 = vpack.c.b16 %v1700, %v1696
  %v1757 = vpack.c.b16 %v1701, %v1697
  %v1758 = vpack.c.b16 %v1702, %v1698
  %v1759 = vpack.c.b16 %v1707, %v1703
  %v1760 = vpack.c.b16 %v1708, %v1704
  %v1761 = vpack.c.b16 %v1709, %v1705
  %v1762 = vpack.c.b16 %v1710, %v1706
  %v1763 = vpack.c.b16 %v1715, %v1711
  %v1764 = vpack.c.b16 %v1716, %v1712
  %v1765 = vpack.c.b16 %v1717, %v1713
  %v1766 = vpack.c.b16 %v1718, %v1714
  %v1767 = vpack.c.b16 %v1723, %v1719
  %v1768 = vpack.c.b16 %v1724, %v1720
  %v1769 = vpack.c.b16 %v1725, %v1721
  %v1770 = vpack.c.b16 %v1726, %v1722
  %v1771 = vpack.c.b16 %v1731, %v1727
  %v1772 = vpack.c.b16 %v1732, %v1728
  %v1773 = vpack.c.b16 %v1733, %v1729
  %v1774 = vpack.c.b16 %v1734, %v1730
  %v1775 = vpack.c.b16 %v1739, %v1735
  %v1776 = vpack.c.b16 %v1740, %v1736
  %v1777 = vpack.c.b16 %v1741, %v1737
  %v1778 = vpack.c.b16 %v1742, %v1738
  %v1779 = vpack.c.b16 %v1747, %v1743
  %v1780 = vpack.c.b16 %v1748, %v1744
  %v1781 = vpack.c.b16 %v1749, %v1745
  %v1782 = vpack.c.b16 %v1750, %v1746
  %1815 = vmatprep.subr.bf16.mxu0 %v1752
  %1816 = vmatpush1.bf16.msra.mxu0 %v1751
  %1817 = vmatprep.subr.bf16.mxu0 %v1756
  %1818 = vmatpush1.bf16.msra.mxu0 %v1755
  %1819 = vmatprep.subr.bf16.mxu0 %v1760
  %1820 = vmatpush1.bf16.msra.mxu0 %v1759
  %1821 = vmatprep.subr.bf16.mxu0 %v1764
  %1822 = vmatpush1.bf16.msra.mxu0 %v1763
  %1823 = vmatprep.subr.bf16.mxu0 %v1768
  %1824 = vmatpush1.bf16.msra.mxu0 %v1767
  %1825 = vmatprep.subr.bf16.mxu0 %v1772
  %1826 = vmatpush1.bf16.msra.mxu0 %v1771
  %1827 = vmatprep.subr.bf16.mxu0 %v1776
  %1828 = vmatpush1.bf16.msra.mxu0 %v1775
  %1829 = vmatprep.subr.bf16.mxu0 %v1780
  %1830 = vmatpush1.bf16.msra.mxu0 %v1779
  %1831 = vmatprep.subr.bf16.mxu0 0
  %1832 = vmatpush1.bf16.msra.mxu0 0
  %1833 = vmatprep.subr.bf16.mxu0 0
  %1834 = vmatpush1.bf16.msra.mxu0 0
  %1835 = vmatprep.subr.bf16.mxu0 0
  %1836 = vmatpush1.bf16.msra.mxu0 0
  %1837 = vmatprep.subr.bf16.mxu0 0
  %1838 = vmatpush1.bf16.msra.mxu0 0
  %1839 = vmatprep.subr.bf16.mxu0 0
  %1840 = vmatpush1.bf16.msra.mxu0 0
  %1841 = vmatprep.subr.bf16.mxu0 0
  %1842 = vmatpush1.bf16.msra.mxu0 0
  %1843 = vmatprep.subr.bf16.mxu0 0
  %1844 = vmatpush1.bf16.msra.mxu0 0
  %1845 = vmatprep.subr.bf16.mxu0 0
  %1846 = vmatpush1.bf16.msra.mxu0 0
  %1847 = vmatprep.mubr.bf16.mxu0 0
  %1848 = vmatmul.mubr.bf16.gmra.mrb[0].mxu0 %v1622
  %v1849 = vpop.f32.mrb[0].mxu0
  %v1850 = vadd.f32 0.0, %v1849
  %v1851 = vpop.f32.mrb[0].mxu0
  %v1852 = vadd.f32 0.0, %v1851
  %v1853 = vpop.f32.mrb[0].mxu0
  %v1854 = vpop.f32.mrb[0].mxu0
  %1855 = vdwg.mxu0
  %1856 = vmatprep.subr.bf16.mxu0 %v1754
  %1857 = vmatpush1.bf16.msra.mxu0 %v1753
  %1858 = vmatprep.subr.bf16.mxu0 %v1758
  %1859 = vmatpush1.bf16.msra.mxu0 %v1757
  %1860 = vmatprep.subr.bf16.mxu0 %v1762
  %1861 = vmatpush1.bf16.msra.mxu0 %v1761
  %1862 = vmatprep.subr.bf16.mxu0 %v1766
  %1863 = vmatpush1.bf16.msra.mxu0 %v1765
  %1864 = vmatprep.subr.bf16.mxu0 %v1770
  %1865 = vmatpush1.bf16.msra.mxu0 %v1769
  %1866 = vmatprep.subr.bf16.mxu0 %v1774
  %1867 = vmatpush1.bf16.msra.mxu0 %v1773
  %1868 = vmatprep.subr.bf16.mxu0 %v1778
  %1869 = vmatpush1.bf16.msra.mxu0 %v1777
  %1870 = vmatprep.subr.bf16.mxu0 %v1782
  %1871 = vmatpush1.bf16.msra.mxu0 %v1781
  %1872 = vmatprep.subr.bf16.mxu0 0
  %1873 = vmatpush1.bf16.msra.mxu0 0
  %1874 = vmatprep.subr.bf16.mxu0 0
  %1875 = vmatpush1.bf16.msra.mxu0 0
  %1876 = vmatprep.subr.bf16.mxu0 0
  %1877 = vmatpush1.bf16.msra.mxu0 0
  %1878 = vmatprep.subr.bf16.mxu0 0
  %1879 = vmatpush1.bf16.msra.mxu0 0
  %1880 = vmatprep.subr.bf16.mxu0 0
  %1881 = vmatpush1.bf16.msra.mxu0 0
  %1882 = vmatprep.subr.bf16.mxu0 0
  %1883 = vmatpush1.bf16.msra.mxu0 0
  %1884 = vmatprep.subr.bf16.mxu0 0
  %1885 = vmatpush1.bf16.msra.mxu0 0
  %1886 = vmatprep.subr.bf16.mxu0 0
  %1887 = vmatpush1.bf16.msra.mxu0 0
  %1888 = vmatprep.mubr.bf16.mxu0 0
  %1889 = vmatmul.mubr.bf16.gmra.mrb[0].mxu0 %v1622
  %v1890 = vpop.f32.mrb[0].mxu0
  %v1891 = vadd.f32 0.0, %v1890
  %v1892 = vpop.f32.mrb[0].mxu0
  %v1893 = vadd.f32 0.0, %v1892
  %v1894 = vpop.f32.mrb[0].mxu0
  %v1895 = vpop.f32.mrb[0].mxu0
  %1896 = vdwg.mxu0
  %v1897 = vadd.f32 %v1618, %v1850
  %v1898 = vadd.f32 %v1619, %v1852
  %v1899 = vadd.f32 %v1620, %v1891
  %v1900 = vadd.f32 %v1621, %v1893
  %v1901 = vmul.f32 %v1897, 0.5
  %v1902 = vmul.f32 %v1898, 0.5
  %v1903 = vmul.f32 %v1899, 0.5
  %v1904 = vtanh.pop %v1901
  %v1905 = vtanh.pop %v1902
  %v1906 = vtanh.pop %v1903
  %v1907 = vmul.f32 %v1904, 0.5
  %v1908 = vmul.f32 %v1905, 0.5
  %v1909 = vmul.f32 %v1906, 0.5
  %v1910 = vadd.f32 %v1907, 0.5
  %v1911 = vadd.f32 %v1908, 0.5
  %v1912 = vadd.f32 %v1909, 0.5
  %v1913 = vtanh.pop %v1900
  %v1914 = vmul.f32 %v1911, %v1614
  %v1915 = vmul.f32 %v1910, %v1913
  %v1916 = vadd.f32 %v1914, %v1915
  %v1917 = vtanh.pop %v1916
  %v1918 = vmul.f32 %v1912, %v1917
  %s1919 = sadd.s32 %s24, 5
  %v1920 = vstv %s1919
  %vm1921 = vcmp.lt.s32.totalorder %v1920, %v25
  %v1922 = vsel %vm1921, 1, 0
  %1923 = vset.pattern.permute.xlu0 0
  %1924 = vperm.xlu0 %1923, %v1922
  %v1925 = vpop.permute.xlu0 %1924
  %vm1926 = vcmp.eq.s32.totalorder %v1925, 1
  %v1927 = vsel %vm1926, %v1918, 0.0
  %v1928 = vpack.c.bf16 %v1927, %v1927
  %s1929 = scalar_lea.vmem %s3, 20
  %1930 = vst [vmem:[%s1929] sm:$0xf] %v1928
  %v1931 = vsel %vm1926, %v1918, %v1613
  %v1932 = vsel %vm1926, %v1916, %v1614
  %s1933 = scalar_lea.vmem %s0, 96
  %v1934 = vld [vmem:[%s1933] sm:$0xff]
  %v1935 = vld [vmem:[%s1933 + $0x8] sm:$0xff]
  %v1936 = vunpack.c.l.bf16 %v1934
  %v1937 = vunpack.c.h.bf16 %v1934
  %v1938 = vunpack.c.l.bf16 %v1935
  %v1939 = vunpack.c.h.bf16 %v1935
  %v1940 = vpack.c.bf16 %v1931, %v1931
  %v1941 = vld [vmem:[%s2] sm:$0xff]
  %v1942 = vld [vmem:[%s2 + $0x8] sm:$0xff]
  %v1943 = vld [vmem:[%s2 + $0x10] sm:$0xff]
  %v1944 = vld [vmem:[%s2 + $0x18] sm:$0xff]
  %v1945 = vld [vmem:[%s2 + $0x20] sm:$0xff]
  %v1946 = vld [vmem:[%s2 + $0x28] sm:$0xff]
  %v1947 = vld [vmem:[%s2 + $0x30] sm:$0xff]
  %v1948 = vld [vmem:[%s2 + $0x38] sm:$0xff]
  %v1949 = vld [vmem:[%s2 + $0x40] sm:$0xff]
  %v1950 = vld [vmem:[%s2 + $0x48] sm:$0xff]
  %v1951 = vld [vmem:[%s2 + $0x50] sm:$0xff]
  %v1952 = vld [vmem:[%s2 + $0x58] sm:$0xff]
  %v1953 = vld [vmem:[%s2 + $0x60] sm:$0xff]
  %v1954 = vld [vmem:[%s2 + $0x68] sm:$0xff]
  %v1955 = vld [vmem:[%s2 + $0x70] sm:$0xff]
  %v1956 = vld [vmem:[%s2 + $0x78] sm:$0xff]
  %v1957 = vld [vmem:[%s2 + $0x80] sm:$0xff]
  %v1958 = vld [vmem:[%s2 + $0x88] sm:$0xff]
  %v1959 = vld [vmem:[%s2 + $0x90] sm:$0xff]
  %v1960 = vld [vmem:[%s2 + $0x98] sm:$0xff]
  %v1961 = vld [vmem:[%s2 + $0xa0] sm:$0xff]
  %v1962 = vld [vmem:[%s2 + $0xa8] sm:$0xff]
  %v1963 = vld [vmem:[%s2 + $0xb0] sm:$0xff]
  %v1964 = vld [vmem:[%s2 + $0xb8] sm:$0xff]
  %v1965 = vld [vmem:[%s2 + $0xc0] sm:$0xff]
  %v1966 = vld [vmem:[%s2 + $0xc8] sm:$0xff]
  %v1967 = vld [vmem:[%s2 + $0xd0] sm:$0xff]
  %v1968 = vld [vmem:[%s2 + $0xd8] sm:$0xff]
  %v1969 = vld [vmem:[%s2 + $0xe0] sm:$0xff]
  %v1970 = vld [vmem:[%s2 + $0xe8] sm:$0xff]
  %v1971 = vld [vmem:[%s2 + $0xf0] sm:$0xff]
  %v1972 = vld [vmem:[%s2 + $0xf8] sm:$0xff]
  %v2005 = vunpack.c.l.b16 %v1941
  %v2006 = vunpack.c.h.b16 %v1941
  %v2007 = vunpack.c.l.b16 %v1942
  %v2008 = vunpack.c.h.b16 %v1942
  %v2009 = vunpack.c.l.b16 %v1943
  %v2010 = vunpack.c.h.b16 %v1943
  %v2011 = vunpack.c.l.b16 %v1944
  %v2012 = vunpack.c.h.b16 %v1944
  %v2013 = vunpack.c.l.b16 %v1945
  %v2014 = vunpack.c.h.b16 %v1945
  %v2015 = vunpack.c.l.b16 %v1946
  %v2016 = vunpack.c.h.b16 %v1946
  %v2017 = vunpack.c.l.b16 %v1947
  %v2018 = vunpack.c.h.b16 %v1947
  %v2019 = vunpack.c.l.b16 %v1948
  %v2020 = vunpack.c.h.b16 %v1948
  %v2021 = vunpack.c.l.b16 %v1949
  %v2022 = vunpack.c.h.b16 %v1949
  %v2023 = vunpack.c.l.b16 %v1950
  %v2024 = vunpack.c.h.b16 %v1950
  %v2025 = vunpack.c.l.b16 %v1951
  %v2026 = vunpack.c.h.b16 %v1951
  %v2027 = vunpack.c.l.b16 %v1952
  %v2028 = vunpack.c.h.b16 %v1952
  %v2029 = vunpack.c.l.b16 %v1953
  %v2030 = vunpack.c.h.b16 %v1953
  %v2031 = vunpack.c.l.b16 %v1954
  %v2032 = vunpack.c.h.b16 %v1954
  %v2033 = vunpack.c.l.b16 %v1955
  %v2034 = vunpack.c.h.b16 %v1955
  %v2035 = vunpack.c.l.b16 %v1956
  %v2036 = vunpack.c.h.b16 %v1956
  %v2037 = vunpack.c.l.b16 %v1957
  %v2038 = vunpack.c.h.b16 %v1957
  %v2039 = vunpack.c.l.b16 %v1958
  %v2040 = vunpack.c.h.b16 %v1958
  %v2041 = vunpack.c.l.b16 %v1959
  %v2042 = vunpack.c.h.b16 %v1959
  %v2043 = vunpack.c.l.b16 %v1960
  %v2044 = vunpack.c.h.b16 %v1960
  %v2045 = vunpack.c.l.b16 %v1961
  %v2046 = vunpack.c.h.b16 %v1961
  %v2047 = vunpack.c.l.b16 %v1962
  %v2048 = vunpack.c.h.b16 %v1962
  %v2049 = vunpack.c.l.b16 %v1963
  %v2050 = vunpack.c.h.b16 %v1963
  %v2051 = vunpack.c.l.b16 %v1964
  %v2052 = vunpack.c.h.b16 %v1964
  %v2053 = vunpack.c.l.b16 %v1965
  %v2054 = vunpack.c.h.b16 %v1965
  %v2055 = vunpack.c.l.b16 %v1966
  %v2056 = vunpack.c.h.b16 %v1966
  %v2057 = vunpack.c.l.b16 %v1967
  %v2058 = vunpack.c.h.b16 %v1967
  %v2059 = vunpack.c.l.b16 %v1968
  %v2060 = vunpack.c.h.b16 %v1968
  %v2061 = vunpack.c.l.b16 %v1969
  %v2062 = vunpack.c.h.b16 %v1969
  %v2063 = vunpack.c.l.b16 %v1970
  %v2064 = vunpack.c.h.b16 %v1970
  %v2065 = vunpack.c.l.b16 %v1971
  %v2066 = vunpack.c.h.b16 %v1971
  %v2067 = vunpack.c.l.b16 %v1972
  %v2068 = vunpack.c.h.b16 %v1972
  %v2069 = vpack.c.b16 %v2009, %v2005
  %v2070 = vpack.c.b16 %v2010, %v2006
  %v2071 = vpack.c.b16 %v2011, %v2007
  %v2072 = vpack.c.b16 %v2012, %v2008
  %v2073 = vpack.c.b16 %v2017, %v2013
  %v2074 = vpack.c.b16 %v2018, %v2014
  %v2075 = vpack.c.b16 %v2019, %v2015
  %v2076 = vpack.c.b16 %v2020, %v2016
  %v2077 = vpack.c.b16 %v2025, %v2021
  %v2078 = vpack.c.b16 %v2026, %v2022
  %v2079 = vpack.c.b16 %v2027, %v2023
  %v2080 = vpack.c.b16 %v2028, %v2024
  %v2081 = vpack.c.b16 %v2033, %v2029
  %v2082 = vpack.c.b16 %v2034, %v2030
  %v2083 = vpack.c.b16 %v2035, %v2031
  %v2084 = vpack.c.b16 %v2036, %v2032
  %v2085 = vpack.c.b16 %v2041, %v2037
  %v2086 = vpack.c.b16 %v2042, %v2038
  %v2087 = vpack.c.b16 %v2043, %v2039
  %v2088 = vpack.c.b16 %v2044, %v2040
  %v2089 = vpack.c.b16 %v2049, %v2045
  %v2090 = vpack.c.b16 %v2050, %v2046
  %v2091 = vpack.c.b16 %v2051, %v2047
  %v2092 = vpack.c.b16 %v2052, %v2048
  %v2093 = vpack.c.b16 %v2057, %v2053
  %v2094 = vpack.c.b16 %v2058, %v2054
  %v2095 = vpack.c.b16 %v2059, %v2055
  %v2096 = vpack.c.b16 %v2060, %v2056
  %v2097 = vpack.c.b16 %v2065, %v2061
  %v2098 = vpack.c.b16 %v2066, %v2062
  %v2099 = vpack.c.b16 %v2067, %v2063
  %v2100 = vpack.c.b16 %v2068, %v2064
  %2133 = vmatprep.subr.bf16.mxu0 %v2070
  %2134 = vmatpush1.bf16.msra.mxu0 %v2069
  %2135 = vmatprep.subr.bf16.mxu0 %v2074
  %2136 = vmatpush1.bf16.msra.mxu0 %v2073
  %2137 = vmatprep.subr.bf16.mxu0 %v2078
  %2138 = vmatpush1.bf16.msra.mxu0 %v2077
  %2139 = vmatprep.subr.bf16.mxu0 %v2082
  %2140 = vmatpush1.bf16.msra.mxu0 %v2081
  %2141 = vmatprep.subr.bf16.mxu0 %v2086
  %2142 = vmatpush1.bf16.msra.mxu0 %v2085
  %2143 = vmatprep.subr.bf16.mxu0 %v2090
  %2144 = vmatpush1.bf16.msra.mxu0 %v2089
  %2145 = vmatprep.subr.bf16.mxu0 %v2094
  %2146 = vmatpush1.bf16.msra.mxu0 %v2093
  %2147 = vmatprep.subr.bf16.mxu0 %v2098
  %2148 = vmatpush1.bf16.msra.mxu0 %v2097
  %2149 = vmatprep.subr.bf16.mxu0 0
  %2150 = vmatpush1.bf16.msra.mxu0 0
  %2151 = vmatprep.subr.bf16.mxu0 0
  %2152 = vmatpush1.bf16.msra.mxu0 0
  %2153 = vmatprep.subr.bf16.mxu0 0
  %2154 = vmatpush1.bf16.msra.mxu0 0
  %2155 = vmatprep.subr.bf16.mxu0 0
  %2156 = vmatpush1.bf16.msra.mxu0 0
  %2157 = vmatprep.subr.bf16.mxu0 0
  %2158 = vmatpush1.bf16.msra.mxu0 0
  %2159 = vmatprep.subr.bf16.mxu0 0
  %2160 = vmatpush1.bf16.msra.mxu0 0
  %2161 = vmatprep.subr.bf16.mxu0 0
  %2162 = vmatpush1.bf16.msra.mxu0 0
  %2163 = vmatprep.subr.bf16.mxu0 0
  %2164 = vmatpush1.bf16.msra.mxu0 0
  %2165 = vmatprep.mubr.bf16.mxu0 0
  %2166 = vmatmul.mubr.bf16.gmra.mrb[0].mxu0 %v1940
  %v2167 = vpop.f32.mrb[0].mxu0
  %v2168 = vadd.f32 0.0, %v2167
  %v2169 = vpop.f32.mrb[0].mxu0
  %v2170 = vadd.f32 0.0, %v2169
  %v2171 = vpop.f32.mrb[0].mxu0
  %v2172 = vpop.f32.mrb[0].mxu0
  %2173 = vdwg.mxu0
  %2174 = vmatprep.subr.bf16.mxu0 %v2072
  %2175 = vmatpush1.bf16.msra.mxu0 %v2071
  %2176 = vmatprep.subr.bf16.mxu0 %v2076
  %2177 = vmatpush1.bf16.msra.mxu0 %v2075
  %2178 = vmatprep.subr.bf16.mxu0 %v2080
  %2179 = vmatpush1.bf16.msra.mxu0 %v2079
  %2180 = vmatprep.subr.bf16.mxu0 %v2084
  %2181 = vmatpush1.bf16.msra.mxu0 %v2083
  %2182 = vmatprep.subr.bf16.mxu0 %v2088
  %2183 = vmatpush1.bf16.msra.mxu0 %v2087
  %2184 = vmatprep.subr.bf16.mxu0 %v2092
  %2185 = vmatpush1.bf16.msra.mxu0 %v2091
  %2186 = vmatprep.subr.bf16.mxu0 %v2096
  %2187 = vmatpush1.bf16.msra.mxu0 %v2095
  %2188 = vmatprep.subr.bf16.mxu0 %v2100
  %2189 = vmatpush1.bf16.msra.mxu0 %v2099
  %2190 = vmatprep.subr.bf16.mxu0 0
  %2191 = vmatpush1.bf16.msra.mxu0 0
  %2192 = vmatprep.subr.bf16.mxu0 0
  %2193 = vmatpush1.bf16.msra.mxu0 0
  %2194 = vmatprep.subr.bf16.mxu0 0
  %2195 = vmatpush1.bf16.msra.mxu0 0
  %2196 = vmatprep.subr.bf16.mxu0 0
  %2197 = vmatpush1.bf16.msra.mxu0 0
  %2198 = vmatprep.subr.bf16.mxu0 0
  %2199 = vmatpush1.bf16.msra.mxu0 0
  %2200 = vmatprep.subr.bf16.mxu0 0
  %2201 = vmatpush1.bf16.msra.mxu0 0
  %2202 = vmatprep.subr.bf16.mxu0 0
  %2203 = vmatpush1.bf16.msra.mxu0 0
  %2204 = vmatprep.subr.bf16.mxu0 0
  %2205 = vmatpush1.bf16.msra.mxu0 0
  %2206 = vmatprep.mubr.bf16.mxu0 0
  %2207 = vmatmul.mubr.bf16.gmra.mrb[0].mxu0 %v1940
  %v2208 = vpop.f32.mrb[0].mxu0
  %v2209 = vadd.f32 0.0, %v2208
  %v2210 = vpop.f32.mrb[0].mxu0
  %v2211 = vadd.f32 0.0, %v2210
  %v2212 = vpop.f32.mrb[0].mxu0
  %v2213 = vpop.f32.mrb[0].mxu0
  %2214 = vdwg.mxu0
  %v2215 = vadd.f32 %v1936, %v2168
  %v2216 = vadd.f32 %v1937, %v2170
  %v2217 = vadd.f32 %v1938, %v2209
  %v2218 = vadd.f32 %v1939, %v2211
  %v2219 = vmul.f32 %v2215, 0.5
  %v2220 = vmul.f32 %v2216, 0.5
  %v2221 = vmul.f32 %v2217, 0.5
  %v2222 = vtanh.pop %v2219
  %v2223 = vtanh.pop %v2220
  %v2224 = vtanh.pop %v2221
  %v2225 = vmul.f32 %v2222, 0.5
  %v2226 = vmul.f32 %v2223, 0.5
  %v2227 = vmul.f32 %v2224, 0.5
  %v2228 = vadd.f32 %v2225, 0.5
  %v2229 = vadd.f32 %v2226, 0.5
  %v2230 = vadd.f32 %v2227, 0.5
  %v2231 = vtanh.pop %v2218
  %v2232 = vmul.f32 %v2229, %v1932
  %v2233 = vmul.f32 %v2228, %v2231
  %v2234 = vadd.f32 %v2232, %v2233
  %v2235 = vtanh.pop %v2234
  %v2236 = vmul.f32 %v2230, %v2235
  %s2237 = sadd.s32 %s24, 6
  %v2238 = vstv %s2237
  %vm2239 = vcmp.lt.s32.totalorder %v2238, %v25
  %v2240 = vsel %vm2239, 1, 0
  %2241 = vset.pattern.permute.xlu0 0
  %2242 = vperm.xlu0 %2241, %v2240
  %v2243 = vpop.permute.xlu0 %2242
  %vm2244 = vcmp.eq.s32.totalorder %v2243, 1
  %v2245 = vsel %vm2244, %v2236, 0.0
  %v2246 = vpack.c.bf16 %v2245, %v2245
  %s2247 = scalar_lea.vmem %s3, 24
  %2248 = vst [vmem:[%s2247] sm:$0xf] %v2246
  %v2249 = vsel %vm2244, %v2236, %v1931
  %v2250 = vsel %vm2244, %v2234, %v1932
  %s2251 = scalar_lea.vmem %s0, 112
  %v2252 = vld [vmem:[%s2251] sm:$0xff]
  %v2253 = vld [vmem:[%s2251 + $0x8] sm:$0xff]
  %v2254 = vunpack.c.l.bf16 %v2252
  %v2255 = vunpack.c.h.bf16 %v2252
  %v2256 = vunpack.c.l.bf16 %v2253
  %v2257 = vunpack.c.h.bf16 %v2253
  %v2258 = vpack.c.bf16 %v2249, %v2249
  %v2259 = vld [vmem:[%s2] sm:$0xff]
  %v2260 = vld [vmem:[%s2 + $0x8] sm:$0xff]
  %v2261 = vld [vmem:[%s2 + $0x10] sm:$0xff]
  %v2262 = vld [vmem:[%s2 + $0x18] sm:$0xff]
  %v2263 = vld [vmem:[%s2 + $0x20] sm:$0xff]
  %v2264 = vld [vmem:[%s2 + $0x28] sm:$0xff]
  %v2265 = vld [vmem:[%s2 + $0x30] sm:$0xff]
  %v2266 = vld [vmem:[%s2 + $0x38] sm:$0xff]
  %v2267 = vld [vmem:[%s2 + $0x40] sm:$0xff]
  %v2268 = vld [vmem:[%s2 + $0x48] sm:$0xff]
  %v2269 = vld [vmem:[%s2 + $0x50] sm:$0xff]
  %v2270 = vld [vmem:[%s2 + $0x58] sm:$0xff]
  %v2271 = vld [vmem:[%s2 + $0x60] sm:$0xff]
  %v2272 = vld [vmem:[%s2 + $0x68] sm:$0xff]
  %v2273 = vld [vmem:[%s2 + $0x70] sm:$0xff]
  %v2274 = vld [vmem:[%s2 + $0x78] sm:$0xff]
  %v2275 = vld [vmem:[%s2 + $0x80] sm:$0xff]
  %v2276 = vld [vmem:[%s2 + $0x88] sm:$0xff]
  %v2277 = vld [vmem:[%s2 + $0x90] sm:$0xff]
  %v2278 = vld [vmem:[%s2 + $0x98] sm:$0xff]
  %v2279 = vld [vmem:[%s2 + $0xa0] sm:$0xff]
  %v2280 = vld [vmem:[%s2 + $0xa8] sm:$0xff]
  %v2281 = vld [vmem:[%s2 + $0xb0] sm:$0xff]
  %v2282 = vld [vmem:[%s2 + $0xb8] sm:$0xff]
  %v2283 = vld [vmem:[%s2 + $0xc0] sm:$0xff]
  %v2284 = vld [vmem:[%s2 + $0xc8] sm:$0xff]
  %v2285 = vld [vmem:[%s2 + $0xd0] sm:$0xff]
  %v2286 = vld [vmem:[%s2 + $0xd8] sm:$0xff]
  %v2287 = vld [vmem:[%s2 + $0xe0] sm:$0xff]
  %v2288 = vld [vmem:[%s2 + $0xe8] sm:$0xff]
  %v2289 = vld [vmem:[%s2 + $0xf0] sm:$0xff]
  %v2290 = vld [vmem:[%s2 + $0xf8] sm:$0xff]
  %v2323 = vunpack.c.l.b16 %v2259
  %v2324 = vunpack.c.h.b16 %v2259
  %v2325 = vunpack.c.l.b16 %v2260
  %v2326 = vunpack.c.h.b16 %v2260
  %v2327 = vunpack.c.l.b16 %v2261
  %v2328 = vunpack.c.h.b16 %v2261
  %v2329 = vunpack.c.l.b16 %v2262
  %v2330 = vunpack.c.h.b16 %v2262
  %v2331 = vunpack.c.l.b16 %v2263
  %v2332 = vunpack.c.h.b16 %v2263
  %v2333 = vunpack.c.l.b16 %v2264
  %v2334 = vunpack.c.h.b16 %v2264
  %v2335 = vunpack.c.l.b16 %v2265
  %v2336 = vunpack.c.h.b16 %v2265
  %v2337 = vunpack.c.l.b16 %v2266
  %v2338 = vunpack.c.h.b16 %v2266
  %v2339 = vunpack.c.l.b16 %v2267
  %v2340 = vunpack.c.h.b16 %v2267
  %v2341 = vunpack.c.l.b16 %v2268
  %v2342 = vunpack.c.h.b16 %v2268
  %v2343 = vunpack.c.l.b16 %v2269
  %v2344 = vunpack.c.h.b16 %v2269
  %v2345 = vunpack.c.l.b16 %v2270
  %v2346 = vunpack.c.h.b16 %v2270
  %v2347 = vunpack.c.l.b16 %v2271
  %v2348 = vunpack.c.h.b16 %v2271
  %v2349 = vunpack.c.l.b16 %v2272
  %v2350 = vunpack.c.h.b16 %v2272
  %v2351 = vunpack.c.l.b16 %v2273
  %v2352 = vunpack.c.h.b16 %v2273
  %v2353 = vunpack.c.l.b16 %v2274
  %v2354 = vunpack.c.h.b16 %v2274
  %v2355 = vunpack.c.l.b16 %v2275
  %v2356 = vunpack.c.h.b16 %v2275
  %v2357 = vunpack.c.l.b16 %v2276
  %v2358 = vunpack.c.h.b16 %v2276
  %v2359 = vunpack.c.l.b16 %v2277
  %v2360 = vunpack.c.h.b16 %v2277
  %v2361 = vunpack.c.l.b16 %v2278
  %v2362 = vunpack.c.h.b16 %v2278
  %v2363 = vunpack.c.l.b16 %v2279
  %v2364 = vunpack.c.h.b16 %v2279
  %v2365 = vunpack.c.l.b16 %v2280
  %v2366 = vunpack.c.h.b16 %v2280
  %v2367 = vunpack.c.l.b16 %v2281
  %v2368 = vunpack.c.h.b16 %v2281
  %v2369 = vunpack.c.l.b16 %v2282
  %v2370 = vunpack.c.h.b16 %v2282
  %v2371 = vunpack.c.l.b16 %v2283
  %v2372 = vunpack.c.h.b16 %v2283
  %v2373 = vunpack.c.l.b16 %v2284
  %v2374 = vunpack.c.h.b16 %v2284
  %v2375 = vunpack.c.l.b16 %v2285
  %v2376 = vunpack.c.h.b16 %v2285
  %v2377 = vunpack.c.l.b16 %v2286
  %v2378 = vunpack.c.h.b16 %v2286
  %v2379 = vunpack.c.l.b16 %v2287
  %v2380 = vunpack.c.h.b16 %v2287
  %v2381 = vunpack.c.l.b16 %v2288
  %v2382 = vunpack.c.h.b16 %v2288
  %v2383 = vunpack.c.l.b16 %v2289
  %v2384 = vunpack.c.h.b16 %v2289
  %v2385 = vunpack.c.l.b16 %v2290
  %v2386 = vunpack.c.h.b16 %v2290
  %v2387 = vpack.c.b16 %v2327, %v2323
  %v2388 = vpack.c.b16 %v2328, %v2324
  %v2389 = vpack.c.b16 %v2329, %v2325
  %v2390 = vpack.c.b16 %v2330, %v2326
  %v2391 = vpack.c.b16 %v2335, %v2331
  %v2392 = vpack.c.b16 %v2336, %v2332
  %v2393 = vpack.c.b16 %v2337, %v2333
  %v2394 = vpack.c.b16 %v2338, %v2334
  %v2395 = vpack.c.b16 %v2343, %v2339
  %v2396 = vpack.c.b16 %v2344, %v2340
  %v2397 = vpack.c.b16 %v2345, %v2341
  %v2398 = vpack.c.b16 %v2346, %v2342
  %v2399 = vpack.c.b16 %v2351, %v2347
  %v2400 = vpack.c.b16 %v2352, %v2348
  %v2401 = vpack.c.b16 %v2353, %v2349
  %v2402 = vpack.c.b16 %v2354, %v2350
  %v2403 = vpack.c.b16 %v2359, %v2355
  %v2404 = vpack.c.b16 %v2360, %v2356
  %v2405 = vpack.c.b16 %v2361, %v2357
  %v2406 = vpack.c.b16 %v2362, %v2358
  %v2407 = vpack.c.b16 %v2367, %v2363
  %v2408 = vpack.c.b16 %v2368, %v2364
  %v2409 = vpack.c.b16 %v2369, %v2365
  %v2410 = vpack.c.b16 %v2370, %v2366
  %v2411 = vpack.c.b16 %v2375, %v2371
  %v2412 = vpack.c.b16 %v2376, %v2372
  %v2413 = vpack.c.b16 %v2377, %v2373
  %v2414 = vpack.c.b16 %v2378, %v2374
  %v2415 = vpack.c.b16 %v2383, %v2379
  %v2416 = vpack.c.b16 %v2384, %v2380
  %v2417 = vpack.c.b16 %v2385, %v2381
  %v2418 = vpack.c.b16 %v2386, %v2382
  %2451 = vmatprep.subr.bf16.mxu0 %v2388
  %2452 = vmatpush1.bf16.msra.mxu0 %v2387
  %2453 = vmatprep.subr.bf16.mxu0 %v2392
  %2454 = vmatpush1.bf16.msra.mxu0 %v2391
  %2455 = vmatprep.subr.bf16.mxu0 %v2396
  %2456 = vmatpush1.bf16.msra.mxu0 %v2395
  %2457 = vmatprep.subr.bf16.mxu0 %v2400
  %2458 = vmatpush1.bf16.msra.mxu0 %v2399
  %2459 = vmatprep.subr.bf16.mxu0 %v2404
  %2460 = vmatpush1.bf16.msra.mxu0 %v2403
  %2461 = vmatprep.subr.bf16.mxu0 %v2408
  %2462 = vmatpush1.bf16.msra.mxu0 %v2407
  %2463 = vmatprep.subr.bf16.mxu0 %v2412
  %2464 = vmatpush1.bf16.msra.mxu0 %v2411
  %2465 = vmatprep.subr.bf16.mxu0 %v2416
  %2466 = vmatpush1.bf16.msra.mxu0 %v2415
  %2467 = vmatprep.subr.bf16.mxu0 0
  %2468 = vmatpush1.bf16.msra.mxu0 0
  %2469 = vmatprep.subr.bf16.mxu0 0
  %2470 = vmatpush1.bf16.msra.mxu0 0
  %2471 = vmatprep.subr.bf16.mxu0 0
  %2472 = vmatpush1.bf16.msra.mxu0 0
  %2473 = vmatprep.subr.bf16.mxu0 0
  %2474 = vmatpush1.bf16.msra.mxu0 0
  %2475 = vmatprep.subr.bf16.mxu0 0
  %2476 = vmatpush1.bf16.msra.mxu0 0
  %2477 = vmatprep.subr.bf16.mxu0 0
  %2478 = vmatpush1.bf16.msra.mxu0 0
  %2479 = vmatprep.subr.bf16.mxu0 0
  %2480 = vmatpush1.bf16.msra.mxu0 0
  %2481 = vmatprep.subr.bf16.mxu0 0
  %2482 = vmatpush1.bf16.msra.mxu0 0
  %2483 = vmatprep.mubr.bf16.mxu0 0
  %2484 = vmatmul.mubr.bf16.gmra.mrb[0].mxu0 %v2258
  %v2485 = vpop.f32.mrb[0].mxu0
  %v2486 = vadd.f32 0.0, %v2485
  %v2487 = vpop.f32.mrb[0].mxu0
  %v2488 = vadd.f32 0.0, %v2487
  %v2489 = vpop.f32.mrb[0].mxu0
  %v2490 = vpop.f32.mrb[0].mxu0
  %2491 = vdwg.mxu0
  %2492 = vmatprep.subr.bf16.mxu0 %v2390
  %2493 = vmatpush1.bf16.msra.mxu0 %v2389
  %2494 = vmatprep.subr.bf16.mxu0 %v2394
  %2495 = vmatpush1.bf16.msra.mxu0 %v2393
  %2496 = vmatprep.subr.bf16.mxu0 %v2398
  %2497 = vmatpush1.bf16.msra.mxu0 %v2397
  %2498 = vmatprep.subr.bf16.mxu0 %v2402
  %2499 = vmatpush1.bf16.msra.mxu0 %v2401
  %2500 = vmatprep.subr.bf16.mxu0 %v2406
  %2501 = vmatpush1.bf16.msra.mxu0 %v2405
  %2502 = vmatprep.subr.bf16.mxu0 %v2410
  %2503 = vmatpush1.bf16.msra.mxu0 %v2409
  %2504 = vmatprep.subr.bf16.mxu0 %v2414
  %2505 = vmatpush1.bf16.msra.mxu0 %v2413
  %2506 = vmatprep.subr.bf16.mxu0 %v2418
  %2507 = vmatpush1.bf16.msra.mxu0 %v2417
  %2508 = vmatprep.subr.bf16.mxu0 0
  %2509 = vmatpush1.bf16.msra.mxu0 0
  %2510 = vmatprep.subr.bf16.mxu0 0
  %2511 = vmatpush1.bf16.msra.mxu0 0
  %2512 = vmatprep.subr.bf16.mxu0 0
  %2513 = vmatpush1.bf16.msra.mxu0 0
  %2514 = vmatprep.subr.bf16.mxu0 0
  %2515 = vmatpush1.bf16.msra.mxu0 0
  %2516 = vmatprep.subr.bf16.mxu0 0
  %2517 = vmatpush1.bf16.msra.mxu0 0
  %2518 = vmatprep.subr.bf16.mxu0 0
  %2519 = vmatpush1.bf16.msra.mxu0 0
  %2520 = vmatprep.subr.bf16.mxu0 0
  %2521 = vmatpush1.bf16.msra.mxu0 0
  %2522 = vmatprep.subr.bf16.mxu0 0
  %2523 = vmatpush1.bf16.msra.mxu0 0
  %2524 = vmatprep.mubr.bf16.mxu0 0
  %2525 = vmatmul.mubr.bf16.gmra.mrb[0].mxu0 %v2258
  %v2526 = vpop.f32.mrb[0].mxu0
  %v2527 = vadd.f32 0.0, %v2526
  %v2528 = vpop.f32.mrb[0].mxu0
  %v2529 = vadd.f32 0.0, %v2528
  %v2530 = vpop.f32.mrb[0].mxu0
  %v2531 = vpop.f32.mrb[0].mxu0
  %2532 = vdwg.mxu0
  %v2533 = vadd.f32 %v2254, %v2486
  %v2534 = vadd.f32 %v2255, %v2488
  %v2535 = vadd.f32 %v2256, %v2527
  %v2536 = vadd.f32 %v2257, %v2529
  %v2537 = vmul.f32 %v2533, 0.5
  %v2538 = vmul.f32 %v2534, 0.5
  %v2539 = vmul.f32 %v2535, 0.5
  %v2540 = vtanh.pop %v2537
  %v2541 = vtanh.pop %v2538
  %v2542 = vtanh.pop %v2539
  %v2543 = vmul.f32 %v2540, 0.5
  %v2544 = vmul.f32 %v2541, 0.5
  %v2545 = vmul.f32 %v2542, 0.5
  %v2546 = vadd.f32 %v2543, 0.5
  %v2547 = vadd.f32 %v2544, 0.5
  %v2548 = vadd.f32 %v2545, 0.5
  %v2549 = vtanh.pop %v2536
  %v2550 = vmul.f32 %v2547, %v2250
  %v2551 = vmul.f32 %v2546, %v2549
  %v2552 = vadd.f32 %v2550, %v2551
  %v2553 = vtanh.pop %v2552
  %v2554 = vmul.f32 %v2548, %v2553
  %s2555 = sadd.s32 %s24, 7
  %v2556 = vstv %s2555
  %vm2557 = vcmp.lt.s32.totalorder %v2556, %v25
  %v2558 = vsel %vm2557, 1, 0
  %2559 = vset.pattern.permute.xlu0 0
  %2560 = vperm.xlu0 %2559, %v2558
  %v2561 = vpop.permute.xlu0 %2560
  %vm2562 = vcmp.eq.s32.totalorder %v2561, 1
  %v2563 = vsel %vm2562, %v2554, 0.0
  %v2564 = vpack.c.bf16 %v2563, %v2563
  %s2565 = scalar_lea.vmem %s3, 28
  %2566 = vst [vmem:[%s2565] sm:$0xf] %v2564
  %v2567 = vsel %vm2562, %v2554, %v2249
  %v2568 = vsel %vm2562, %v2552, %v2250
  %2569 = vst [vmem:[%s4] sm:$0xff] %v2567
  %2570 = vst [vmem:[%s5] sm:$0xff] %v2568
  // Predicated region
  $region18: #{rnn_forward.7} parent=0 // pred_check
    _
  $region19: #{rnn_forward.7} parent=0 // pred_check_branch
    %2572 = sbr.rel (0) target = $region21
  $region20: #{rnn_forward.7} parent=0 // pred_region
    _
  $region21: #{rnn_forward.7} parent=0 // pred_fallthru
    _
  // Predicated region
  $region22: #{rnn_forward.7} parent=0 // pred_check
    _
  $region23: #{rnn_forward.7} parent=0 // pred_check_branch
    %2574 = sbr.rel (0) target = $region25
  $region24: #{rnn_forward.7} parent=0 // pred_region
    _
  $region25: #{rnn_forward.7} parent=0 // pred_fallthru
    _
  // Predicated region
  $region26: #{rnn_forward.7} parent=0 // pred_check
    _
  $region27: #{rnn_forward.7} parent=0 // pred_check_branch
    %2576 = sbr.rel (0) target = $region29
  $region28: #{rnn_forward.7} parent=0 // pred_region
    _
  $region29: #{rnn_forward.7} parent=0 // pred_fallthru
    _
  // Predicated region
  $region30: #{rnn_forward.7} parent=0 // pred_check
    _
  $region31: #{rnn_forward.7} parent=0 // pred_check_branch
    %2578 = sbr.rel (0) target = $region33
  $region32: #{rnn_forward.7} parent=0 // pred_region
    _
  $region33: #{rnn_forward.7} parent=0 // pred_fallthru
    _
  // Predicated region
  $region34: #{rnn_forward.7} parent=0 // pred_check
    _
  $region35: #{rnn_forward.7} parent=0 // pred_check_branch
    %2580 = sbr.rel (0) target = $region37
  $region36: #{rnn_forward.7} parent=0 // pred_region
    _
  $region37: #{rnn_forward.7} parent=0 // pred_fallthru
    _
  // Predicated region
  $region38: #{rnn_forward.7} parent=0 // pred_check
    _
  $region39: #{rnn_forward.7} parent=0 // pred_check_branch
    %2582 = sbr.rel (0) target = $region41
  $region40: #{rnn_forward.7} parent=0 // pred_region
    _
  $region41: #{rnn_forward.7} parent=0 // pred_fallthru
    _

</llo_original>
